<compile_context>
chip_gen: v5e
topology: v5e:2x2
jax: 0.10.0
libtpu: 0.0.40
codegen_flags: <defaults>
</compile_context>

<pallas_src>
import functools

import jax
import jax.numpy as jnp
from jax.experimental import pallas as pl
from jax.experimental.pallas import tpu as pltpu

LANE = 128


def _round_up(x, m):
    return ((x + m - 1) // m) * m


def _lstm_cell(gates, c, H):
    """One LSTM cell update. PyTorch gate order i, f, g, o; f32 math."""
    i = jax.nn.sigmoid(gates[:, 0:H])
    f = jax.nn.sigmoid(gates[:, H:2 * H])
    g = jnp.tanh(gates[:, 2 * H:3 * H])
    o = jax.nn.sigmoid(gates[:, 3 * H:4 * H])
    c_new = f * c + i * g
    h_new = o * jnp.tanh(c_new)
    return h_new, c_new


# ----------------------------------------------------------------------------
# Fused encoder kernel: stacked LSTM -> (mu|logvar) head -> reparameterize
# ----------------------------------------------------------------------------
def _encoder_kernel(*refs, n_layers, T, B, H, latent):
    x_ref, h0_ref, c0_ref, eps_ref = refs[0:4]           # x: (T*B, F) time-major
    off = 4
    layers = [(refs[off + 3 * l], refs[off + 3 * l + 1], refs[off + 3 * l + 2])
              for l in range(n_layers)]
    off += 3 * n_layers
    w_head_ref, b_head_ref = refs[off], refs[off + 1]    # (H, 2*latent), (1, 2*latent)
    z_ref, mu_ref, logvar_ref = refs[off + 2], refs[off + 3], refs[off + 4]
    seq_scr, gx_scr = refs[off + 5], refs[off + 6]       # (T*B, H), (T*B, 4H)

    h = None
    for l in range(n_layers):
        w_ih_ref, w_hh_ref, b_ref = layers[l]
        src_ref = x_ref if l == 0 else seq_scr
        # Hoisted input projection for ALL time steps: one well-shaped MXU
        # matmul; only h @ W_hh remains inside the recurrence.
        gx_scr[...] = (jnp.dot(src_ref[...], w_ih_ref[...],
                               preferred_element_type=jnp.float32)
                       + b_ref[...])

        w_hh = w_hh_ref[...]
        h = h0_ref[l]
        c = c0_ref[l]
        last = (l == n_layers - 1)
        for t in range(T):                                # fully unrolled
            gates = gx_scr[pl.ds(t * B, B), :] + jnp.dot(
                h, w_hh, preferred_element_type=jnp.float32)
            h, c = _lstm_cell(gates, c, H)
            if not last:                                  # last layer's sequence unused
                seq_scr[pl.ds(t * B, B), :] = h

    # Fused (mu | logvar) head + reparameterization on the final hidden state.
    heads = (jnp.dot(h, w_head_ref[...], preferred_element_type=jnp.float32)
             + b_head_ref[...])
    mu = heads[:, 0:latent]
    logvar = heads[:, latent:2 * latent]
    mu_ref[...] = mu
    logvar_ref[...] = logvar
    z_ref[...] = mu + eps_ref[...] * jnp.exp(0.5 * logvar)


# ----------------------------------------------------------------------------
# Fused decoder kernel: stacked LSTM (constant z input) -> Linear -> sigmoid
# ----------------------------------------------------------------------------
def _decoder_kernel(*refs, n_layers, T, B, H):
    z_ref, h0_ref, c0_ref = refs[0:3]                     # z: (B, latent)
    off = 3
    layers = [(refs[off + 3 * l], refs[off + 3 * l + 1], refs[off + 3 * l + 2])
              for l in range(n_layers)]
    off += 3 * n_layers
    w_out_ref, b_out_ref = refs[off], refs[off + 1]       # (H, Fpad), (1, Fpad)
    out_ref = refs[off + 2]                               # (T*B, Fpad) lane-dense
    seq_scr, gx_scr = refs[off + 3], refs[off + 4]        # (T*B, H), (T*B, 4H)

    for l in range(n_layers):
        w_ih_ref, w_hh_ref, b_ref = layers[l]
        if l == 0:
            # Decoder input is the SAME z at every step: project it ONCE.
            gz = (jnp.dot(z_ref[...], w_ih_ref[...],
                          preferred_element_type=jnp.float32) + b_ref[...])
        else:
            gz = None
            gx_scr[...] = (jnp.dot(seq_scr[...], w_ih_ref[...],
                                   preferred_element_type=jnp.float32)
                           + b_ref[...])

        w_hh = w_hh_ref[...]
        h = h0_ref[l]
        c = c0_ref[l]
        for t in range(T):                                # fully unrolled
            gh = jnp.dot(h, w_hh, preferred_element_type=jnp.float32)
            gates = (gz if l == 0 else gx_scr[pl.ds(t * B, B), :]) + gh
            h, c = _lstm_cell(gates, c, H)
            seq_scr[pl.ds(t * B, B), :] = h

    # Fused output Linear + sigmoid; Fpad is a multiple of 128 so the store
    # path is unmasked / lane-dense.
    out_ref[...] = jax.nn.sigmoid(
        jnp.dot(seq_scr[...], w_out_ref[...],
                preferred_element_type=jnp.float32) + b_out_ref[...])


# ----------------------------------------------------------------------------
# Wrappers around the two fused pallas_calls
# ----------------------------------------------------------------------------
def _vmem_spec():
    return pl.BlockSpec(memory_space=pltpu.MemorySpace.VMEM)


def encoder_forward(params, x_btf, encoder_hidden, eps):
    B, T, F = x_btf.shape
    lstm = params["enc_lstm"]
    n_layers = len(lstm)
    H = lstm[0]["w_hh"].shape[0]
    latent = params["w_mu"].shape[1]

    # Time-major, flattened to (T*B, F) so the kernel never reshapes.
    x_flat = jnp.transpose(x_btf, (1, 0, 2)).reshape(T * B, F)
    h0, c0 = encoder_hidden
    # Fuse mu / logvar heads into one (H, 2*latent) matmul.
    w_head = jnp.concatenate([params["w_mu"], params["w_logvar"]], axis=1)
    b_head = jnp.concatenate([params["b_mu"], params["b_logvar"]], axis=1)

    inputs = [x_flat, h0, c0, eps]
    for lp in lstm:
        inputs += [lp["w_ih"], lp["w_hh"], lp["b"]]
    inputs += [w_head, b_head]

    kernel = functools.partial(_encoder_kernel, n_layers=n_layers,
                               T=T, B=B, H=H, latent=latent)
    z, mu, logvar = pl.pallas_call(
        kernel,
        out_shape=(
            jax.ShapeDtypeStruct((B, latent), jnp.float32),
            jax.ShapeDtypeStruct((B, latent), jnp.float32),
            jax.ShapeDtypeStruct((B, latent), jnp.float32),
        ),
        in_specs=[_vmem_spec()] * len(inputs),
        out_specs=(_vmem_spec(), _vmem_spec(), _vmem_spec()),
        scratch_shapes=[
            pltpu.VMEM((T * B, H), jnp.float32),        # inter-layer sequence
            pltpu.VMEM((T * B, 4 * H), jnp.float32),    # hoisted input gates
        ],
    )(*inputs)
    return z, mu, logvar


def decoder_forward(params, z, decoder_hidden, melody_length):
    B, _ = z.shape
    lstm = params["dec_lstm"]
    n_layers = len(lstm)
    H = lstm[0]["w_hh"].shape[0]
    F = params["w_out"].shape[1]
    T = melody_length
    Fpad = _round_up(F, LANE)

    # Lane-dense output: pad the output projection to a multiple of 128 lanes.
    w_out_p = jnp.pad(params["w_out"], ((0, 0), (0, Fpad - F)))
    b_out_p = jnp.pad(params["b_out"], ((0, 0), (0, Fpad - F)))
    h0, c0 = decoder_hidden

    inputs = [z, h0, c0]
    for lp in lstm:
        inputs += [lp["w_ih"], lp["w_hh"], lp["b"]]
    inputs += [w_out_p, b_out_p]

    kernel = functools.partial(_decoder_kernel, n_layers=n_layers, T=T, B=B, H=H)
    out_pad = pl.pallas_call(
        kernel,
        out_shape=jax.ShapeDtypeStruct((T * B, Fpad), jnp.float32),
        in_specs=[_vmem_spec()] * len(inputs),
        out_specs=_vmem_spec(),
        scratch_shapes=[
            pltpu.VMEM((T * B, H), jnp.float32),        # final-layer sequence
            pltpu.VMEM((T * B, 4 * H), jnp.float32),    # hoisted input gates
        ],
    )(*inputs)
    out = out_pad.reshape(T, B, Fpad)[:, :, :F]          # drop lane padding
    return jnp.transpose(out, (1, 0, 2))                 # back to batch_first


def midivae_forward(params, input_batch, encoder_hidden, decoder_hidden, eps,
                    melody_length):
    """input_batch: (B, T, n_features), batch_first like the PyTorch module."""
    z, mu, logvar = encoder_forward(params, input_batch, encoder_hidden, eps)
    out = decoder_forward(params, z, decoder_hidden, melody_length)
    return out, z, mu, logvar


# ----------------------------------------------------------------------------
# Parameter construction (deterministic, PyTorch-style uniform init)
# ----------------------------------------------------------------------------
def _uniform(key, shape, bound):
    return jax.random.uniform(key, shape, jnp.float32, -bound, bound)


def init_midivae_params(key, n_features, n_hidden, n_enc_layers,
                        n_dec_layers, latent_dim):
    params = {"enc_lstm": [], "dec_lstm": []}
    kH = 1.0 / jnp.sqrt(n_hidden)

    def make_lstm_stack(key, n_layers, in0):
        layers = []
        for l in range(n_layers):
            key, k1, k2, k3 = jax.random.split(key, 4)
            fin = in0 if l == 0 else n_hidden
            layers.append({
                "w_ih": _uniform(k1, (fin, 4 * n_hidden), kH),   # transposed vs PyTorch
                "w_hh": _uniform(k2, (n_hidden, 4 * n_hidden), kH),
                "b": _uniform(k3, (1, 4 * n_hidden), kH),        # b_ih + b_hh folded
            })
        return key, layers

    key, params["enc_lstm"] = make_lstm_stack(key, n_enc_layers, n_features)
    key, params["dec_lstm"] = make_lstm_stack(key, n_dec_layers, latent_dim)

    kL = 1.0 / jnp.sqrt(n_hidden)
    key, k1, k2, k3, k4, k5, k6 = jax.random.split(key, 7)
    params["w_mu"] = _uniform(k1, (n_hidden, latent_dim), kL)
    params["b_mu"] = _uniform(k2, (1, latent_dim), kL)
    params["w_logvar"] = _uniform(k3, (n_hidden, latent_dim), kL)
    params["b_logvar"] = _uniform(k4, (1, latent_dim), kL)
    params["w_out"] = _uniform(k5, (n_hidden, n_features), kL)
    params["b_out"] = _uniform(k6, (1, n_features), kL)
    return params


def init_hidden(n_layers, batch_size, n_hidden):
    z = jnp.zeros((n_layers, batch_size, n_hidden), jnp.float32)
    return (z, z)


# ----------------------------------------------------------------------------
# Demo
# ----------------------------------------------------------------------------
if __name__ == "__main__":
    # Small shapes consistent with the module's forward contract.
    B = 8                 # batch_size (8 fills the f32 sublane dimension)
    T = 8                 # melody_length (48 in the default module; small here)
    F = 16                # n_features (midi pitch representation)
    H = 32                # n_hidden
    LATENT = 8            # latent_dim
    N_ENC = 2             # n_encoder_layers
    N_DEC = 2             # n_decoder_layers

    root = jax.random.PRNGKey(0)
    k_params, k_x, k_eps = jax.random.split(root, 3)

    params = init_midivae_params(k_params, F, H, N_ENC, N_DEC, LATENT)
    x = jax.random.normal(k_x, (B, T, F), jnp.float32)
    eps = jax.random.normal(k_eps, (B, LATENT), jnp.float32)

    enc_hidden = init_hidden(N_ENC, B, H)
    dec_hidden = init_hidden(N_DEC, B, H)

    fwd = jax.jit(midivae_forward, static_argnames=("melody_length",))
    out, z, mu, logvar = fwd(params, x, enc_hidden, dec_hidden, eps,
                             melody_length=T)
    jax.block_until_ready((out, z, mu, logvar))

    assert out.shape == (B, T, F)
    assert z.shape == (B, LATENT)
    assert mu.shape == (B, LATENT)
    assert logvar.shape == (B, LATENT)
    assert bool(jnp.all((out >= 0.0) & (out <= 1.0)))  # sigmoid range check
    assert bool(jnp.all(jnp.isfinite(out)))

    print("KERNEL_OK")
</pallas_src>

<mosaic_0001>
module attributes {stable_mosaic.version = 11 : i64} {
  func.func @_encoder_kernel(%arg0: memref<64x16xf32, #tpu.memory_space<vmem>>, %arg1: memref<2x8x32xf32, #tpu.memory_space<vmem>>, %arg2: memref<2x8x32xf32, #tpu.memory_space<vmem>>, %arg3: memref<8x8xf32, #tpu.memory_space<vmem>>, %arg4: memref<16x128xf32, #tpu.memory_space<vmem>>, %arg5: memref<32x128xf32, #tpu.memory_space<vmem>>, %arg6: memref<1x128xf32, #tpu.memory_space<vmem>>, %arg7: memref<32x128xf32, #tpu.memory_space<vmem>>, %arg8: memref<32x128xf32, #tpu.memory_space<vmem>>, %arg9: memref<1x128xf32, #tpu.memory_space<vmem>>, %arg10: memref<32x16xf32, #tpu.memory_space<vmem>>, %arg11: memref<1x16xf32, #tpu.memory_space<vmem>>, %arg12: memref<8x8xf32, #tpu.memory_space<vmem>>, %arg13: memref<8x8xf32, #tpu.memory_space<vmem>>, %arg14: memref<8x8xf32, #tpu.memory_space<vmem>>, %arg15: memref<64x32xf32, #tpu.memory_space<vmem>>, %arg16: memref<64x128xf32, #tpu.memory_space<vmem>>) attributes {dimension_semantics = [], scalar_prefetch = 0 : i64, scratch_operands = 2 : i64, tpu.core_type = #tpu.core_type<tc>} {
    %c0 = arith.constant 0 : index
    %c0_0 = arith.constant 0 : index
    %0 = vector.load %arg0[%c0, %c0_0] : memref<64x16xf32, #tpu.memory_space<vmem>>, vector<64x16xf32>
    %c0_1 = arith.constant 0 : index
    %c0_2 = arith.constant 0 : index
    %1 = vector.load %arg4[%c0_1, %c0_2] : memref<16x128xf32, #tpu.memory_space<vmem>>, vector<16x128xf32>
    %cst = arith.constant dense<0.000000e+00> : vector<64x128xf32>
    %2 = tpu.matmul %0, %1, %cst {dimension_numbers = #tpu.dot_dimension_numbers<[1], [0], [0], [1], [0, 0, 1, 1], [], []>} : vector<64x16xf32>, vector<16x128xf32>, vector<64x128xf32> -> vector<64x128xf32>
    %c0_3 = arith.constant 0 : index
    %c0_4 = arith.constant 0 : index
    %3 = vector.load %arg6[%c0_3, %c0_4] : memref<1x128xf32, #tpu.memory_space<vmem>>, vector<1x128xf32>
    %4 = vector.broadcast %3 : vector<1x128xf32> to vector<64x128xf32>
    %5 = arith.addf %2, %4 : vector<64x128xf32>
    %c0_5 = arith.constant 0 : index
    %c0_6 = arith.constant 0 : index
    %6 = vector.load %arg16[%c0_5, %c0_6] : memref<64x128xf32, #tpu.memory_space<vmem>>, vector<64x128xf32>
    tpu.vector_store %arg16[%c0_5, %c0_6], %5 {strides = array<i32>} : memref<64x128xf32, #tpu.memory_space<vmem>>, vector<64x128xf32>,
    %c0_7 = arith.constant 0 : index
    %c0_8 = arith.constant 0 : index
    %7 = vector.load %arg5[%c0_7, %c0_8] : memref<32x128xf32, #tpu.memory_space<vmem>>, vector<32x128xf32>
    %c0_9 = arith.constant 0 : index
    %c0_10 = arith.constant 0 : index
    %c0_11 = arith.constant 0 : index
    %8 = vector.load %arg1[%c0_9, %c0_10, %c0_11] : memref<2x8x32xf32, #tpu.memory_space<vmem>>, vector<1x8x32xf32>
    %9 = vector.shape_cast %8 : vector<1x8x32xf32> to vector<8x32xf32>
    %c0_12 = arith.constant 0 : index
    %c0_13 = arith.constant 0 : index
    %c0_14 = arith.constant 0 : index
    %10 = vector.load %arg2[%c0_12, %c0_13, %c0_14] : memref<2x8x32xf32, #tpu.memory_space<vmem>>, vector<1x8x32xf32>
    %11 = vector.shape_cast %10 : vector<1x8x32xf32> to vector<8x32xf32>
    %c0_15 = arith.constant 0 : index
    %c0_16 = arith.constant 0 : index
    %12 = vector.load %arg16[%c0_15, %c0_16] : memref<64x128xf32, #tpu.memory_space<vmem>>, vector<8x128xf32>
    %cst_17 = arith.constant dense<0.000000e+00> : vector<8x128xf32>
    %13 = tpu.matmul %9, %7, %cst_17 {dimension_numbers = #tpu.dot_dimension_numbers<[1], [0], [0], [1], [0, 0, 1, 1], [], []>} : vector<8x32xf32>, vector<32x128xf32>, vector<8x128xf32> -> vector<8x128xf32>
    %14 = arith.addf %12, %13 : vector<8x128xf32>
    %15 = vector.extract_strided_slice %14 {offsets = [0, 0], sizes = [8, 32], strides = [1, 1]} : vector<8x128xf32> to vector<8x32xf32>
    %16 = arith.negf %15 : vector<8x32xf32>
    %17 = math.exp %16 : vector<8x32xf32>
    %cst_18 = arith.constant 1.000000e+00 : f32
    %18 = vector.broadcast %cst_18 : f32 to vector<8x32xf32>
    %19 = arith.addf %18, %17 : vector<8x32xf32>
    %20 = arith.divf %18, %19 : vector<8x32xf32>
    %21 = vector.extract_strided_slice %14 {offsets = [0, 32], sizes = [8, 32], strides = [1, 1]} : vector<8x128xf32> to vector<8x32xf32>
    %22 = arith.negf %21 : vector<8x32xf32>
    %23 = math.exp %22 : vector<8x32xf32>
    %cst_19 = arith.constant 1.000000e+00 : f32
    %24 = vector.broadcast %cst_19 : f32 to vector<8x32xf32>
    %25 = arith.addf %24, %23 : vector<8x32xf32>
    %26 = arith.divf %24, %25 : vector<8x32xf32>
    %27 = vector.extract_strided_slice %14 {offsets = [0, 64], sizes = [8, 32], strides = [1, 1]} : vector<8x128xf32> to vector<8x32xf32>
    %28 = math.tanh %27 : vector<8x32xf32>
    %29 = vector.extract_strided_slice %14 {offsets = [0, 96], sizes = [8, 32], strides = [1, 1]} : vector<8x128xf32> to vector<8x32xf32>
    %30 = arith.negf %29 : vector<8x32xf32>
    %31 = math.exp %30 : vector<8x32xf32>
    %cst_20 = arith.constant 1.000000e+00 : f32
    %32 = vector.broadcast %cst_20 : f32 to vector<8x32xf32>
    %33 = arith.addf %32, %31 : vector<8x32xf32>
    %34 = arith.divf %32, %33 : vector<8x32xf32>
    %35 = arith.mulf %26, %11 : vector<8x32xf32>
    %36 = arith.mulf %20, %28 : vector<8x32xf32>
    %37 = arith.addf %35, %36 : vector<8x32xf32>
    %38 = math.tanh %37 : vector<8x32xf32>
    %39 = arith.mulf %34, %38 : vector<8x32xf32>
    %c0_21 = arith.constant 0 : index
    %c0_22 = arith.constant 0 : index
    %40 = vector.load %arg15[%c0_21, %c0_22] : memref<64x32xf32, #tpu.memory_space<vmem>>, vector<8x32xf32>
    tpu.vector_store %arg15[%c0_21, %c0_22], %39 {strides = array<i32>} : memref<64x32xf32, #tpu.memory_space<vmem>>, vector<8x32xf32>,
    %c8 = arith.constant 8 : index
    %c0_23 = arith.constant 0 : index
    %41 = vector.load %arg16[%c8, %c0_23] : memref<64x128xf32, #tpu.memory_space<vmem>>, vector<8x128xf32>
    %cst_24 = arith.constant dense<0.000000e+00> : vector<8x128xf32>
    %42 = tpu.matmul %39, %7, %cst_24 {dimension_numbers = #tpu.dot_dimension_numbers<[1], [0], [0], [1], [0, 0, 1, 1], [], []>} : vector<8x32xf32>, vector<32x128xf32>, vector<8x128xf32> -> vector<8x128xf32>
    %43 = arith.addf %41, %42 : vector<8x128xf32>
    %44 = vector.extract_strided_slice %43 {offsets = [0, 0], sizes = [8, 32], strides = [1, 1]} : vector<8x128xf32> to vector<8x32xf32>
    %45 = arith.negf %44 : vector<8x32xf32>
    %46 = math.exp %45 : vector<8x32xf32>
    %cst_25 = arith.constant 1.000000e+00 : f32
    %47 = vector.broadcast %cst_25 : f32 to vector<8x32xf32>
    %48 = arith.addf %47, %46 : vector<8x32xf32>
    %49 = arith.divf %47, %48 : vector<8x32xf32>
    %50 = vector.extract_strided_slice %43 {offsets = [0, 32], sizes = [8, 32], strides = [1, 1]} : vector<8x128xf32> to vector<8x32xf32>
    %51 = arith.negf %50 : vector<8x32xf32>
    %52 = math.exp %51 : vector<8x32xf32>
    %cst_26 = arith.constant 1.000000e+00 : f32
    %53 = vector.broadcast %cst_26 : f32 to vector<8x32xf32>
    %54 = arith.addf %53, %52 : vector<8x32xf32>
    %55 = arith.divf %53, %54 : vector<8x32xf32>
    %56 = vector.extract_strided_slice %43 {offsets = [0, 64], sizes = [8, 32], strides = [1, 1]} : vector<8x128xf32> to vector<8x32xf32>
    %57 = math.tanh %56 : vector<8x32xf32>
    %58 = vector.extract_strided_slice %43 {offsets = [0, 96], sizes = [8, 32], strides = [1, 1]} : vector<8x128xf32> to vector<8x32xf32>
    %59 = arith.negf %58 : vector<8x32xf32>
    %60 = math.exp %59 : vector<8x32xf32>
    %cst_27 = arith.constant 1.000000e+00 : f32
    %61 = vector.broadcast %cst_27 : f32 to vector<8x32xf32>
    %62 = arith.addf %61, %60 : vector<8x32xf32>
    %63 = arith.divf %61, %62 : vector<8x32xf32>
    %64 = arith.mulf %55, %37 : vector<8x32xf32>
    %65 = arith.mulf %49, %57 : vector<8x32xf32>
    %66 = arith.addf %64, %65 : vector<8x32xf32>
    %67 = math.tanh %66 : vector<8x32xf32>
    %68 = arith.mulf %63, %67 : vector<8x32xf32>
    %c8_28 = arith.constant 8 : index
    %c0_29 = arith.constant 0 : index
    %69 = vector.load %arg15[%c8_28, %c0_29] : memref<64x32xf32, #tpu.memory_space<vmem>>, vector<8x32xf32>
    tpu.vector_store %arg15[%c8_28, %c0_29], %68 {strides = array<i32>} : memref<64x32xf32, #tpu.memory_space<vmem>>, vector<8x32xf32>,
    %c16 = arith.constant 16 : index
    %c0_30 = arith.constant 0 : index
    %70 = vector.load %arg16[%c16, %c0_30] : memref<64x128xf32, #tpu.memory_space<vmem>>, vector<8x128xf32>
    %cst_31 = arith.constant dense<0.000000e+00> : vector<8x128xf32>
    %71 = tpu.matmul %68, %7, %cst_31 {dimension_numbers = #tpu.dot_dimension_numbers<[1], [0], [0], [1], [0, 0, 1, 1], [], []>} : vector<8x32xf32>, vector<32x128xf32>, vector<8x128xf32> -> vector<8x128xf32>
    %72 = arith.addf %70, %71 : vector<8x128xf32>
    %73 = vector.extract_strided_slice %72 {offsets = [0, 0], sizes = [8, 32], strides = [1, 1]} : vector<8x128xf32> to vector<8x32xf32>
    %74 = arith.negf %73 : vector<8x32xf32>
    %75 = math.exp %74 : vector<8x32xf32>
    %cst_32 = arith.constant 1.000000e+00 : f32
    %76 = vector.broadcast %cst_32 : f32 to vector<8x32xf32>
    %77 = arith.addf %76, %75 : vector<8x32xf32>
    %78 = arith.divf %76, %77 : vector<8x32xf32>
    %79 = vector.extract_strided_slice %72 {offsets = [0, 32], sizes = [8, 32], strides = [1, 1]} : vector<8x128xf32> to vector<8x32xf32>
    %80 = arith.negf %79 : vector<8x32xf32>
    %81 = math.exp %80 : vector<8x32xf32>
    %cst_33 = arith.constant 1.000000e+00 : f32
    %82 = vector.broadcast %cst_33 : f32 to vector<8x32xf32>
    %83 = arith.addf %82, %81 : vector<8x32xf32>
    %84 = arith.divf %82, %83 : vector<8x32xf32>
    %85 = vector.extract_strided_slice %72 {offsets = [0, 64], sizes = [8, 32], strides = [1, 1]} : vector<8x128xf32> to vector<8x32xf32>
    %86 = math.tanh %85 : vector<8x32xf32>
    %87 = vector.extract_strided_slice %72 {offsets = [0, 96], sizes = [8, 32], strides = [1, 1]} : vector<8x128xf32> to vector<8x32xf32>
    %88 = arith.negf %87 : vector<8x32xf32>
    %89 = math.exp %88 : vector<8x32xf32>
    %cst_34 = arith.constant 1.000000e+00 : f32
    %90 = vector.broadcast %cst_34 : f32 to vector<8x32xf32>
    %91 = arith.addf %90, %89 : vector<8x32xf32>
    %92 = arith.divf %90, %91 : vector<8x32xf32>
    %93 = arith.mulf %84, %66 : vector<8x32xf32>
    %94 = arith.mulf %78, %86 : vector<8x32xf32>
    %95 = arith.addf %93, %94 : vector<8x32xf32>
    %96 = math.tanh %95 : vector<8x32xf32>
    %97 = arith.mulf %92, %96 : vector<8x32xf32>
    %c16_35 = arith.constant 16 : index
    %c0_36 = arith.constant 0 : index
    %98 = vector.load %arg15[%c16_35, %c0_36] : memref<64x32xf32, #tpu.memory_space<vmem>>, vector<8x32xf32>
    tpu.vector_store %arg15[%c16_35, %c0_36], %97 {strides = array<i32>} : memref<64x32xf32, #tpu.memory_space<vmem>>, vector<8x32xf32>,
    %c24 = arith.constant 24 : index
    %c0_37 = arith.constant 0 : index
    %99 = vector.load %arg16[%c24, %c0_37] : memref<64x128xf32, #tpu.memory_space<vmem>>, vector<8x128xf32>
    %cst_38 = arith.constant dense<0.000000e+00> : vector<8x128xf32>
    %100 = tpu.matmul %97, %7, %cst_38 {dimension_numbers = #tpu.dot_dimension_numbers<[1], [0], [0], [1], [0, 0, 1, 1], [], []>} : vector<8x32xf32>, vector<32x128xf32>, vector<8x128xf32> -> vector<8x128xf32>
    %101 = arith.addf %99, %100 : vector<8x128xf32>
    %102 = vector.extract_strided_slice %101 {offsets = [0, 0], sizes = [8, 32], strides = [1, 1]} : vector<8x128xf32> to vector<8x32xf32>
    %103 = arith.negf %102 : vector<8x32xf32>
    %104 = math.exp %103 : vector<8x32xf32>
    %cst_39 = arith.constant 1.000000e+00 : f32
    %105 = vector.broadcast %cst_39 : f32 to vector<8x32xf32>
    %106 = arith.addf %105, %104 : vector<8x32xf32>
    %107 = arith.divf %105, %106 : vector<8x32xf32>
    %108 = vector.extract_strided_slice %101 {offsets = [0, 32], sizes = [8, 32], strides = [1, 1]} : vector<8x128xf32> to vector<8x32xf32>
    %109 = arith.negf %108 : vector<8x32xf32>
    %110 = math.exp %109 : vector<8x32xf32>
    %cst_40 = arith.constant 1.000000e+00 : f32
    %111 = vector.broadcast %cst_40 : f32 to vector<8x32xf32>
    %112 = arith.addf %111, %110 : vector<8x32xf32>
    %113 = arith.divf %111, %112 : vector<8x32xf32>
    %114 = vector.extract_strided_slice %101 {offsets = [0, 64], sizes = [8, 32], strides = [1, 1]} : vector<8x128xf32> to vector<8x32xf32>
    %115 = math.tanh %114 : vector<8x32xf32>
    %116 = vector.extract_strided_slice %101 {offsets = [0, 96], sizes = [8, 32], strides = [1, 1]} : vector<8x128xf32> to vector<8x32xf32>
    %117 = arith.negf %116 : vector<8x32xf32>
    %118 = math.exp %117 : vector<8x32xf32>
    %cst_41 = arith.constant 1.000000e+00 : f32
    %119 = vector.broadcast %cst_41 : f32 to vector<8x32xf32>
    %120 = arith.addf %119, %118 : vector<8x32xf32>
    %121 = arith.divf %119, %120 : vector<8x32xf32>
    %122 = arith.mulf %113, %95 : vector<8x32xf32>
    %123 = arith.mulf %107, %115 : vector<8x32xf32>
    %124 = arith.addf %122, %123 : vector<8x32xf32>
    %125 = math.tanh %124 : vector<8x32xf32>
    %126 = arith.mulf %121, %125 : vector<8x32xf32>
    %c24_42 = arith.constant 24 : index
    %c0_43 = arith.constant 0 : index
    %127 = vector.load %arg15[%c24_42, %c0_43] : memref<64x32xf32, #tpu.memory_space<vmem>>, vector<8x32xf32>
    tpu.vector_store %arg15[%c24_42, %c0_43], %126 {strides = array<i32>} : memref<64x32xf32, #tpu.memory_space<vmem>>, vector<8x32xf32>,
    %c32 = arith.constant 32 : index
    %c0_44 = arith.constant 0 : index
    %128 = vector.load %arg16[%c32, %c0_44] : memref<64x128xf32, #tpu.memory_space<vmem>>, vector<8x128xf32>
    %cst_45 = arith.constant dense<0.000000e+00> : vector<8x128xf32>
    %129 = tpu.matmul %126, %7, %cst_45 {dimension_numbers = #tpu.dot_dimension_numbers<[1], [0], [0], [1], [0, 0, 1, 1], [], []>} : vector<8x32xf32>, vector<32x128xf32>, vector<8x128xf32> -> vector<8x128xf32>
    %130 = arith.addf %128, %129 : vector<8x128xf32>
    %131 = vector.extract_strided_slice %130 {offsets = [0, 0], sizes = [8, 32], strides = [1, 1]} : vector<8x128xf32> to vector<8x32xf32>
    %132 = arith.negf %131 : vector<8x32xf32>
    %133 = math.exp %132 : vector<8x32xf32>
    %cst_46 = arith.constant 1.000000e+00 : f32
    %134 = vector.broadcast %cst_46 : f32 to vector<8x32xf32>
    %135 = arith.addf %134, %133 : vector<8x32xf32>
    %136 = arith.divf %134, %135 : vector<8x32xf32>
    %137 = vector.extract_strided_slice %130 {offsets = [0, 32], sizes = [8, 32], strides = [1, 1]} : vector<8x128xf32> to vector<8x32xf32>
    %138 = arith.negf %137 : vector<8x32xf32>
    %139 = math.exp %138 : vector<8x32xf32>
    %cst_47 = arith.constant 1.000000e+00 : f32
    %140 = vector.broadcast %cst_47 : f32 to vector<8x32xf32>
    %141 = arith.addf %140, %139 : vector<8x32xf32>
    %142 = arith.divf %140, %141 : vector<8x32xf32>
    %143 = vector.extract_strided_slice %130 {offsets = [0, 64], sizes = [8, 32], strides = [1, 1]} : vector<8x128xf32> to vector<8x32xf32>
    %144 = math.tanh %143 : vector<8x32xf32>
    %145 = vector.extract_strided_slice %130 {offsets = [0, 96], sizes = [8, 32], strides = [1, 1]} : vector<8x128xf32> to vector<8x32xf32>
    %146 = arith.negf %145 : vector<8x32xf32>
    %147 = math.exp %146 : vector<8x32xf32>
    %cst_48 = arith.constant 1.000000e+00 : f32
    %148 = vector.broadcast %cst_48 : f32 to vector<8x32xf32>
    %149 = arith.addf %148, %147 : vector<8x32xf32>
    %150 = arith.divf %148, %149 : vector<8x32xf32>
    %151 = arith.mulf %142, %124 : vector<8x32xf32>
    %152 = arith.mulf %136, %144 : vector<8x32xf32>
    %153 = arith.addf %151, %152 : vector<8x32xf32>
    %154 = math.tanh %153 : vector<8x32xf32>
    %155 = arith.mulf %150, %154 : vector<8x32xf32>
    %c32_49 = arith.constant 32 : index
    %c0_50 = arith.constant 0 : index
    %156 = vector.load %arg15[%c32_49, %c0_50] : memref<64x32xf32, #tpu.memory_space<vmem>>, vector<8x32xf32>
    tpu.vector_store %arg15[%c32_49, %c0_50], %155 {strides = array<i32>} : memref<64x32xf32, #tpu.memory_space<vmem>>, vector<8x32xf32>,
    %c40 = arith.constant 40 : index
    %c0_51 = arith.constant 0 : index
    %157 = vector.load %arg16[%c40, %c0_51] : memref<64x128xf32, #tpu.memory_space<vmem>>, vector<8x128xf32>
    %cst_52 = arith.constant dense<0.000000e+00> : vector<8x128xf32>
    %158 = tpu.matmul %155, %7, %cst_52 {dimension_numbers = #tpu.dot_dimension_numbers<[1], [0], [0], [1], [0, 0, 1, 1], [], []>} : vector<8x32xf32>, vector<32x128xf32>, vector<8x128xf32> -> vector<8x128xf32>
    %159 = arith.addf %157, %158 : vector<8x128xf32>
    %160 = vector.extract_strided_slice %159 {offsets = [0, 0], sizes = [8, 32], strides = [1, 1]} : vector<8x128xf32> to vector<8x32xf32>
    %161 = arith.negf %160 : vector<8x32xf32>
    %162 = math.exp %161 : vector<8x32xf32>
    %cst_53 = arith.constant 1.000000e+00 : f32
    %163 = vector.broadcast %cst_53 : f32 to vector<8x32xf32>
    %164 = arith.addf %163, %162 : vector<8x32xf32>
    %165 = arith.divf %163, %164 : vector<8x32xf32>
    %166 = vector.extract_strided_slice %159 {offsets = [0, 32], sizes = [8, 32], strides = [1, 1]} : vector<8x128xf32> to vector<8x32xf32>
    %167 = arith.negf %166 : vector<8x32xf32>
    %168 = math.exp %167 : vector<8x32xf32>
    %cst_54 = arith.constant 1.000000e+00 : f32
    %169 = vector.broadcast %cst_54 : f32 to vector<8x32xf32>
    %170 = arith.addf %169, %168 : vector<8x32xf32>
    %171 = arith.divf %169, %170 : vector<8x32xf32>
    %172 = vector.extract_strided_slice %159 {offsets = [0, 64], sizes = [8, 32], strides = [1, 1]} : vector<8x128xf32> to vector<8x32xf32>
    %173 = math.tanh %172 : vector<8x32xf32>
    %174 = vector.extract_strided_slice %159 {offsets = [0, 96], sizes = [8, 32], strides = [1, 1]} : vector<8x128xf32> to vector<8x32xf32>
    %175 = arith.negf %174 : vector<8x32xf32>
    %176 = math.exp %175 : vector<8x32xf32>
    %cst_55 = arith.constant 1.000000e+00 : f32
    %177 = vector.broadcast %cst_55 : f32 to vector<8x32xf32>
    %178 = arith.addf %177, %176 : vector<8x32xf32>
    %179 = arith.divf %177, %178 : vector<8x32xf32>
    %180 = arith.mulf %171, %153 : vector<8x32xf32>
    %181 = arith.mulf %165, %173 : vector<8x32xf32>
    %182 = arith.addf %180, %181 : vector<8x32xf32>
    %183 = math.tanh %182 : vector<8x32xf32>
    %184 = arith.mulf %179, %183 : vector<8x32xf32>
    %c40_56 = arith.constant 40 : index
    %c0_57 = arith.constant 0 : index
    %185 = vector.load %arg15[%c40_56, %c0_57] : memref<64x32xf32, #tpu.memory_space<vmem>>, vector<8x32xf32>
    tpu.vector_store %arg15[%c40_56, %c0_57], %184 {strides = array<i32>} : memref<64x32xf32, #tpu.memory_space<vmem>>, vector<8x32xf32>,
    %c48 = arith.constant 48 : index
    %c0_58 = arith.constant 0 : index
    %186 = vector.load %arg16[%c48, %c0_58] : memref<64x128xf32, #tpu.memory_space<vmem>>, vector<8x128xf32>
    %cst_59 = arith.constant dense<0.000000e+00> : vector<8x128xf32>
    %187 = tpu.matmul %184, %7, %cst_59 {dimension_numbers = #tpu.dot_dimension_numbers<[1], [0], [0], [1], [0, 0, 1, 1], [], []>} : vector<8x32xf32>, vector<32x128xf32>, vector<8x128xf32> -> vector<8x128xf32>
    %188 = arith.addf %186, %187 : vector<8x128xf32>
    %189 = vector.extract_strided_slice %188 {offsets = [0, 0], sizes = [8, 32], strides = [1, 1]} : vector<8x128xf32> to vector<8x32xf32>
    %190 = arith.negf %189 : vector<8x32xf32>
    %191 = math.exp %190 : vector<8x32xf32>
    %cst_60 = arith.constant 1.000000e+00 : f32
    %192 = vector.broadcast %cst_60 : f32 to vector<8x32xf32>
    %193 = arith.addf %192, %191 : vector<8x32xf32>
    %194 = arith.divf %192, %193 : vector<8x32xf32>
    %195 = vector.extract_strided_slice %188 {offsets = [0, 32], sizes = [8, 32], strides = [1, 1]} : vector<8x128xf32> to vector<8x32xf32>
    %196 = arith.negf %195 : vector<8x32xf32>
    %197 = math.exp %196 : vector<8x32xf32>
    %cst_61 = arith.constant 1.000000e+00 : f32
    %198 = vector.broadcast %cst_61 : f32 to vector<8x32xf32>
    %199 = arith.addf %198, %197 : vector<8x32xf32>
    %200 = arith.divf %198, %199 : vector<8x32xf32>
    %201 = vector.extract_strided_slice %188 {offsets = [0, 64], sizes = [8, 32], strides = [1, 1]} : vector<8x128xf32> to vector<8x32xf32>
    %202 = math.tanh %201 : vector<8x32xf32>
    %203 = vector.extract_strided_slice %188 {offsets = [0, 96], sizes = [8, 32], strides = [1, 1]} : vector<8x128xf32> to vector<8x32xf32>
    %204 = arith.negf %203 : vector<8x32xf32>
    %205 = math.exp %204 : vector<8x32xf32>
    %cst_62 = arith.constant 1.000000e+00 : f32
    %206 = vector.broadcast %cst_62 : f32 to vector<8x32xf32>
    %207 = arith.addf %206, %205 : vector<8x32xf32>
    %208 = arith.divf %206, %207 : vector<8x32xf32>
    %209 = arith.mulf %200, %182 : vector<8x32xf32>
    %210 = arith.mulf %194, %202 : vector<8x32xf32>
    %211 = arith.addf %209, %210 : vector<8x32xf32>
    %212 = math.tanh %211 : vector<8x32xf32>
    %213 = arith.mulf %208, %212 : vector<8x32xf32>
    %c48_63 = arith.constant 48 : index
    %c0_64 = arith.constant 0 : index
    %214 = vector.load %arg15[%c48_63, %c0_64] : memref<64x32xf32, #tpu.memory_space<vmem>>, vector<8x32xf32>
    tpu.vector_store %arg15[%c48_63, %c0_64], %213 {strides = array<i32>} : memref<64x32xf32, #tpu.memory_space<vmem>>, vector<8x32xf32>,
    %c56 = arith.constant 56 : index
    %c0_65 = arith.constant 0 : index
    %215 = vector.load %arg16[%c56, %c0_65] : memref<64x128xf32, #tpu.memory_space<vmem>>, vector<8x128xf32>
    %cst_66 = arith.constant dense<0.000000e+00> : vector<8x128xf32>
    %216 = tpu.matmul %213, %7, %cst_66 {dimension_numbers = #tpu.dot_dimension_numbers<[1], [0], [0], [1], [0, 0, 1, 1], [], []>} : vector<8x32xf32>, vector<32x128xf32>, vector<8x128xf32> -> vector<8x128xf32>
    %217 = arith.addf %215, %216 : vector<8x128xf32>
    %218 = vector.extract_strided_slice %217 {offsets = [0, 0], sizes = [8, 32], strides = [1, 1]} : vector<8x128xf32> to vector<8x32xf32>
    %219 = arith.negf %218 : vector<8x32xf32>
    %220 = math.exp %219 : vector<8x32xf32>
    %cst_67 = arith.constant 1.000000e+00 : f32
    %221 = vector.broadcast %cst_67 : f32 to vector<8x32xf32>
    %222 = arith.addf %221, %220 : vector<8x32xf32>
    %223 = arith.divf %221, %222 : vector<8x32xf32>
    %224 = vector.extract_strided_slice %217 {offsets = [0, 32], sizes = [8, 32], strides = [1, 1]} : vector<8x128xf32> to vector<8x32xf32>
    %225 = arith.negf %224 : vector<8x32xf32>
    %226 = math.exp %225 : vector<8x32xf32>
    %cst_68 = arith.constant 1.000000e+00 : f32
    %227 = vector.broadcast %cst_68 : f32 to vector<8x32xf32>
    %228 = arith.addf %227, %226 : vector<8x32xf32>
    %229 = arith.divf %227, %228 : vector<8x32xf32>
    %230 = vector.extract_strided_slice %217 {offsets = [0, 64], sizes = [8, 32], strides = [1, 1]} : vector<8x128xf32> to vector<8x32xf32>
    %231 = math.tanh %230 : vector<8x32xf32>
    %232 = vector.extract_strided_slice %217 {offsets = [0, 96], sizes = [8, 32], strides = [1, 1]} : vector<8x128xf32> to vector<8x32xf32>
    %233 = arith.negf %232 : vector<8x32xf32>
    %234 = math.exp %233 : vector<8x32xf32>
    %cst_69 = arith.constant 1.000000e+00 : f32
    %235 = vector.broadcast %cst_69 : f32 to vector<8x32xf32>
    %236 = arith.addf %235, %234 : vector<8x32xf32>
    %237 = arith.divf %235, %236 : vector<8x32xf32>
    %238 = arith.mulf %229, %211 : vector<8x32xf32>
    %239 = arith.mulf %223, %231 : vector<8x32xf32>
    %240 = arith.addf %238, %239 : vector<8x32xf32>
    %241 = math.tanh %240 : vector<8x32xf32>
    %242 = arith.mulf %237, %241 : vector<8x32xf32>
    %c56_70 = arith.constant 56 : index
    %c0_71 = arith.constant 0 : index
    %243 = vector.load %arg15[%c56_70, %c0_71] : memref<64x32xf32, #tpu.memory_space<vmem>>, vector<8x32xf32>
    tpu.vector_store %arg15[%c56_70, %c0_71], %242 {strides = array<i32>} : memref<64x32xf32, #tpu.memory_space<vmem>>, vector<8x32xf32>,
    %c0_72 = arith.constant 0 : index
    %c0_73 = arith.constant 0 : index
    %244 = vector.load %arg15[%c0_72, %c0_73] : memref<64x32xf32, #tpu.memory_space<vmem>>, vector<64x32xf32>
    %c0_74 = arith.constant 0 : index
    %c0_75 = arith.constant 0 : index
    %245 = vector.load %arg7[%c0_74, %c0_75] : memref<32x128xf32, #tpu.memory_space<vmem>>, vector<32x128xf32>
    %cst_76 = arith.constant dense<0.000000e+00> : vector<64x128xf32>
    %246 = tpu.matmul %244, %245, %cst_76 {dimension_numbers = #tpu.dot_dimension_numbers<[1], [0], [0], [1], [0, 0, 1, 1], [], []>} : vector<64x32xf32>, vector<32x128xf32>, vector<64x128xf32> -> vector<64x128xf32>
    %c0_77 = arith.constant 0 : index
    %c0_78 = arith.constant 0 : index
    %247 = vector.load %arg9[%c0_77, %c0_78] : memref<1x128xf32, #tpu.memory_space<vmem>>, vector<1x128xf32>
    %248 = vector.broadcast %247 : vector<1x128xf32> to vector<64x128xf32>
    %249 = arith.addf %246, %248 : vector<64x128xf32>
    %c0_79 = arith.constant 0 : index
    %c0_80 = arith.constant 0 : index
    %250 = vector.load %arg16[%c0_79, %c0_80] : memref<64x128xf32, #tpu.memory_space<vmem>>, vector<64x128xf32>
    tpu.vector_store %arg16[%c0_79, %c0_80], %249 {strides = array<i32>} : memref<64x128xf32, #tpu.memory_space<vmem>>, vector<64x128xf32>,
    %c0_81 = arith.constant 0 : index
    %c0_82 = arith.constant 0 : index
    %251 = vector.load %arg8[%c0_81, %c0_82] : memref<32x128xf32, #tpu.memory_space<vmem>>, vector<32x128xf32>
    %c1 = arith.constant 1 : index
    %c0_83 = arith.constant 0 : index
    %c0_84 = arith.constant 0 : index
    %252 = vector.load %arg1[%c1, %c0_83, %c0_84] : memref<2x8x32xf32, #tpu.memory_space<vmem>>, vector<1x8x32xf32>
    %253 = vector.shape_cast %252 : vector<1x8x32xf32> to vector<8x32xf32>
    %c1_85 = arith.constant 1 : index
    %c0_86 = arith.constant 0 : index
    %c0_87 = arith.constant 0 : index
    %254 = vector.load %arg2[%c1_85, %c0_86, %c0_87] : memref<2x8x32xf32, #tpu.memory_space<vmem>>, vector<1x8x32xf32>
    %255 = vector.shape_cast %254 : vector<1x8x32xf32> to vector<8x32xf32>
    %c0_88 = arith.constant 0 : index
    %c0_89 = arith.constant 0 : index
    %256 = vector.load %arg16[%c0_88, %c0_89] : memref<64x128xf32, #tpu.memory_space<vmem>>, vector<8x128xf32>
    %cst_90 = arith.constant dense<0.000000e+00> : vector<8x128xf32>
    %257 = tpu.matmul %253, %251, %cst_90 {dimension_numbers = #tpu.dot_dimension_numbers<[1], [0], [0], [1], [0, 0, 1, 1], [], []>} : vector<8x32xf32>, vector<32x128xf32>, vector<8x128xf32> -> vector<8x128xf32>
    %258 = arith.addf %256, %257 : vector<8x128xf32>
    %259 = vector.extract_strided_slice %258 {offsets = [0, 0], sizes = [8, 32], strides = [1, 1]} : vector<8x128xf32> to vector<8x32xf32>
    %260 = arith.negf %259 : vector<8x32xf32>
    %261 = math.exp %260 : vector<8x32xf32>
    %cst_91 = arith.constant 1.000000e+00 : f32
    %262 = vector.broadcast %cst_91 : f32 to vector<8x32xf32>
    %263 = arith.addf %262, %261 : vector<8x32xf32>
    %264 = arith.divf %262, %263 : vector<8x32xf32>
    %265 = vector.extract_strided_slice %258 {offsets = [0, 32], sizes = [8, 32], strides = [1, 1]} : vector<8x128xf32> to vector<8x32xf32>
    %266 = arith.negf %265 : vector<8x32xf32>
    %267 = math.exp %266 : vector<8x32xf32>
    %cst_92 = arith.constant 1.000000e+00 : f32
    %268 = vector.broadcast %cst_92 : f32 to vector<8x32xf32>
    %269 = arith.addf %268, %267 : vector<8x32xf32>
    %270 = arith.divf %268, %269 : vector<8x32xf32>
    %271 = vector.extract_strided_slice %258 {offsets = [0, 64], sizes = [8, 32], strides = [1, 1]} : vector<8x128xf32> to vector<8x32xf32>
    %272 = math.tanh %271 : vector<8x32xf32>
    %273 = vector.extract_strided_slice %258 {offsets = [0, 96], sizes = [8, 32], strides = [1, 1]} : vector<8x128xf32> to vector<8x32xf32>
    %274 = arith.negf %273 : vector<8x32xf32>
    %275 = math.exp %274 : vector<8x32xf32>
    %cst_93 = arith.constant 1.000000e+00 : f32
    %276 = vector.broadcast %cst_93 : f32 to vector<8x32xf32>
    %277 = arith.addf %276, %275 : vector<8x32xf32>
    %278 = arith.divf %276, %277 : vector<8x32xf32>
    %279 = arith.mulf %270, %255 : vector<8x32xf32>
    %280 = arith.mulf %264, %272 : vector<8x32xf32>
    %281 = arith.addf %279, %280 : vector<8x32xf32>
    %282 = math.tanh %281 : vector<8x32xf32>
    %283 = arith.mulf %278, %282 : vector<8x32xf32>
    %c8_94 = arith.constant 8 : index
    %c0_95 = arith.constant 0 : index
    %284 = vector.load %arg16[%c8_94, %c0_95] : memref<64x128xf32, #tpu.memory_space<vmem>>, vector<8x128xf32>
    %cst_96 = arith.constant dense<0.000000e+00> : vector<8x128xf32>
    %285 = tpu.matmul %283, %251, %cst_96 {dimension_numbers = #tpu.dot_dimension_numbers<[1], [0], [0], [1], [0, 0, 1, 1], [], []>} : vector<8x32xf32>, vector<32x128xf32>, vector<8x128xf32> -> vector<8x128xf32>
    %286 = arith.addf %284, %285 : vector<8x128xf32>
    %287 = vector.extract_strided_slice %286 {offsets = [0, 0], sizes = [8, 32], strides = [1, 1]} : vector<8x128xf32> to vector<8x32xf32>
    %288 = arith.negf %287 : vector<8x32xf32>
    %289 = math.exp %288 : vector<8x32xf32>
    %cst_97 = arith.constant 1.000000e+00 : f32
    %290 = vector.broadcast %cst_97 : f32 to vector<8x32xf32>
    %291 = arith.addf %290, %289 : vector<8x32xf32>
    %292 = arith.divf %290, %291 : vector<8x32xf32>
    %293 = vector.extract_strided_slice %286 {offsets = [0, 32], sizes = [8, 32], strides = [1, 1]} : vector<8x128xf32> to vector<8x32xf32>
    %294 = arith.negf %293 : vector<8x32xf32>
    %295 = math.exp %294 : vector<8x32xf32>
    %cst_98 = arith.constant 1.000000e+00 : f32
    %296 = vector.broadcast %cst_98 : f32 to vector<8x32xf32>
    %297 = arith.addf %296, %295 : vector<8x32xf32>
    %298 = arith.divf %296, %297 : vector<8x32xf32>
    %299 = vector.extract_strided_slice %286 {offsets = [0, 64], sizes = [8, 32], strides = [1, 1]} : vector<8x128xf32> to vector<8x32xf32>
    %300 = math.tanh %299 : vector<8x32xf32>
    %301 = vector.extract_strided_slice %286 {offsets = [0, 96], sizes = [8, 32], strides = [1, 1]} : vector<8x128xf32> to vector<8x32xf32>
    %302 = arith.negf %301 : vector<8x32xf32>
    %303 = math.exp %302 : vector<8x32xf32>
    %cst_99 = arith.constant 1.000000e+00 : f32
    %304 = vector.broadcast %cst_99 : f32 to vector<8x32xf32>
    %305 = arith.addf %304, %303 : vector<8x32xf32>
    %306 = arith.divf %304, %305 : vector<8x32xf32>
    %307 = arith.mulf %298, %281 : vector<8x32xf32>
    %308 = arith.mulf %292, %300 : vector<8x32xf32>
    %309 = arith.addf %307, %308 : vector<8x32xf32>
    %310 = math.tanh %309 : vector<8x32xf32>
    %311 = arith.mulf %306, %310 : vector<8x32xf32>
    %c16_100 = arith.constant 16 : index
    %c0_101 = arith.constant 0 : index
    %312 = vector.load %arg16[%c16_100, %c0_101] : memref<64x128xf32, #tpu.memory_space<vmem>>, vector<8x128xf32>
    %cst_102 = arith.constant dense<0.000000e+00> : vector<8x128xf32>
    %313 = tpu.matmul %311, %251, %cst_102 {dimension_numbers = #tpu.dot_dimension_numbers<[1], [0], [0], [1], [0, 0, 1, 1], [], []>} : vector<8x32xf32>, vector<32x128xf32>, vector<8x128xf32> -> vector<8x128xf32>
    %314 = arith.addf %312, %313 : vector<8x128xf32>
    %315 = vector.extract_strided_slice %314 {offsets = [0, 0], sizes = [8, 32], strides = [1, 1]} : vector<8x128xf32> to vector<8x32xf32>
    %316 = arith.negf %315 : vector<8x32xf32>
    %317 = math.exp %316 : vector<8x32xf32>
    %cst_103 = arith.constant 1.000000e+00 : f32
    %318 = vector.broadcast %cst_103 : f32 to vector<8x32xf32>
    %319 = arith.addf %318, %317 : vector<8x32xf32>
    %320 = arith.divf %318, %319 : vector<8x32xf32>
    %321 = vector.extract_strided_slice %314 {offsets = [0, 32], sizes = [8, 32], strides = [1, 1]} : vector<8x128xf32> to vector<8x32xf32>
    %322 = arith.negf %321 : vector<8x32xf32>
    %323 = math.exp %322 : vector<8x32xf32>
    %cst_104 = arith.constant 1.000000e+00 : f32
    %324 = vector.broadcast %cst_104 : f32 to vector<8x32xf32>
    %325 = arith.addf %324, %323 : vector<8x32xf32>
    %326 = arith.divf %324, %325 : vector<8x32xf32>
    %327 = vector.extract_strided_slice %314 {offsets = [0, 64], sizes = [8, 32], strides = [1, 1]} : vector<8x128xf32> to vector<8x32xf32>
    %328 = math.tanh %327 : vector<8x32xf32>
    %329 = vector.extract_strided_slice %314 {offsets = [0, 96], sizes = [8, 32], strides = [1, 1]} : vector<8x128xf32> to vector<8x32xf32>
    %330 = arith.negf %329 : vector<8x32xf32>
    %331 = math.exp %330 : vector<8x32xf32>
    %cst_105 = arith.constant 1.000000e+00 : f32
    %332 = vector.broadcast %cst_105 : f32 to vector<8x32xf32>
    %333 = arith.addf %332, %331 : vector<8x32xf32>
    %334 = arith.divf %332, %333 : vector<8x32xf32>
    %335 = arith.mulf %326, %309 : vector<8x32xf32>
    %336 = arith.mulf %320, %328 : vector<8x32xf32>
    %337 = arith.addf %335, %336 : vector<8x32xf32>
    %338 = math.tanh %337 : vector<8x32xf32>
    %339 = arith.mulf %334, %338 : vector<8x32xf32>
    %c24_106 = arith.constant 24 : index
    %c0_107 = arith.constant 0 : index
    %340 = vector.load %arg16[%c24_106, %c0_107] : memref<64x128xf32, #tpu.memory_space<vmem>>, vector<8x128xf32>
    %cst_108 = arith.constant dense<0.000000e+00> : vector<8x128xf32>
    %341 = tpu.matmul %339, %251, %cst_108 {dimension_numbers = #tpu.dot_dimension_numbers<[1], [0], [0], [1], [0, 0, 1, 1], [], []>} : vector<8x32xf32>, vector<32x128xf32>, vector<8x128xf32> -> vector<8x128xf32>
    %342 = arith.addf %340, %341 : vector<8x128xf32>
    %343 = vector.extract_strided_slice %342 {offsets = [0, 0], sizes = [8, 32], strides = [1, 1]} : vector<8x128xf32> to vector<8x32xf32>
    %344 = arith.negf %343 : vector<8x32xf32>
    %345 = math.exp %344 : vector<8x32xf32>
    %cst_109 = arith.constant 1.000000e+00 : f32
    %346 = vector.broadcast %cst_109 : f32 to vector<8x32xf32>
    %347 = arith.addf %346, %345 : vector<8x32xf32>
    %348 = arith.divf %346, %347 : vector<8x32xf32>
    %349 = vector.extract_strided_slice %342 {offsets = [0, 32], sizes = [8, 32], strides = [1, 1]} : vector<8x128xf32> to vector<8x32xf32>
    %350 = arith.negf %349 : vector<8x32xf32>
    %351 = math.exp %350 : vector<8x32xf32>
    %cst_110 = arith.constant 1.000000e+00 : f32
    %352 = vector.broadcast %cst_110 : f32 to vector<8x32xf32>
    %353 = arith.addf %352, %351 : vector<8x32xf32>
    %354 = arith.divf %352, %353 : vector<8x32xf32>
    %355 = vector.extract_strided_slice %342 {offsets = [0, 64], sizes = [8, 32], strides = [1, 1]} : vector<8x128xf32> to vector<8x32xf32>
    %356 = math.tanh %355 : vector<8x32xf32>
    %357 = vector.extract_strided_slice %342 {offsets = [0, 96], sizes = [8, 32], strides = [1, 1]} : vector<8x128xf32> to vector<8x32xf32>
    %358 = arith.negf %357 : vector<8x32xf32>
    %359 = math.exp %358 : vector<8x32xf32>
    %cst_111 = arith.constant 1.000000e+00 : f32
    %360 = vector.broadcast %cst_111 : f32 to vector<8x32xf32>
    %361 = arith.addf %360, %359 : vector<8x32xf32>
    %362 = arith.divf %360, %361 : vector<8x32xf32>
    %363 = arith.mulf %354, %337 : vector<8x32xf32>
    %364 = arith.mulf %348, %356 : vector<8x32xf32>
    %365 = arith.addf %363, %364 : vector<8x32xf32>
    %366 = math.tanh %365 : vector<8x32xf32>
    %367 = arith.mulf %362, %366 : vector<8x32xf32>
    %c32_112 = arith.constant 32 : index
    %c0_113 = arith.constant 0 : index
    %368 = vector.load %arg16[%c32_112, %c0_113] : memref<64x128xf32, #tpu.memory_space<vmem>>, vector<8x128xf32>
    %cst_114 = arith.constant dense<0.000000e+00> : vector<8x128xf32>
    %369 = tpu.matmul %367, %251, %cst_114 {dimension_numbers = #tpu.dot_dimension_numbers<[1], [0], [0], [1], [0, 0, 1, 1], [], []>} : vector<8x32xf32>, vector<32x128xf32>, vector<8x128xf32> -> vector<8x128xf32>
    %370 = arith.addf %368, %369 : vector<8x128xf32>
    %371 = vector.extract_strided_slice %370 {offsets = [0, 0], sizes = [8, 32], strides = [1, 1]} : vector<8x128xf32> to vector<8x32xf32>
    %372 = arith.negf %371 : vector<8x32xf32>
    %373 = math.exp %372 : vector<8x32xf32>
    %cst_115 = arith.constant 1.000000e+00 : f32
    %374 = vector.broadcast %cst_115 : f32 to vector<8x32xf32>
    %375 = arith.addf %374, %373 : vector<8x32xf32>
    %376 = arith.divf %374, %375 : vector<8x32xf32>
    %377 = vector.extract_strided_slice %370 {offsets = [0, 32], sizes = [8, 32], strides = [1, 1]} : vector<8x128xf32> to vector<8x32xf32>
    %378 = arith.negf %377 : vector<8x32xf32>
    %379 = math.exp %378 : vector<8x32xf32>
    %cst_116 = arith.constant 1.000000e+00 : f32
    %380 = vector.broadcast %cst_116 : f32 to vector<8x32xf32>
    %381 = arith.addf %380, %379 : vector<8x32xf32>
    %382 = arith.divf %380, %381 : vector<8x32xf32>
    %383 = vector.extract_strided_slice %370 {offsets = [0, 64], sizes = [8, 32], strides = [1, 1]} : vector<8x128xf32> to vector<8x32xf32>
    %384 = math.tanh %383 : vector<8x32xf32>
    %385 = vector.extract_strided_slice %370 {offsets = [0, 96], sizes = [8, 32], strides = [1, 1]} : vector<8x128xf32> to vector<8x32xf32>
    %386 = arith.negf %385 : vector<8x32xf32>
    %387 = math.exp %386 : vector<8x32xf32>
    %cst_117 = arith.constant 1.000000e+00 : f32
    %388 = vector.broadcast %cst_117 : f32 to vector<8x32xf32>
    %389 = arith.addf %388, %387 : vector<8x32xf32>
    %390 = arith.divf %388, %389 : vector<8x32xf32>
    %391 = arith.mulf %382, %365 : vector<8x32xf32>
    %392 = arith.mulf %376, %384 : vector<8x32xf32>
    %393 = arith.addf %391, %392 : vector<8x32xf32>
    %394 = math.tanh %393 : vector<8x32xf32>
    %395 = arith.mulf %390, %394 : vector<8x32xf32>
    %c40_118 = arith.constant 40 : index
    %c0_119 = arith.constant 0 : index
    %396 = vector.load %arg16[%c40_118, %c0_119] : memref<64x128xf32, #tpu.memory_space<vmem>>, vector<8x128xf32>
    %cst_120 = arith.constant dense<0.000000e+00> : vector<8x128xf32>
    %397 = tpu.matmul %395, %251, %cst_120 {dimension_numbers = #tpu.dot_dimension_numbers<[1], [0], [0], [1], [0, 0, 1, 1], [], []>} : vector<8x32xf32>, vector<32x128xf32>, vector<8x128xf32> -> vector<8x128xf32>
    %398 = arith.addf %396, %397 : vector<8x128xf32>
    %399 = vector.extract_strided_slice %398 {offsets = [0, 0], sizes = [8, 32], strides = [1, 1]} : vector<8x128xf32> to vector<8x32xf32>
    %400 = arith.negf %399 : vector<8x32xf32>
    %401 = math.exp %400 : vector<8x32xf32>
    %cst_121 = arith.constant 1.000000e+00 : f32
    %402 = vector.broadcast %cst_121 : f32 to vector<8x32xf32>
    %403 = arith.addf %402, %401 : vector<8x32xf32>
    %404 = arith.divf %402, %403 : vector<8x32xf32>
    %405 = vector.extract_strided_slice %398 {offsets = [0, 32], sizes = [8, 32], strides = [1, 1]} : vector<8x128xf32> to vector<8x32xf32>
    %406 = arith.negf %405 : vector<8x32xf32>
    %407 = math.exp %406 : vector<8x32xf32>
    %cst_122 = arith.constant 1.000000e+00 : f32
    %408 = vector.broadcast %cst_122 : f32 to vector<8x32xf32>
    %409 = arith.addf %408, %407 : vector<8x32xf32>
    %410 = arith.divf %408, %409 : vector<8x32xf32>
    %411 = vector.extract_strided_slice %398 {offsets = [0, 64], sizes = [8, 32], strides = [1, 1]} : vector<8x128xf32> to vector<8x32xf32>
    %412 = math.tanh %411 : vector<8x32xf32>
    %413 = vector.extract_strided_slice %398 {offsets = [0, 96], sizes = [8, 32], strides = [1, 1]} : vector<8x128xf32> to vector<8x32xf32>
    %414 = arith.negf %413 : vector<8x32xf32>
    %415 = math.exp %414 : vector<8x32xf32>
    %cst_123 = arith.constant 1.000000e+00 : f32
    %416 = vector.broadcast %cst_123 : f32 to vector<8x32xf32>
    %417 = arith.addf %416, %415 : vector<8x32xf32>
    %418 = arith.divf %416, %417 : vector<8x32xf32>
    %419 = arith.mulf %410, %393 : vector<8x32xf32>
    %420 = arith.mulf %404, %412 : vector<8x32xf32>
    %421 = arith.addf %419, %420 : vector<8x32xf32>
    %422 = math.tanh %421 : vector<8x32xf32>
    %423 = arith.mulf %418, %422 : vector<8x32xf32>
    %c48_124 = arith.constant 48 : index
    %c0_125 = arith.constant 0 : index
    %424 = vector.load %arg16[%c48_124, %c0_125] : memref<64x128xf32, #tpu.memory_space<vmem>>, vector<8x128xf32>
    %cst_126 = arith.constant dense<0.000000e+00> : vector<8x128xf32>
    %425 = tpu.matmul %423, %251, %cst_126 {dimension_numbers = #tpu.dot_dimension_numbers<[1], [0], [0], [1], [0, 0, 1, 1], [], []>} : vector<8x32xf32>, vector<32x128xf32>, vector<8x128xf32> -> vector<8x128xf32>
    %426 = arith.addf %424, %425 : vector<8x128xf32>
    %427 = vector.extract_strided_slice %426 {offsets = [0, 0], sizes = [8, 32], strides = [1, 1]} : vector<8x128xf32> to vector<8x32xf32>
    %428 = arith.negf %427 : vector<8x32xf32>
    %429 = math.exp %428 : vector<8x32xf32>
    %cst_127 = arith.constant 1.000000e+00 : f32
    %430 = vector.broadcast %cst_127 : f32 to vector<8x32xf32>
    %431 = arith.addf %430, %429 : vector<8x32xf32>
    %432 = arith.divf %430, %431 : vector<8x32xf32>
    %433 = vector.extract_strided_slice %426 {offsets = [0, 32], sizes = [8, 32], strides = [1, 1]} : vector<8x128xf32> to vector<8x32xf32>
    %434 = arith.negf %433 : vector<8x32xf32>
    %435 = math.exp %434 : vector<8x32xf32>
    %cst_128 = arith.constant 1.000000e+00 : f32
    %436 = vector.broadcast %cst_128 : f32 to vector<8x32xf32>
    %437 = arith.addf %436, %435 : vector<8x32xf32>
    %438 = arith.divf %436, %437 : vector<8x32xf32>
    %439 = vector.extract_strided_slice %426 {offsets = [0, 64], sizes = [8, 32], strides = [1, 1]} : vector<8x128xf32> to vector<8x32xf32>
    %440 = math.tanh %439 : vector<8x32xf32>
    %441 = vector.extract_strided_slice %426 {offsets = [0, 96], sizes = [8, 32], strides = [1, 1]} : vector<8x128xf32> to vector<8x32xf32>
    %442 = arith.negf %441 : vector<8x32xf32>
    %443 = math.exp %442 : vector<8x32xf32>
    %cst_129 = arith.constant 1.000000e+00 : f32
    %444 = vector.broadcast %cst_129 : f32 to vector<8x32xf32>
    %445 = arith.addf %444, %443 : vector<8x32xf32>
    %446 = arith.divf %444, %445 : vector<8x32xf32>
    %447 = arith.mulf %438, %421 : vector<8x32xf32>
    %448 = arith.mulf %432, %440 : vector<8x32xf32>
    %449 = arith.addf %447, %448 : vector<8x32xf32>
    %450 = math.tanh %449 : vector<8x32xf32>
    %451 = arith.mulf %446, %450 : vector<8x32xf32>
    %c56_130 = arith.constant 56 : index
    %c0_131 = arith.constant 0 : index
    %452 = vector.load %arg16[%c56_130, %c0_131] : memref<64x128xf32, #tpu.memory_space<vmem>>, vector<8x128xf32>
    %cst_132 = arith.constant dense<0.000000e+00> : vector<8x128xf32>
    %453 = tpu.matmul %451, %251, %cst_132 {dimension_numbers = #tpu.dot_dimension_numbers<[1], [0], [0], [1], [0, 0, 1, 1], [], []>} : vector<8x32xf32>, vector<32x128xf32>, vector<8x128xf32> -> vector<8x128xf32>
    %454 = arith.addf %452, %453 : vector<8x128xf32>
    %455 = vector.extract_strided_slice %454 {offsets = [0, 0], sizes = [8, 32], strides = [1, 1]} : vector<8x128xf32> to vector<8x32xf32>
    %456 = arith.negf %455 : vector<8x32xf32>
    %457 = math.exp %456 : vector<8x32xf32>
    %cst_133 = arith.constant 1.000000e+00 : f32
    %458 = vector.broadcast %cst_133 : f32 to vector<8x32xf32>
    %459 = arith.addf %458, %457 : vector<8x32xf32>
    %460 = arith.divf %458, %459 : vector<8x32xf32>
    %461 = vector.extract_strided_slice %454 {offsets = [0, 32], sizes = [8, 32], strides = [1, 1]} : vector<8x128xf32> to vector<8x32xf32>
    %462 = arith.negf %461 : vector<8x32xf32>
    %463 = math.exp %462 : vector<8x32xf32>
    %cst_134 = arith.constant 1.000000e+00 : f32
    %464 = vector.broadcast %cst_134 : f32 to vector<8x32xf32>
    %465 = arith.addf %464, %463 : vector<8x32xf32>
    %466 = arith.divf %464, %465 : vector<8x32xf32>
    %467 = vector.extract_strided_slice %454 {offsets = [0, 64], sizes = [8, 32], strides = [1, 1]} : vector<8x128xf32> to vector<8x32xf32>
    %468 = math.tanh %467 : vector<8x32xf32>
    %469 = vector.extract_strided_slice %454 {offsets = [0, 96], sizes = [8, 32], strides = [1, 1]} : vector<8x128xf32> to vector<8x32xf32>
    %470 = arith.negf %469 : vector<8x32xf32>
    %471 = math.exp %470 : vector<8x32xf32>
    %cst_135 = arith.constant 1.000000e+00 : f32
    %472 = vector.broadcast %cst_135 : f32 to vector<8x32xf32>
    %473 = arith.addf %472, %471 : vector<8x32xf32>
    %474 = arith.divf %472, %473 : vector<8x32xf32>
    %475 = arith.mulf %466, %449 : vector<8x32xf32>
    %476 = arith.mulf %460, %468 : vector<8x32xf32>
    %477 = arith.addf %475, %476 : vector<8x32xf32>
    %478 = math.tanh %477 : vector<8x32xf32>
    %479 = arith.mulf %474, %478 : vector<8x32xf32>
    %c0_136 = arith.constant 0 : index
    %c0_137 = arith.constant 0 : index
    %480 = vector.load %arg10[%c0_136, %c0_137] : memref<32x16xf32, #tpu.memory_space<vmem>>, vector<32x16xf32>
    %cst_138 = arith.constant dense<0.000000e+00> : vector<8x16xf32>
    %481 = tpu.matmul %479, %480, %cst_138 {dimension_numbers = #tpu.dot_dimension_numbers<[1], [0], [0], [1], [0, 0, 1, 1], [], []>} : vector<8x32xf32>, vector<32x16xf32>, vector<8x16xf32> -> vector<8x16xf32>
    %c0_139 = arith.constant 0 : index
    %c0_140 = arith.constant 0 : index
    %482 = vector.load %arg11[%c0_139, %c0_140] : memref<1x16xf32, #tpu.memory_space<vmem>>, vector<1x16xf32>
    %483 = vector.broadcast %482 : vector<1x16xf32> to vector<8x16xf32>
    %484 = arith.addf %481, %483 : vector<8x16xf32>
    %485 = vector.extract_strided_slice %484 {offsets = [0, 0], sizes = [8, 8], strides = [1, 1]} : vector<8x16xf32> to vector<8x8xf32>
    %486 = vector.extract_strided_slice %484 {offsets = [0, 8], sizes = [8, 8], strides = [1, 1]} : vector<8x16xf32> to vector<8x8xf32>
    %c0_141 = arith.constant 0 : index
    %c0_142 = arith.constant 0 : index
    %487 = vector.load %arg13[%c0_141, %c0_142] : memref<8x8xf32, #tpu.memory_space<vmem>>, vector<8x8xf32>
    tpu.vector_store %arg13[%c0_141, %c0_142], %485 {strides = array<i32>} : memref<8x8xf32, #tpu.memory_space<vmem>>, vector<8x8xf32>,
    %c0_143 = arith.constant 0 : index
    %c0_144 = arith.constant 0 : index
    %488 = vector.load %arg14[%c0_143, %c0_144] : memref<8x8xf32, #tpu.memory_space<vmem>>, vector<8x8xf32>
    tpu.vector_store %arg14[%c0_143, %c0_144], %486 {strides = array<i32>} : memref<8x8xf32, #tpu.memory_space<vmem>>, vector<8x8xf32>,
    %c0_145 = arith.constant 0 : index
    %c0_146 = arith.constant 0 : index
    %489 = vector.load %arg3[%c0_145, %c0_146] : memref<8x8xf32, #tpu.memory_space<vmem>>, vector<8x8xf32>
    %cst_147 = arith.constant 5.000000e-01 : f32
    %490 = vector.broadcast %cst_147 : f32 to vector<8x8xf32>
    %491 = arith.mulf %490, %486 : vector<8x8xf32>
    %492 = math.exp %491 : vector<8x8xf32>
    %493 = arith.mulf %489, %492 : vector<8x8xf32>
    %494 = arith.addf %485, %493 : vector<8x8xf32>
    %c0_148 = arith.constant 0 : index
    %c0_149 = arith.constant 0 : index
    %495 = vector.load %arg12[%c0_148, %c0_149] : memref<8x8xf32, #tpu.memory_space<vmem>>, vector<8x8xf32>
    tpu.vector_store %arg12[%c0_148, %c0_149], %494 {strides = array<i32>} : memref<8x8xf32, #tpu.memory_space<vmem>>, vector<8x8xf32>,
    return
  }
}

module attributes {stable_mosaic.version = 11 : i64} {
  func.func @_decoder_kernel(%arg0: memref<8x8xf32, #tpu.memory_space<vmem>>, %arg1: memref<2x8x32xf32, #tpu.memory_space<vmem>>, %arg2: memref<2x8x32xf32, #tpu.memory_space<vmem>>, %arg3: memref<8x128xf32, #tpu.memory_space<vmem>>, %arg4: memref<32x128xf32, #tpu.memory_space<vmem>>, %arg5: memref<1x128xf32, #tpu.memory_space<vmem>>, %arg6: memref<32x128xf32, #tpu.memory_space<vmem>>, %arg7: memref<32x128xf32, #tpu.memory_space<vmem>>, %arg8: memref<1x128xf32, #tpu.memory_space<vmem>>, %arg9: memref<32x128xf32, #tpu.memory_space<vmem>>, %arg10: memref<1x128xf32, #tpu.memory_space<vmem>>, %arg11: memref<64x128xf32, #tpu.memory_space<vmem>>, %arg12: memref<64x32xf32, #tpu.memory_space<vmem>>, %arg13: memref<64x128xf32, #tpu.memory_space<vmem>>) attributes {dimension_semantics = [], scalar_prefetch = 0 : i64, scratch_operands = 2 : i64, tpu.core_type = #tpu.core_type<tc>} {
    %c0 = arith.constant 0 : index
    %c0_0 = arith.constant 0 : index
    %0 = vector.load %arg0[%c0, %c0_0] : memref<8x8xf32, #tpu.memory_space<vmem>>, vector<8x8xf32>
    %c0_1 = arith.constant 0 : index
    %c0_2 = arith.constant 0 : index
    %1 = vector.load %arg3[%c0_1, %c0_2] : memref<8x128xf32, #tpu.memory_space<vmem>>, vector<8x128xf32>
    %cst = arith.constant dense<0.000000e+00> : vector<8x128xf32>
    %2 = tpu.matmul %0, %1, %cst {dimension_numbers = #tpu.dot_dimension_numbers<[1], [0], [0], [1], [0, 0, 1, 1], [], []>} : vector<8x8xf32>, vector<8x128xf32>, vector<8x128xf32> -> vector<8x128xf32>
    %c0_3 = arith.constant 0 : index
    %c0_4 = arith.constant 0 : index
    %3 = vector.load %arg5[%c0_3, %c0_4] : memref<1x128xf32, #tpu.memory_space<vmem>>, vector<1x128xf32>
    %4 = vector.broadcast %3 : vector<1x128xf32> to vector<8x128xf32>
    %5 = arith.addf %2, %4 : vector<8x128xf32>
    %c0_5 = arith.constant 0 : index
    %c0_6 = arith.constant 0 : index
    %6 = vector.load %arg4[%c0_5, %c0_6] : memref<32x128xf32, #tpu.memory_space<vmem>>, vector<32x128xf32>
    %c0_7 = arith.constant 0 : index
    %c0_8 = arith.constant 0 : index
    %c0_9 = arith.constant 0 : index
    %7 = vector.load %arg1[%c0_7, %c0_8, %c0_9] : memref<2x8x32xf32, #tpu.memory_space<vmem>>, vector<1x8x32xf32>
    %8 = vector.shape_cast %7 : vector<1x8x32xf32> to vector<8x32xf32>
    %c0_10 = arith.constant 0 : index
    %c0_11 = arith.constant 0 : index
    %c0_12 = arith.constant 0 : index
    %9 = vector.load %arg2[%c0_10, %c0_11, %c0_12] : memref<2x8x32xf32, #tpu.memory_space<vmem>>, vector<1x8x32xf32>
    %10 = vector.shape_cast %9 : vector<1x8x32xf32> to vector<8x32xf32>
    %cst_13 = arith.constant dense<0.000000e+00> : vector<8x128xf32>
    %11 = tpu.matmul %8, %6, %cst_13 {dimension_numbers = #tpu.dot_dimension_numbers<[1], [0], [0], [1], [0, 0, 1, 1], [], []>} : vector<8x32xf32>, vector<32x128xf32>, vector<8x128xf32> -> vector<8x128xf32>
    %12 = arith.addf %5, %11 : vector<8x128xf32>
    %13 = vector.extract_strided_slice %12 {offsets = [0, 0], sizes = [8, 32], strides = [1, 1]} : vector<8x128xf32> to vector<8x32xf32>
    %14 = arith.negf %13 : vector<8x32xf32>
    %15 = math.exp %14 : vector<8x32xf32>
    %cst_14 = arith.constant 1.000000e+00 : f32
    %16 = vector.broadcast %cst_14 : f32 to vector<8x32xf32>
    %17 = arith.addf %16, %15 : vector<8x32xf32>
    %18 = arith.divf %16, %17 : vector<8x32xf32>
    %19 = vector.extract_strided_slice %12 {offsets = [0, 32], sizes = [8, 32], strides = [1, 1]} : vector<8x128xf32> to vector<8x32xf32>
    %20 = arith.negf %19 : vector<8x32xf32>
    %21 = math.exp %20 : vector<8x32xf32>
    %cst_15 = arith.constant 1.000000e+00 : f32
    %22 = vector.broadcast %cst_15 : f32 to vector<8x32xf32>
    %23 = arith.addf %22, %21 : vector<8x32xf32>
    %24 = arith.divf %22, %23 : vector<8x32xf32>
    %25 = vector.extract_strided_slice %12 {offsets = [0, 64], sizes = [8, 32], strides = [1, 1]} : vector<8x128xf32> to vector<8x32xf32>
    %26 = math.tanh %25 : vector<8x32xf32>
    %27 = vector.extract_strided_slice %12 {offsets = [0, 96], sizes = [8, 32], strides = [1, 1]} : vector<8x128xf32> to vector<8x32xf32>
    %28 = arith.negf %27 : vector<8x32xf32>
    %29 = math.exp %28 : vector<8x32xf32>
    %cst_16 = arith.constant 1.000000e+00 : f32
    %30 = vector.broadcast %cst_16 : f32 to vector<8x32xf32>
    %31 = arith.addf %30, %29 : vector<8x32xf32>
    %32 = arith.divf %30, %31 : vector<8x32xf32>
    %33 = arith.mulf %24, %10 : vector<8x32xf32>
    %34 = arith.mulf %18, %26 : vector<8x32xf32>
    %35 = arith.addf %33, %34 : vector<8x32xf32>
    %36 = math.tanh %35 : vector<8x32xf32>
    %37 = arith.mulf %32, %36 : vector<8x32xf32>
    %c0_17 = arith.constant 0 : index
    %c0_18 = arith.constant 0 : index
    %38 = vector.load %arg12[%c0_17, %c0_18] : memref<64x32xf32, #tpu.memory_space<vmem>>, vector<8x32xf32>
    tpu.vector_store %arg12[%c0_17, %c0_18], %37 {strides = array<i32>} : memref<64x32xf32, #tpu.memory_space<vmem>>, vector<8x32xf32>,
    %cst_19 = arith.constant dense<0.000000e+00> : vector<8x128xf32>
    %39 = tpu.matmul %37, %6, %cst_19 {dimension_numbers = #tpu.dot_dimension_numbers<[1], [0], [0], [1], [0, 0, 1, 1], [], []>} : vector<8x32xf32>, vector<32x128xf32>, vector<8x128xf32> -> vector<8x128xf32>
    %40 = arith.addf %5, %39 : vector<8x128xf32>
    %41 = vector.extract_strided_slice %40 {offsets = [0, 0], sizes = [8, 32], strides = [1, 1]} : vector<8x128xf32> to vector<8x32xf32>
    %42 = arith.negf %41 : vector<8x32xf32>
    %43 = math.exp %42 : vector<8x32xf32>
    %cst_20 = arith.constant 1.000000e+00 : f32
    %44 = vector.broadcast %cst_20 : f32 to vector<8x32xf32>
    %45 = arith.addf %44, %43 : vector<8x32xf32>
    %46 = arith.divf %44, %45 : vector<8x32xf32>
    %47 = vector.extract_strided_slice %40 {offsets = [0, 32], sizes = [8, 32], strides = [1, 1]} : vector<8x128xf32> to vector<8x32xf32>
    %48 = arith.negf %47 : vector<8x32xf32>
    %49 = math.exp %48 : vector<8x32xf32>
    %cst_21 = arith.constant 1.000000e+00 : f32
    %50 = vector.broadcast %cst_21 : f32 to vector<8x32xf32>
    %51 = arith.addf %50, %49 : vector<8x32xf32>
    %52 = arith.divf %50, %51 : vector<8x32xf32>
    %53 = vector.extract_strided_slice %40 {offsets = [0, 64], sizes = [8, 32], strides = [1, 1]} : vector<8x128xf32> to vector<8x32xf32>
    %54 = math.tanh %53 : vector<8x32xf32>
    %55 = vector.extract_strided_slice %40 {offsets = [0, 96], sizes = [8, 32], strides = [1, 1]} : vector<8x128xf32> to vector<8x32xf32>
    %56 = arith.negf %55 : vector<8x32xf32>
    %57 = math.exp %56 : vector<8x32xf32>
    %cst_22 = arith.constant 1.000000e+00 : f32
    %58 = vector.broadcast %cst_22 : f32 to vector<8x32xf32>
    %59 = arith.addf %58, %57 : vector<8x32xf32>
    %60 = arith.divf %58, %59 : vector<8x32xf32>
    %61 = arith.mulf %52, %35 : vector<8x32xf32>
    %62 = arith.mulf %46, %54 : vector<8x32xf32>
    %63 = arith.addf %61, %62 : vector<8x32xf32>
    %64 = math.tanh %63 : vector<8x32xf32>
    %65 = arith.mulf %60, %64 : vector<8x32xf32>
    %c8 = arith.constant 8 : index
    %c0_23 = arith.constant 0 : index
    %66 = vector.load %arg12[%c8, %c0_23] : memref<64x32xf32, #tpu.memory_space<vmem>>, vector<8x32xf32>
    tpu.vector_store %arg12[%c8, %c0_23], %65 {strides = array<i32>} : memref<64x32xf32, #tpu.memory_space<vmem>>, vector<8x32xf32>,
    %cst_24 = arith.constant dense<0.000000e+00> : vector<8x128xf32>
    %67 = tpu.matmul %65, %6, %cst_24 {dimension_numbers = #tpu.dot_dimension_numbers<[1], [0], [0], [1], [0, 0, 1, 1], [], []>} : vector<8x32xf32>, vector<32x128xf32>, vector<8x128xf32> -> vector<8x128xf32>
    %68 = arith.addf %5, %67 : vector<8x128xf32>
    %69 = vector.extract_strided_slice %68 {offsets = [0, 0], sizes = [8, 32], strides = [1, 1]} : vector<8x128xf32> to vector<8x32xf32>
    %70 = arith.negf %69 : vector<8x32xf32>
    %71 = math.exp %70 : vector<8x32xf32>
    %cst_25 = arith.constant 1.000000e+00 : f32
    %72 = vector.broadcast %cst_25 : f32 to vector<8x32xf32>
    %73 = arith.addf %72, %71 : vector<8x32xf32>
    %74 = arith.divf %72, %73 : vector<8x32xf32>
    %75 = vector.extract_strided_slice %68 {offsets = [0, 32], sizes = [8, 32], strides = [1, 1]} : vector<8x128xf32> to vector<8x32xf32>
    %76 = arith.negf %75 : vector<8x32xf32>
    %77 = math.exp %76 : vector<8x32xf32>
    %cst_26 = arith.constant 1.000000e+00 : f32
    %78 = vector.broadcast %cst_26 : f32 to vector<8x32xf32>
    %79 = arith.addf %78, %77 : vector<8x32xf32>
    %80 = arith.divf %78, %79 : vector<8x32xf32>
    %81 = vector.extract_strided_slice %68 {offsets = [0, 64], sizes = [8, 32], strides = [1, 1]} : vector<8x128xf32> to vector<8x32xf32>
    %82 = math.tanh %81 : vector<8x32xf32>
    %83 = vector.extract_strided_slice %68 {offsets = [0, 96], sizes = [8, 32], strides = [1, 1]} : vector<8x128xf32> to vector<8x32xf32>
    %84 = arith.negf %83 : vector<8x32xf32>
    %85 = math.exp %84 : vector<8x32xf32>
    %cst_27 = arith.constant 1.000000e+00 : f32
    %86 = vector.broadcast %cst_27 : f32 to vector<8x32xf32>
    %87 = arith.addf %86, %85 : vector<8x32xf32>
    %88 = arith.divf %86, %87 : vector<8x32xf32>
    %89 = arith.mulf %80, %63 : vector<8x32xf32>
    %90 = arith.mulf %74, %82 : vector<8x32xf32>
    %91 = arith.addf %89, %90 : vector<8x32xf32>
    %92 = math.tanh %91 : vector<8x32xf32>
    %93 = arith.mulf %88, %92 : vector<8x32xf32>
    %c16 = arith.constant 16 : index
    %c0_28 = arith.constant 0 : index
    %94 = vector.load %arg12[%c16, %c0_28] : memref<64x32xf32, #tpu.memory_space<vmem>>, vector<8x32xf32>
    tpu.vector_store %arg12[%c16, %c0_28], %93 {strides = array<i32>} : memref<64x32xf32, #tpu.memory_space<vmem>>, vector<8x32xf32>,
    %cst_29 = arith.constant dense<0.000000e+00> : vector<8x128xf32>
    %95 = tpu.matmul %93, %6, %cst_29 {dimension_numbers = #tpu.dot_dimension_numbers<[1], [0], [0], [1], [0, 0, 1, 1], [], []>} : vector<8x32xf32>, vector<32x128xf32>, vector<8x128xf32> -> vector<8x128xf32>
    %96 = arith.addf %5, %95 : vector<8x128xf32>
    %97 = vector.extract_strided_slice %96 {offsets = [0, 0], sizes = [8, 32], strides = [1, 1]} : vector<8x128xf32> to vector<8x32xf32>
    %98 = arith.negf %97 : vector<8x32xf32>
    %99 = math.exp %98 : vector<8x32xf32>
    %cst_30 = arith.constant 1.000000e+00 : f32
    %100 = vector.broadcast %cst_30 : f32 to vector<8x32xf32>
    %101 = arith.addf %100, %99 : vector<8x32xf32>
    %102 = arith.divf %100, %101 : vector<8x32xf32>
    %103 = vector.extract_strided_slice %96 {offsets = [0, 32], sizes = [8, 32], strides = [1, 1]} : vector<8x128xf32> to vector<8x32xf32>
    %104 = arith.negf %103 : vector<8x32xf32>
    %105 = math.exp %104 : vector<8x32xf32>
    %cst_31 = arith.constant 1.000000e+00 : f32
    %106 = vector.broadcast %cst_31 : f32 to vector<8x32xf32>
    %107 = arith.addf %106, %105 : vector<8x32xf32>
    %108 = arith.divf %106, %107 : vector<8x32xf32>
    %109 = vector.extract_strided_slice %96 {offsets = [0, 64], sizes = [8, 32], strides = [1, 1]} : vector<8x128xf32> to vector<8x32xf32>
    %110 = math.tanh %109 : vector<8x32xf32>
    %111 = vector.extract_strided_slice %96 {offsets = [0, 96], sizes = [8, 32], strides = [1, 1]} : vector<8x128xf32> to vector<8x32xf32>
    %112 = arith.negf %111 : vector<8x32xf32>
    %113 = math.exp %112 : vector<8x32xf32>
    %cst_32 = arith.constant 1.000000e+00 : f32
    %114 = vector.broadcast %cst_32 : f32 to vector<8x32xf32>
    %115 = arith.addf %114, %113 : vector<8x32xf32>
    %116 = arith.divf %114, %115 : vector<8x32xf32>
    %117 = arith.mulf %108, %91 : vector<8x32xf32>
    %118 = arith.mulf %102, %110 : vector<8x32xf32>
    %119 = arith.addf %117, %118 : vector<8x32xf32>
    %120 = math.tanh %119 : vector<8x32xf32>
    %121 = arith.mulf %116, %120 : vector<8x32xf32>
    %c24 = arith.constant 24 : index
    %c0_33 = arith.constant 0 : index
    %122 = vector.load %arg12[%c24, %c0_33] : memref<64x32xf32, #tpu.memory_space<vmem>>, vector<8x32xf32>
    tpu.vector_store %arg12[%c24, %c0_33], %121 {strides = array<i32>} : memref<64x32xf32, #tpu.memory_space<vmem>>, vector<8x32xf32>,
    %cst_34 = arith.constant dense<0.000000e+00> : vector<8x128xf32>
    %123 = tpu.matmul %121, %6, %cst_34 {dimension_numbers = #tpu.dot_dimension_numbers<[1], [0], [0], [1], [0, 0, 1, 1], [], []>} : vector<8x32xf32>, vector<32x128xf32>, vector<8x128xf32> -> vector<8x128xf32>
    %124 = arith.addf %5, %123 : vector<8x128xf32>
    %125 = vector.extract_strided_slice %124 {offsets = [0, 0], sizes = [8, 32], strides = [1, 1]} : vector<8x128xf32> to vector<8x32xf32>
    %126 = arith.negf %125 : vector<8x32xf32>
    %127 = math.exp %126 : vector<8x32xf32>
    %cst_35 = arith.constant 1.000000e+00 : f32
    %128 = vector.broadcast %cst_35 : f32 to vector<8x32xf32>
    %129 = arith.addf %128, %127 : vector<8x32xf32>
    %130 = arith.divf %128, %129 : vector<8x32xf32>
    %131 = vector.extract_strided_slice %124 {offsets = [0, 32], sizes = [8, 32], strides = [1, 1]} : vector<8x128xf32> to vector<8x32xf32>
    %132 = arith.negf %131 : vector<8x32xf32>
    %133 = math.exp %132 : vector<8x32xf32>
    %cst_36 = arith.constant 1.000000e+00 : f32
    %134 = vector.broadcast %cst_36 : f32 to vector<8x32xf32>
    %135 = arith.addf %134, %133 : vector<8x32xf32>
    %136 = arith.divf %134, %135 : vector<8x32xf32>
    %137 = vector.extract_strided_slice %124 {offsets = [0, 64], sizes = [8, 32], strides = [1, 1]} : vector<8x128xf32> to vector<8x32xf32>
    %138 = math.tanh %137 : vector<8x32xf32>
    %139 = vector.extract_strided_slice %124 {offsets = [0, 96], sizes = [8, 32], strides = [1, 1]} : vector<8x128xf32> to vector<8x32xf32>
    %140 = arith.negf %139 : vector<8x32xf32>
    %141 = math.exp %140 : vector<8x32xf32>
    %cst_37 = arith.constant 1.000000e+00 : f32
    %142 = vector.broadcast %cst_37 : f32 to vector<8x32xf32>
    %143 = arith.addf %142, %141 : vector<8x32xf32>
    %144 = arith.divf %142, %143 : vector<8x32xf32>
    %145 = arith.mulf %136, %119 : vector<8x32xf32>
    %146 = arith.mulf %130, %138 : vector<8x32xf32>
    %147 = arith.addf %145, %146 : vector<8x32xf32>
    %148 = math.tanh %147 : vector<8x32xf32>
    %149 = arith.mulf %144, %148 : vector<8x32xf32>
    %c32 = arith.constant 32 : index
    %c0_38 = arith.constant 0 : index
    %150 = vector.load %arg12[%c32, %c0_38] : memref<64x32xf32, #tpu.memory_space<vmem>>, vector<8x32xf32>
    tpu.vector_store %arg12[%c32, %c0_38], %149 {strides = array<i32>} : memref<64x32xf32, #tpu.memory_space<vmem>>, vector<8x32xf32>,
    %cst_39 = arith.constant dense<0.000000e+00> : vector<8x128xf32>
    %151 = tpu.matmul %149, %6, %cst_39 {dimension_numbers = #tpu.dot_dimension_numbers<[1], [0], [0], [1], [0, 0, 1, 1], [], []>} : vector<8x32xf32>, vector<32x128xf32>, vector<8x128xf32> -> vector<8x128xf32>
    %152 = arith.addf %5, %151 : vector<8x128xf32>
    %153 = vector.extract_strided_slice %152 {offsets = [0, 0], sizes = [8, 32], strides = [1, 1]} : vector<8x128xf32> to vector<8x32xf32>
    %154 = arith.negf %153 : vector<8x32xf32>
    %155 = math.exp %154 : vector<8x32xf32>
    %cst_40 = arith.constant 1.000000e+00 : f32
    %156 = vector.broadcast %cst_40 : f32 to vector<8x32xf32>
    %157 = arith.addf %156, %155 : vector<8x32xf32>
    %158 = arith.divf %156, %157 : vector<8x32xf32>
    %159 = vector.extract_strided_slice %152 {offsets = [0, 32], sizes = [8, 32], strides = [1, 1]} : vector<8x128xf32> to vector<8x32xf32>
    %160 = arith.negf %159 : vector<8x32xf32>
    %161 = math.exp %160 : vector<8x32xf32>
    %cst_41 = arith.constant 1.000000e+00 : f32
    %162 = vector.broadcast %cst_41 : f32 to vector<8x32xf32>
    %163 = arith.addf %162, %161 : vector<8x32xf32>
    %164 = arith.divf %162, %163 : vector<8x32xf32>
    %165 = vector.extract_strided_slice %152 {offsets = [0, 64], sizes = [8, 32], strides = [1, 1]} : vector<8x128xf32> to vector<8x32xf32>
    %166 = math.tanh %165 : vector<8x32xf32>
    %167 = vector.extract_strided_slice %152 {offsets = [0, 96], sizes = [8, 32], strides = [1, 1]} : vector<8x128xf32> to vector<8x32xf32>
    %168 = arith.negf %167 : vector<8x32xf32>
    %169 = math.exp %168 : vector<8x32xf32>
    %cst_42 = arith.constant 1.000000e+00 : f32
    %170 = vector.broadcast %cst_42 : f32 to vector<8x32xf32>
    %171 = arith.addf %170, %169 : vector<8x32xf32>
    %172 = arith.divf %170, %171 : vector<8x32xf32>
    %173 = arith.mulf %164, %147 : vector<8x32xf32>
    %174 = arith.mulf %158, %166 : vector<8x32xf32>
    %175 = arith.addf %173, %174 : vector<8x32xf32>
    %176 = math.tanh %175 : vector<8x32xf32>
    %177 = arith.mulf %172, %176 : vector<8x32xf32>
    %c40 = arith.constant 40 : index
    %c0_43 = arith.constant 0 : index
    %178 = vector.load %arg12[%c40, %c0_43] : memref<64x32xf32, #tpu.memory_space<vmem>>, vector<8x32xf32>
    tpu.vector_store %arg12[%c40, %c0_43], %177 {strides = array<i32>} : memref<64x32xf32, #tpu.memory_space<vmem>>, vector<8x32xf32>,
    %cst_44 = arith.constant dense<0.000000e+00> : vector<8x128xf32>
    %179 = tpu.matmul %177, %6, %cst_44 {dimension_numbers = #tpu.dot_dimension_numbers<[1], [0], [0], [1], [0, 0, 1, 1], [], []>} : vector<8x32xf32>, vector<32x128xf32>, vector<8x128xf32> -> vector<8x128xf32>
    %180 = arith.addf %5, %179 : vector<8x128xf32>
    %181 = vector.extract_strided_slice %180 {offsets = [0, 0], sizes = [8, 32], strides = [1, 1]} : vector<8x128xf32> to vector<8x32xf32>
    %182 = arith.negf %181 : vector<8x32xf32>
    %183 = math.exp %182 : vector<8x32xf32>
    %cst_45 = arith.constant 1.000000e+00 : f32
    %184 = vector.broadcast %cst_45 : f32 to vector<8x32xf32>
    %185 = arith.addf %184, %183 : vector<8x32xf32>
    %186 = arith.divf %184, %185 : vector<8x32xf32>
    %187 = vector.extract_strided_slice %180 {offsets = [0, 32], sizes = [8, 32], strides = [1, 1]} : vector<8x128xf32> to vector<8x32xf32>
    %188 = arith.negf %187 : vector<8x32xf32>
    %189 = math.exp %188 : vector<8x32xf32>
    %cst_46 = arith.constant 1.000000e+00 : f32
    %190 = vector.broadcast %cst_46 : f32 to vector<8x32xf32>
    %191 = arith.addf %190, %189 : vector<8x32xf32>
    %192 = arith.divf %190, %191 : vector<8x32xf32>
    %193 = vector.extract_strided_slice %180 {offsets = [0, 64], sizes = [8, 32], strides = [1, 1]} : vector<8x128xf32> to vector<8x32xf32>
    %194 = math.tanh %193 : vector<8x32xf32>
    %195 = vector.extract_strided_slice %180 {offsets = [0, 96], sizes = [8, 32], strides = [1, 1]} : vector<8x128xf32> to vector<8x32xf32>
    %196 = arith.negf %195 : vector<8x32xf32>
    %197 = math.exp %196 : vector<8x32xf32>
    %cst_47 = arith.constant 1.000000e+00 : f32
    %198 = vector.broadcast %cst_47 : f32 to vector<8x32xf32>
    %199 = arith.addf %198, %197 : vector<8x32xf32>
    %200 = arith.divf %198, %199 : vector<8x32xf32>
    %201 = arith.mulf %192, %175 : vector<8x32xf32>
    %202 = arith.mulf %186, %194 : vector<8x32xf32>
    %203 = arith.addf %201, %202 : vector<8x32xf32>
    %204 = math.tanh %203 : vector<8x32xf32>
    %205 = arith.mulf %200, %204 : vector<8x32xf32>
    %c48 = arith.constant 48 : index
    %c0_48 = arith.constant 0 : index
    %206 = vector.load %arg12[%c48, %c0_48] : memref<64x32xf32, #tpu.memory_space<vmem>>, vector<8x32xf32>
    tpu.vector_store %arg12[%c48, %c0_48], %205 {strides = array<i32>} : memref<64x32xf32, #tpu.memory_space<vmem>>, vector<8x32xf32>,
    %cst_49 = arith.constant dense<0.000000e+00> : vector<8x128xf32>
    %207 = tpu.matmul %205, %6, %cst_49 {dimension_numbers = #tpu.dot_dimension_numbers<[1], [0], [0], [1], [0, 0, 1, 1], [], []>} : vector<8x32xf32>, vector<32x128xf32>, vector<8x128xf32> -> vector<8x128xf32>
    %208 = arith.addf %5, %207 : vector<8x128xf32>
    %209 = vector.extract_strided_slice %208 {offsets = [0, 0], sizes = [8, 32], strides = [1, 1]} : vector<8x128xf32> to vector<8x32xf32>
    %210 = arith.negf %209 : vector<8x32xf32>
    %211 = math.exp %210 : vector<8x32xf32>
    %cst_50 = arith.constant 1.000000e+00 : f32
    %212 = vector.broadcast %cst_50 : f32 to vector<8x32xf32>
    %213 = arith.addf %212, %211 : vector<8x32xf32>
    %214 = arith.divf %212, %213 : vector<8x32xf32>
    %215 = vector.extract_strided_slice %208 {offsets = [0, 32], sizes = [8, 32], strides = [1, 1]} : vector<8x128xf32> to vector<8x32xf32>
    %216 = arith.negf %215 : vector<8x32xf32>
    %217 = math.exp %216 : vector<8x32xf32>
    %cst_51 = arith.constant 1.000000e+00 : f32
    %218 = vector.broadcast %cst_51 : f32 to vector<8x32xf32>
    %219 = arith.addf %218, %217 : vector<8x32xf32>
    %220 = arith.divf %218, %219 : vector<8x32xf32>
    %221 = vector.extract_strided_slice %208 {offsets = [0, 64], sizes = [8, 32], strides = [1, 1]} : vector<8x128xf32> to vector<8x32xf32>
    %222 = math.tanh %221 : vector<8x32xf32>
    %223 = vector.extract_strided_slice %208 {offsets = [0, 96], sizes = [8, 32], strides = [1, 1]} : vector<8x128xf32> to vector<8x32xf32>
    %224 = arith.negf %223 : vector<8x32xf32>
    %225 = math.exp %224 : vector<8x32xf32>
    %cst_52 = arith.constant 1.000000e+00 : f32
    %226 = vector.broadcast %cst_52 : f32 to vector<8x32xf32>
    %227 = arith.addf %226, %225 : vector<8x32xf32>
    %228 = arith.divf %226, %227 : vector<8x32xf32>
    %229 = arith.mulf %220, %203 : vector<8x32xf32>
    %230 = arith.mulf %214, %222 : vector<8x32xf32>
    %231 = arith.addf %229, %230 : vector<8x32xf32>
    %232 = math.tanh %231 : vector<8x32xf32>
    %233 = arith.mulf %228, %232 : vector<8x32xf32>
    %c56 = arith.constant 56 : index
    %c0_53 = arith.constant 0 : index
    %234 = vector.load %arg12[%c56, %c0_53] : memref<64x32xf32, #tpu.memory_space<vmem>>, vector<8x32xf32>
    tpu.vector_store %arg12[%c56, %c0_53], %233 {strides = array<i32>} : memref<64x32xf32, #tpu.memory_space<vmem>>, vector<8x32xf32>,
    %c0_54 = arith.constant 0 : index
    %c0_55 = arith.constant 0 : index
    %235 = vector.load %arg12[%c0_54, %c0_55] : memref<64x32xf32, #tpu.memory_space<vmem>>, vector<64x32xf32>
    %c0_56 = arith.constant 0 : index
    %c0_57 = arith.constant 0 : index
    %236 = vector.load %arg6[%c0_56, %c0_57] : memref<32x128xf32, #tpu.memory_space<vmem>>, vector<32x128xf32>
    %cst_58 = arith.constant dense<0.000000e+00> : vector<64x128xf32>
    %237 = tpu.matmul %235, %236, %cst_58 {dimension_numbers = #tpu.dot_dimension_numbers<[1], [0], [0], [1], [0, 0, 1, 1], [], []>} : vector<64x32xf32>, vector<32x128xf32>, vector<64x128xf32> -> vector<64x128xf32>
    %c0_59 = arith.constant 0 : index
    %c0_60 = arith.constant 0 : index
    %238 = vector.load %arg8[%c0_59, %c0_60] : memref<1x128xf32, #tpu.memory_space<vmem>>, vector<1x128xf32>
    %239 = vector.broadcast %238 : vector<1x128xf32> to vector<64x128xf32>
    %240 = arith.addf %237, %239 : vector<64x128xf32>
    %c0_61 = arith.constant 0 : index
    %c0_62 = arith.constant 0 : index
    %241 = vector.load %arg13[%c0_61, %c0_62] : memref<64x128xf32, #tpu.memory_space<vmem>>, vector<64x128xf32>
    tpu.vector_store %arg13[%c0_61, %c0_62], %240 {strides = array<i32>} : memref<64x128xf32, #tpu.memory_space<vmem>>, vector<64x128xf32>,
    %c0_63 = arith.constant 0 : index
    %c0_64 = arith.constant 0 : index
    %242 = vector.load %arg7[%c0_63, %c0_64] : memref<32x128xf32, #tpu.memory_space<vmem>>, vector<32x128xf32>
    %c1 = arith.constant 1 : index
    %c0_65 = arith.constant 0 : index
    %c0_66 = arith.constant 0 : index
    %243 = vector.load %arg1[%c1, %c0_65, %c0_66] : memref<2x8x32xf32, #tpu.memory_space<vmem>>, vector<1x8x32xf32>
    %244 = vector.shape_cast %243 : vector<1x8x32xf32> to vector<8x32xf32>
    %c1_67 = arith.constant 1 : index
    %c0_68 = arith.constant 0 : index
    %c0_69 = arith.constant 0 : index
    %245 = vector.load %arg2[%c1_67, %c0_68, %c0_69] : memref<2x8x32xf32, #tpu.memory_space<vmem>>, vector<1x8x32xf32>
    %246 = vector.shape_cast %245 : vector<1x8x32xf32> to vector<8x32xf32>
    %cst_70 = arith.constant dense<0.000000e+00> : vector<8x128xf32>
    %247 = tpu.matmul %244, %242, %cst_70 {dimension_numbers = #tpu.dot_dimension_numbers<[1], [0], [0], [1], [0, 0, 1, 1], [], []>} : vector<8x32xf32>, vector<32x128xf32>, vector<8x128xf32> -> vector<8x128xf32>
    %c0_71 = arith.constant 0 : index
    %c0_72 = arith.constant 0 : index
    %248 = vector.load %arg13[%c0_71, %c0_72] : memref<64x128xf32, #tpu.memory_space<vmem>>, vector<8x128xf32>
    %249 = arith.addf %248, %247 : vector<8x128xf32>
    %250 = vector.extract_strided_slice %249 {offsets = [0, 0], sizes = [8, 32], strides = [1, 1]} : vector<8x128xf32> to vector<8x32xf32>
    %251 = arith.negf %250 : vector<8x32xf32>
    %252 = math.exp %251 : vector<8x32xf32>
    %cst_73 = arith.constant 1.000000e+00 : f32
    %253 = vector.broadcast %cst_73 : f32 to vector<8x32xf32>
    %254 = arith.addf %253, %252 : vector<8x32xf32>
    %255 = arith.divf %253, %254 : vector<8x32xf32>
    %256 = vector.extract_strided_slice %249 {offsets = [0, 32], sizes = [8, 32], strides = [1, 1]} : vector<8x128xf32> to vector<8x32xf32>
    %257 = arith.negf %256 : vector<8x32xf32>
    %258 = math.exp %257 : vector<8x32xf32>
    %cst_74 = arith.constant 1.000000e+00 : f32
    %259 = vector.broadcast %cst_74 : f32 to vector<8x32xf32>
    %260 = arith.addf %259, %258 : vector<8x32xf32>
    %261 = arith.divf %259, %260 : vector<8x32xf32>
    %262 = vector.extract_strided_slice %249 {offsets = [0, 64], sizes = [8, 32], strides = [1, 1]} : vector<8x128xf32> to vector<8x32xf32>
    %263 = math.tanh %262 : vector<8x32xf32>
    %264 = vector.extract_strided_slice %249 {offsets = [0, 96], sizes = [8, 32], strides = [1, 1]} : vector<8x128xf32> to vector<8x32xf32>
    %265 = arith.negf %264 : vector<8x32xf32>
    %266 = math.exp %265 : vector<8x32xf32>
    %cst_75 = arith.constant 1.000000e+00 : f32
    %267 = vector.broadcast %cst_75 : f32 to vector<8x32xf32>
    %268 = arith.addf %267, %266 : vector<8x32xf32>
    %269 = arith.divf %267, %268 : vector<8x32xf32>
    %270 = arith.mulf %261, %246 : vector<8x32xf32>
    %271 = arith.mulf %255, %263 : vector<8x32xf32>
    %272 = arith.addf %270, %271 : vector<8x32xf32>
    %273 = math.tanh %272 : vector<8x32xf32>
    %274 = arith.mulf %269, %273 : vector<8x32xf32>
    %c0_76 = arith.constant 0 : index
    %c0_77 = arith.constant 0 : index
    %275 = vector.load %arg12[%c0_76, %c0_77] : memref<64x32xf32, #tpu.memory_space<vmem>>, vector<8x32xf32>
    tpu.vector_store %arg12[%c0_76, %c0_77], %274 {strides = array<i32>} : memref<64x32xf32, #tpu.memory_space<vmem>>, vector<8x32xf32>,
    %cst_78 = arith.constant dense<0.000000e+00> : vector<8x128xf32>
    %276 = tpu.matmul %274, %242, %cst_78 {dimension_numbers = #tpu.dot_dimension_numbers<[1], [0], [0], [1], [0, 0, 1, 1], [], []>} : vector<8x32xf32>, vector<32x128xf32>, vector<8x128xf32> -> vector<8x128xf32>
    %c8_79 = arith.constant 8 : index
    %c0_80 = arith.constant 0 : index
    %277 = vector.load %arg13[%c8_79, %c0_80] : memref<64x128xf32, #tpu.memory_space<vmem>>, vector<8x128xf32>
    %278 = arith.addf %277, %276 : vector<8x128xf32>
    %279 = vector.extract_strided_slice %278 {offsets = [0, 0], sizes = [8, 32], strides = [1, 1]} : vector<8x128xf32> to vector<8x32xf32>
    %280 = arith.negf %279 : vector<8x32xf32>
    %281 = math.exp %280 : vector<8x32xf32>
    %cst_81 = arith.constant 1.000000e+00 : f32
    %282 = vector.broadcast %cst_81 : f32 to vector<8x32xf32>
    %283 = arith.addf %282, %281 : vector<8x32xf32>
    %284 = arith.divf %282, %283 : vector<8x32xf32>
    %285 = vector.extract_strided_slice %278 {offsets = [0, 32], sizes = [8, 32], strides = [1, 1]} : vector<8x128xf32> to vector<8x32xf32>
    %286 = arith.negf %285 : vector<8x32xf32>
    %287 = math.exp %286 : vector<8x32xf32>
    %cst_82 = arith.constant 1.000000e+00 : f32
    %288 = vector.broadcast %cst_82 : f32 to vector<8x32xf32>
    %289 = arith.addf %288, %287 : vector<8x32xf32>
    %290 = arith.divf %288, %289 : vector<8x32xf32>
    %291 = vector.extract_strided_slice %278 {offsets = [0, 64], sizes = [8, 32], strides = [1, 1]} : vector<8x128xf32> to vector<8x32xf32>
    %292 = math.tanh %291 : vector<8x32xf32>
    %293 = vector.extract_strided_slice %278 {offsets = [0, 96], sizes = [8, 32], strides = [1, 1]} : vector<8x128xf32> to vector<8x32xf32>
    %294 = arith.negf %293 : vector<8x32xf32>
    %295 = math.exp %294 : vector<8x32xf32>
    %cst_83 = arith.constant 1.000000e+00 : f32
    %296 = vector.broadcast %cst_83 : f32 to vector<8x32xf32>
    %297 = arith.addf %296, %295 : vector<8x32xf32>
    %298 = arith.divf %296, %297 : vector<8x32xf32>
    %299 = arith.mulf %290, %272 : vector<8x32xf32>
    %300 = arith.mulf %284, %292 : vector<8x32xf32>
    %301 = arith.addf %299, %300 : vector<8x32xf32>
    %302 = math.tanh %301 : vector<8x32xf32>
    %303 = arith.mulf %298, %302 : vector<8x32xf32>
    %c8_84 = arith.constant 8 : index
    %c0_85 = arith.constant 0 : index
    %304 = vector.load %arg12[%c8_84, %c0_85] : memref<64x32xf32, #tpu.memory_space<vmem>>, vector<8x32xf32>
    tpu.vector_store %arg12[%c8_84, %c0_85], %303 {strides = array<i32>} : memref<64x32xf32, #tpu.memory_space<vmem>>, vector<8x32xf32>,
    %cst_86 = arith.constant dense<0.000000e+00> : vector<8x128xf32>
    %305 = tpu.matmul %303, %242, %cst_86 {dimension_numbers = #tpu.dot_dimension_numbers<[1], [0], [0], [1], [0, 0, 1, 1], [], []>} : vector<8x32xf32>, vector<32x128xf32>, vector<8x128xf32> -> vector<8x128xf32>
    %c16_87 = arith.constant 16 : index
    %c0_88 = arith.constant 0 : index
    %306 = vector.load %arg13[%c16_87, %c0_88] : memref<64x128xf32, #tpu.memory_space<vmem>>, vector<8x128xf32>
    %307 = arith.addf %306, %305 : vector<8x128xf32>
    %308 = vector.extract_strided_slice %307 {offsets = [0, 0], sizes = [8, 32], strides = [1, 1]} : vector<8x128xf32> to vector<8x32xf32>
    %309 = arith.negf %308 : vector<8x32xf32>
    %310 = math.exp %309 : vector<8x32xf32>
    %cst_89 = arith.constant 1.000000e+00 : f32
    %311 = vector.broadcast %cst_89 : f32 to vector<8x32xf32>
    %312 = arith.addf %311, %310 : vector<8x32xf32>
    %313 = arith.divf %311, %312 : vector<8x32xf32>
    %314 = vector.extract_strided_slice %307 {offsets = [0, 32], sizes = [8, 32], strides = [1, 1]} : vector<8x128xf32> to vector<8x32xf32>
    %315 = arith.negf %314 : vector<8x32xf32>
    %316 = math.exp %315 : vector<8x32xf32>
    %cst_90 = arith.constant 1.000000e+00 : f32
    %317 = vector.broadcast %cst_90 : f32 to vector<8x32xf32>
    %318 = arith.addf %317, %316 : vector<8x32xf32>
    %319 = arith.divf %317, %318 : vector<8x32xf32>
    %320 = vector.extract_strided_slice %307 {offsets = [0, 64], sizes = [8, 32], strides = [1, 1]} : vector<8x128xf32> to vector<8x32xf32>
    %321 = math.tanh %320 : vector<8x32xf32>
    %322 = vector.extract_strided_slice %307 {offsets = [0, 96], sizes = [8, 32], strides = [1, 1]} : vector<8x128xf32> to vector<8x32xf32>
    %323 = arith.negf %322 : vector<8x32xf32>
    %324 = math.exp %323 : vector<8x32xf32>
    %cst_91 = arith.constant 1.000000e+00 : f32
    %325 = vector.broadcast %cst_91 : f32 to vector<8x32xf32>
    %326 = arith.addf %325, %324 : vector<8x32xf32>
    %327 = arith.divf %325, %326 : vector<8x32xf32>
    %328 = arith.mulf %319, %301 : vector<8x32xf32>
    %329 = arith.mulf %313, %321 : vector<8x32xf32>
    %330 = arith.addf %328, %329 : vector<8x32xf32>
    %331 = math.tanh %330 : vector<8x32xf32>
    %332 = arith.mulf %327, %331 : vector<8x32xf32>
    %c16_92 = arith.constant 16 : index
    %c0_93 = arith.constant 0 : index
    %333 = vector.load %arg12[%c16_92, %c0_93] : memref<64x32xf32, #tpu.memory_space<vmem>>, vector<8x32xf32>
    tpu.vector_store %arg12[%c16_92, %c0_93], %332 {strides = array<i32>} : memref<64x32xf32, #tpu.memory_space<vmem>>, vector<8x32xf32>,
    %cst_94 = arith.constant dense<0.000000e+00> : vector<8x128xf32>
    %334 = tpu.matmul %332, %242, %cst_94 {dimension_numbers = #tpu.dot_dimension_numbers<[1], [0], [0], [1], [0, 0, 1, 1], [], []>} : vector<8x32xf32>, vector<32x128xf32>, vector<8x128xf32> -> vector<8x128xf32>
    %c24_95 = arith.constant 24 : index
    %c0_96 = arith.constant 0 : index
    %335 = vector.load %arg13[%c24_95, %c0_96] : memref<64x128xf32, #tpu.memory_space<vmem>>, vector<8x128xf32>
    %336 = arith.addf %335, %334 : vector<8x128xf32>
    %337 = vector.extract_strided_slice %336 {offsets = [0, 0], sizes = [8, 32], strides = [1, 1]} : vector<8x128xf32> to vector<8x32xf32>
    %338 = arith.negf %337 : vector<8x32xf32>
    %339 = math.exp %338 : vector<8x32xf32>
    %cst_97 = arith.constant 1.000000e+00 : f32
    %340 = vector.broadcast %cst_97 : f32 to vector<8x32xf32>
    %341 = arith.addf %340, %339 : vector<8x32xf32>
    %342 = arith.divf %340, %341 : vector<8x32xf32>
    %343 = vector.extract_strided_slice %336 {offsets = [0, 32], sizes = [8, 32], strides = [1, 1]} : vector<8x128xf32> to vector<8x32xf32>
    %344 = arith.negf %343 : vector<8x32xf32>
    %345 = math.exp %344 : vector<8x32xf32>
    %cst_98 = arith.constant 1.000000e+00 : f32
    %346 = vector.broadcast %cst_98 : f32 to vector<8x32xf32>
    %347 = arith.addf %346, %345 : vector<8x32xf32>
    %348 = arith.divf %346, %347 : vector<8x32xf32>
    %349 = vector.extract_strided_slice %336 {offsets = [0, 64], sizes = [8, 32], strides = [1, 1]} : vector<8x128xf32> to vector<8x32xf32>
    %350 = math.tanh %349 : vector<8x32xf32>
    %351 = vector.extract_strided_slice %336 {offsets = [0, 96], sizes = [8, 32], strides = [1, 1]} : vector<8x128xf32> to vector<8x32xf32>
    %352 = arith.negf %351 : vector<8x32xf32>
    %353 = math.exp %352 : vector<8x32xf32>
    %cst_99 = arith.constant 1.000000e+00 : f32
    %354 = vector.broadcast %cst_99 : f32 to vector<8x32xf32>
    %355 = arith.addf %354, %353 : vector<8x32xf32>
    %356 = arith.divf %354, %355 : vector<8x32xf32>
    %357 = arith.mulf %348, %330 : vector<8x32xf32>
    %358 = arith.mulf %342, %350 : vector<8x32xf32>
    %359 = arith.addf %357, %358 : vector<8x32xf32>
    %360 = math.tanh %359 : vector<8x32xf32>
    %361 = arith.mulf %356, %360 : vector<8x32xf32>
    %c24_100 = arith.constant 24 : index
    %c0_101 = arith.constant 0 : index
    %362 = vector.load %arg12[%c24_100, %c0_101] : memref<64x32xf32, #tpu.memory_space<vmem>>, vector<8x32xf32>
    tpu.vector_store %arg12[%c24_100, %c0_101], %361 {strides = array<i32>} : memref<64x32xf32, #tpu.memory_space<vmem>>, vector<8x32xf32>,
    %cst_102 = arith.constant dense<0.000000e+00> : vector<8x128xf32>
    %363 = tpu.matmul %361, %242, %cst_102 {dimension_numbers = #tpu.dot_dimension_numbers<[1], [0], [0], [1], [0, 0, 1, 1], [], []>} : vector<8x32xf32>, vector<32x128xf32>, vector<8x128xf32> -> vector<8x128xf32>
    %c32_103 = arith.constant 32 : index
    %c0_104 = arith.constant 0 : index
    %364 = vector.load %arg13[%c32_103, %c0_104] : memref<64x128xf32, #tpu.memory_space<vmem>>, vector<8x128xf32>
    %365 = arith.addf %364, %363 : vector<8x128xf32>
    %366 = vector.extract_strided_slice %365 {offsets = [0, 0], sizes = [8, 32], strides = [1, 1]} : vector<8x128xf32> to vector<8x32xf32>
    %367 = arith.negf %366 : vector<8x32xf32>
    %368 = math.exp %367 : vector<8x32xf32>
    %cst_105 = arith.constant 1.000000e+00 : f32
    %369 = vector.broadcast %cst_105 : f32 to vector<8x32xf32>
    %370 = arith.addf %369, %368 : vector<8x32xf32>
    %371 = arith.divf %369, %370 : vector<8x32xf32>
    %372 = vector.extract_strided_slice %365 {offsets = [0, 32], sizes = [8, 32], strides = [1, 1]} : vector<8x128xf32> to vector<8x32xf32>
    %373 = arith.negf %372 : vector<8x32xf32>
    %374 = math.exp %373 : vector<8x32xf32>
    %cst_106 = arith.constant 1.000000e+00 : f32
    %375 = vector.broadcast %cst_106 : f32 to vector<8x32xf32>
    %376 = arith.addf %375, %374 : vector<8x32xf32>
    %377 = arith.divf %375, %376 : vector<8x32xf32>
    %378 = vector.extract_strided_slice %365 {offsets = [0, 64], sizes = [8, 32], strides = [1, 1]} : vector<8x128xf32> to vector<8x32xf32>
    %379 = math.tanh %378 : vector<8x32xf32>
    %380 = vector.extract_strided_slice %365 {offsets = [0, 96], sizes = [8, 32], strides = [1, 1]} : vector<8x128xf32> to vector<8x32xf32>
    %381 = arith.negf %380 : vector<8x32xf32>
    %382 = math.exp %381 : vector<8x32xf32>
    %cst_107 = arith.constant 1.000000e+00 : f32
    %383 = vector.broadcast %cst_107 : f32 to vector<8x32xf32>
    %384 = arith.addf %383, %382 : vector<8x32xf32>
    %385 = arith.divf %383, %384 : vector<8x32xf32>
    %386 = arith.mulf %377, %359 : vector<8x32xf32>
    %387 = arith.mulf %371, %379 : vector<8x32xf32>
    %388 = arith.addf %386, %387 : vector<8x32xf32>
    %389 = math.tanh %388 : vector<8x32xf32>
    %390 = arith.mulf %385, %389 : vector<8x32xf32>
    %c32_108 = arith.constant 32 : index
    %c0_109 = arith.constant 0 : index
    %391 = vector.load %arg12[%c32_108, %c0_109] : memref<64x32xf32, #tpu.memory_space<vmem>>, vector<8x32xf32>
    tpu.vector_store %arg12[%c32_108, %c0_109], %390 {strides = array<i32>} : memref<64x32xf32, #tpu.memory_space<vmem>>, vector<8x32xf32>,
    %cst_110 = arith.constant dense<0.000000e+00> : vector<8x128xf32>
    %392 = tpu.matmul %390, %242, %cst_110 {dimension_numbers = #tpu.dot_dimension_numbers<[1], [0], [0], [1], [0, 0, 1, 1], [], []>} : vector<8x32xf32>, vector<32x128xf32>, vector<8x128xf32> -> vector<8x128xf32>
    %c40_111 = arith.constant 40 : index
    %c0_112 = arith.constant 0 : index
    %393 = vector.load %arg13[%c40_111, %c0_112] : memref<64x128xf32, #tpu.memory_space<vmem>>, vector<8x128xf32>
    %394 = arith.addf %393, %392 : vector<8x128xf32>
    %395 = vector.extract_strided_slice %394 {offsets = [0, 0], sizes = [8, 32], strides = [1, 1]} : vector<8x128xf32> to vector<8x32xf32>
    %396 = arith.negf %395 : vector<8x32xf32>
    %397 = math.exp %396 : vector<8x32xf32>
    %cst_113 = arith.constant 1.000000e+00 : f32
    %398 = vector.broadcast %cst_113 : f32 to vector<8x32xf32>
    %399 = arith.addf %398, %397 : vector<8x32xf32>
    %400 = arith.divf %398, %399 : vector<8x32xf32>
    %401 = vector.extract_strided_slice %394 {offsets = [0, 32], sizes = [8, 32], strides = [1, 1]} : vector<8x128xf32> to vector<8x32xf32>
    %402 = arith.negf %401 : vector<8x32xf32>
    %403 = math.exp %402 : vector<8x32xf32>
    %cst_114 = arith.constant 1.000000e+00 : f32
    %404 = vector.broadcast %cst_114 : f32 to vector<8x32xf32>
    %405 = arith.addf %404, %403 : vector<8x32xf32>
    %406 = arith.divf %404, %405 : vector<8x32xf32>
    %407 = vector.extract_strided_slice %394 {offsets = [0, 64], sizes = [8, 32], strides = [1, 1]} : vector<8x128xf32> to vector<8x32xf32>
    %408 = math.tanh %407 : vector<8x32xf32>
    %409 = vector.extract_strided_slice %394 {offsets = [0, 96], sizes = [8, 32], strides = [1, 1]} : vector<8x128xf32> to vector<8x32xf32>
    %410 = arith.negf %409 : vector<8x32xf32>
    %411 = math.exp %410 : vector<8x32xf32>
    %cst_115 = arith.constant 1.000000e+00 : f32
    %412 = vector.broadcast %cst_115 : f32 to vector<8x32xf32>
    %413 = arith.addf %412, %411 : vector<8x32xf32>
    %414 = arith.divf %412, %413 : vector<8x32xf32>
    %415 = arith.mulf %406, %388 : vector<8x32xf32>
    %416 = arith.mulf %400, %408 : vector<8x32xf32>
    %417 = arith.addf %415, %416 : vector<8x32xf32>
    %418 = math.tanh %417 : vector<8x32xf32>
    %419 = arith.mulf %414, %418 : vector<8x32xf32>
    %c40_116 = arith.constant 40 : index
    %c0_117 = arith.constant 0 : index
    %420 = vector.load %arg12[%c40_116, %c0_117] : memref<64x32xf32, #tpu.memory_space<vmem>>, vector<8x32xf32>
    tpu.vector_store %arg12[%c40_116, %c0_117], %419 {strides = array<i32>} : memref<64x32xf32, #tpu.memory_space<vmem>>, vector<8x32xf32>,
    %cst_118 = arith.constant dense<0.000000e+00> : vector<8x128xf32>
    %421 = tpu.matmul %419, %242, %cst_118 {dimension_numbers = #tpu.dot_dimension_numbers<[1], [0], [0], [1], [0, 0, 1, 1], [], []>} : vector<8x32xf32>, vector<32x128xf32>, vector<8x128xf32> -> vector<8x128xf32>
    %c48_119 = arith.constant 48 : index
    %c0_120 = arith.constant 0 : index
    %422 = vector.load %arg13[%c48_119, %c0_120] : memref<64x128xf32, #tpu.memory_space<vmem>>, vector<8x128xf32>
    %423 = arith.addf %422, %421 : vector<8x128xf32>
    %424 = vector.extract_strided_slice %423 {offsets = [0, 0], sizes = [8, 32], strides = [1, 1]} : vector<8x128xf32> to vector<8x32xf32>
    %425 = arith.negf %424 : vector<8x32xf32>
    %426 = math.exp %425 : vector<8x32xf32>
    %cst_121 = arith.constant 1.000000e+00 : f32
    %427 = vector.broadcast %cst_121 : f32 to vector<8x32xf32>
    %428 = arith.addf %427, %426 : vector<8x32xf32>
    %429 = arith.divf %427, %428 : vector<8x32xf32>
    %430 = vector.extract_strided_slice %423 {offsets = [0, 32], sizes = [8, 32], strides = [1, 1]} : vector<8x128xf32> to vector<8x32xf32>
    %431 = arith.negf %430 : vector<8x32xf32>
    %432 = math.exp %431 : vector<8x32xf32>
    %cst_122 = arith.constant 1.000000e+00 : f32
    %433 = vector.broadcast %cst_122 : f32 to vector<8x32xf32>
    %434 = arith.addf %433, %432 : vector<8x32xf32>
    %435 = arith.divf %433, %434 : vector<8x32xf32>
    %436 = vector.extract_strided_slice %423 {offsets = [0, 64], sizes = [8, 32], strides = [1, 1]} : vector<8x128xf32> to vector<8x32xf32>
    %437 = math.tanh %436 : vector<8x32xf32>
    %438 = vector.extract_strided_slice %423 {offsets = [0, 96], sizes = [8, 32], strides = [1, 1]} : vector<8x128xf32> to vector<8x32xf32>
    %439 = arith.negf %438 : vector<8x32xf32>
    %440 = math.exp %439 : vector<8x32xf32>
    %cst_123 = arith.constant 1.000000e+00 : f32
    %441 = vector.broadcast %cst_123 : f32 to vector<8x32xf32>
    %442 = arith.addf %441, %440 : vector<8x32xf32>
    %443 = arith.divf %441, %442 : vector<8x32xf32>
    %444 = arith.mulf %435, %417 : vector<8x32xf32>
    %445 = arith.mulf %429, %437 : vector<8x32xf32>
    %446 = arith.addf %444, %445 : vector<8x32xf32>
    %447 = math.tanh %446 : vector<8x32xf32>
    %448 = arith.mulf %443, %447 : vector<8x32xf32>
    %c48_124 = arith.constant 48 : index
    %c0_125 = arith.constant 0 : index
    %449 = vector.load %arg12[%c48_124, %c0_125] : memref<64x32xf32, #tpu.memory_space<vmem>>, vector<8x32xf32>
    tpu.vector_store %arg12[%c48_124, %c0_125], %448 {strides = array<i32>} : memref<64x32xf32, #tpu.memory_space<vmem>>, vector<8x32xf32>,
    %cst_126 = arith.constant dense<0.000000e+00> : vector<8x128xf32>
    %450 = tpu.matmul %448, %242, %cst_126 {dimension_numbers = #tpu.dot_dimension_numbers<[1], [0], [0], [1], [0, 0, 1, 1], [], []>} : vector<8x32xf32>, vector<32x128xf32>, vector<8x128xf32> -> vector<8x128xf32>
    %c56_127 = arith.constant 56 : index
    %c0_128 = arith.constant 0 : index
    %451 = vector.load %arg13[%c56_127, %c0_128] : memref<64x128xf32, #tpu.memory_space<vmem>>, vector<8x128xf32>
    %452 = arith.addf %451, %450 : vector<8x128xf32>
    %453 = vector.extract_strided_slice %452 {offsets = [0, 0], sizes = [8, 32], strides = [1, 1]} : vector<8x128xf32> to vector<8x32xf32>
    %454 = arith.negf %453 : vector<8x32xf32>
    %455 = math.exp %454 : vector<8x32xf32>
    %cst_129 = arith.constant 1.000000e+00 : f32
    %456 = vector.broadcast %cst_129 : f32 to vector<8x32xf32>
    %457 = arith.addf %456, %455 : vector<8x32xf32>
    %458 = arith.divf %456, %457 : vector<8x32xf32>
    %459 = vector.extract_strided_slice %452 {offsets = [0, 32], sizes = [8, 32], strides = [1, 1]} : vector<8x128xf32> to vector<8x32xf32>
    %460 = arith.negf %459 : vector<8x32xf32>
    %461 = math.exp %460 : vector<8x32xf32>
    %cst_130 = arith.constant 1.000000e+00 : f32
    %462 = vector.broadcast %cst_130 : f32 to vector<8x32xf32>
    %463 = arith.addf %462, %461 : vector<8x32xf32>
    %464 = arith.divf %462, %463 : vector<8x32xf32>
    %465 = vector.extract_strided_slice %452 {offsets = [0, 64], sizes = [8, 32], strides = [1, 1]} : vector<8x128xf32> to vector<8x32xf32>
    %466 = math.tanh %465 : vector<8x32xf32>
    %467 = vector.extract_strided_slice %452 {offsets = [0, 96], sizes = [8, 32], strides = [1, 1]} : vector<8x128xf32> to vector<8x32xf32>
    %468 = arith.negf %467 : vector<8x32xf32>
    %469 = math.exp %468 : vector<8x32xf32>
    %cst_131 = arith.constant 1.000000e+00 : f32
    %470 = vector.broadcast %cst_131 : f32 to vector<8x32xf32>
    %471 = arith.addf %470, %469 : vector<8x32xf32>
    %472 = arith.divf %470, %471 : vector<8x32xf32>
    %473 = arith.mulf %464, %446 : vector<8x32xf32>
    %474 = arith.mulf %458, %466 : vector<8x32xf32>
    %475 = arith.addf %473, %474 : vector<8x32xf32>
    %476 = math.tanh %475 : vector<8x32xf32>
    %477 = arith.mulf %472, %476 : vector<8x32xf32>
    %c56_132 = arith.constant 56 : index
    %c0_133 = arith.constant 0 : index
    %478 = vector.load %arg12[%c56_132, %c0_133] : memref<64x32xf32, #tpu.memory_space<vmem>>, vector<8x32xf32>
    tpu.vector_store %arg12[%c56_132, %c0_133], %477 {strides = array<i32>} : memref<64x32xf32, #tpu.memory_space<vmem>>, vector<8x32xf32>,
    %c0_134 = arith.constant 0 : index
    %c0_135 = arith.constant 0 : index
    %479 = vector.load %arg12[%c0_134, %c0_135] : memref<64x32xf32, #tpu.memory_space<vmem>>, vector<64x32xf32>
    %c0_136 = arith.constant 0 : index
    %c0_137 = arith.constant 0 : index
    %480 = vector.load %arg9[%c0_136, %c0_137] : memref<32x128xf32, #tpu.memory_space<vmem>>, vector<32x128xf32>
    %cst_138 = arith.constant dense<0.000000e+00> : vector<64x128xf32>
    %481 = tpu.matmul %479, %480, %cst_138 {dimension_numbers = #tpu.dot_dimension_numbers<[1], [0], [0], [1], [0, 0, 1, 1], [], []>} : vector<64x32xf32>, vector<32x128xf32>, vector<64x128xf32> -> vector<64x128xf32>
    %c0_139 = arith.constant 0 : index
    %c0_140 = arith.constant 0 : index
    %482 = vector.load %arg10[%c0_139, %c0_140] : memref<1x128xf32, #tpu.memory_space<vmem>>, vector<1x128xf32>
    %483 = vector.broadcast %482 : vector<1x128xf32> to vector<64x128xf32>
    %484 = arith.addf %481, %483 : vector<64x128xf32>
    %485 = arith.negf %484 : vector<64x128xf32>
    %486 = math.exp %485 : vector<64x128xf32>
    %cst_141 = arith.constant 1.000000e+00 : f32
    %487 = vector.broadcast %cst_141 : f32 to vector<64x128xf32>
    %488 = arith.addf %487, %486 : vector<64x128xf32>
    %489 = arith.divf %487, %488 : vector<64x128xf32>
    %c0_142 = arith.constant 0 : index
    %c0_143 = arith.constant 0 : index
    %490 = vector.load %arg11[%c0_142, %c0_143] : memref<64x128xf32, #tpu.memory_space<vmem>>, vector<64x128xf32>
    tpu.vector_store %arg11[%c0_142, %c0_143], %489 {strides = array<i32>} : memref<64x128xf32, #tpu.memory_space<vmem>>, vector<64x128xf32>,
    return
  }
}

</mosaic_0001>

<llo_original>
// kernel: midivae_forward.3
$region0: #{midivae_forward.3}
  #allocation0 [shape = 'u32[]', space=smem, size = 0x4, offset = 0x4, fixed_abs, tag = 'smem constant byte address 0x4 - core index']
  #allocation1 [shape = 'u32[72,128]{1,0:T(1,128)}', space=vmem, size = 0x9000, scoped, tag = 'internal scratch']
  #allocation2 [shape = 'f32[64,32]{1,0:T(8,128)}', space=vmem, size = 0x8000, scoped, tag = 'scratch operand']
  #allocation3 [shape = 'f32[64,128]{1,0:T(8,128)}', space=vmem, size = 0x8000, scoped, tag = 'scratch operand']
  %s0 = inlined_call_operand.vmem [shape: f32[8,8], index: 0, kind: input, shape index: {}]
  %s1 = inlined_call_operand.vmem [shape: f32[2,8,32], index: 1, kind: input, shape index: {}]
  %s2 = inlined_call_operand.vmem [shape: f32[2,8,32], index: 2, kind: input, shape index: {}]
  %s3 = inlined_call_operand.vmem [shape: f32[8,128], index: 3, kind: input, shape index: {}]
  %s4 = inlined_call_operand.vmem [shape: f32[32,128], index: 4, kind: input, shape index: {}]
  %s5 = inlined_call_operand.vmem [shape: f32[1,128], index: 5, kind: input, shape index: {}]
  %s6 = inlined_call_operand.vmem [shape: f32[32,128], index: 6, kind: input, shape index: {}]
  %s7 = inlined_call_operand.vmem [shape: f32[32,128], index: 7, kind: input, shape index: {}]
  %s8 = inlined_call_operand.vmem [shape: f32[1,128], index: 8, kind: input, shape index: {}]
  %s9 = inlined_call_operand.vmem [shape: f32[32,128], index: 9, kind: input, shape index: {}]
  %s10 = inlined_call_operand.vmem [shape: f32[1,128], index: 10, kind: input, shape index: {}]
  %s11 = inlined_call_operand.vmem [shape: f32[64,128], index: 11, kind: output, shape index: {}]
  %s12 = sld [smem:[#allocation0]]
  $region54: #{midivae_forward.3} parent=0
    _
  %s14 = ssub.s32 1, %s12
  %s15 = scalar_select 0, %s14, %s12
  // Predicated region
  $region2: #{midivae_forward.3} parent=0 // pred_check
    _
  $region3: #{midivae_forward.3} parent=0 // pred_check_branch
    %17 = sbr.rel (0) target = $region5
  $region4: #{midivae_forward.3} parent=0 // pred_region
    _
  $region5: #{midivae_forward.3} parent=0 // pred_fallthru
    _
  // Predicated region
  $region6: #{midivae_forward.3} parent=0 // pred_check
    _
  $region7: #{midivae_forward.3} parent=0 // pred_check_branch
    %19 = sbr.rel (0) target = $region9
  $region8: #{midivae_forward.3} parent=0 // pred_region
    _
  $region9: #{midivae_forward.3} parent=0 // pred_fallthru
    _
  // Predicated region
  $region10: #{midivae_forward.3} parent=0 // pred_check
    _
  $region11: #{midivae_forward.3} parent=0 // pred_check_branch
    %21 = sbr.rel (0) target = $region13
  $region12: #{midivae_forward.3} parent=0 // pred_region
    _
  $region13: #{midivae_forward.3} parent=0 // pred_fallthru
    _
  // Predicated region
  $region14: #{midivae_forward.3} parent=0 // pred_check
    _
  $region15: #{midivae_forward.3} parent=0 // pred_check_branch
    %23 = sbr.rel (0) target = $region17
  $region16: #{midivae_forward.3} parent=0 // pred_region
    _
  $region17: #{midivae_forward.3} parent=0 // pred_fallthru
    _
  // Predicated region
  $region18: #{midivae_forward.3} parent=0 // pred_check
    _
  $region19: #{midivae_forward.3} parent=0 // pred_check_branch
    %25 = sbr.rel (0) target = $region21
  $region20: #{midivae_forward.3} parent=0 // pred_region
    _
  $region21: #{midivae_forward.3} parent=0 // pred_fallthru
    _
  // Predicated region
  $region22: #{midivae_forward.3} parent=0 // pred_check
    _
  $region23: #{midivae_forward.3} parent=0 // pred_check_branch
    %27 = sbr.rel (0) target = $region25
  $region24: #{midivae_forward.3} parent=0 // pred_region
    _
  $region25: #{midivae_forward.3} parent=0 // pred_fallthru
    _
  // Predicated region
  $region26: #{midivae_forward.3} parent=0 // pred_check
    _
  $region27: #{midivae_forward.3} parent=0 // pred_check_branch
    %29 = sbr.rel (0) target = $region29
  $region28: #{midivae_forward.3} parent=0 // pred_region
    _
  $region29: #{midivae_forward.3} parent=0 // pred_fallthru
    _
  // Predicated region
  $region30: #{midivae_forward.3} parent=0 // pred_check
    _
  $region31: #{midivae_forward.3} parent=0 // pred_check_branch
    %31 = sbr.rel (0) target = $region33
  $region32: #{midivae_forward.3} parent=0 // pred_region
    _
  $region33: #{midivae_forward.3} parent=0 // pred_fallthru
    _
  // Predicated region
  $region34: #{midivae_forward.3} parent=0 // pred_check
    _
  $region35: #{midivae_forward.3} parent=0 // pred_check_branch
    %33 = sbr.rel (0) target = $region37
  $region36: #{midivae_forward.3} parent=0 // pred_region
    _
  $region37: #{midivae_forward.3} parent=0 // pred_fallthru
    _
  // Predicated region
  $region38: #{midivae_forward.3} parent=0 // pred_check
    _
  $region39: #{midivae_forward.3} parent=0 // pred_check_branch
    %35 = sbr.rel (0) target = $region41
  $region40: #{midivae_forward.3} parent=0 // pred_region
    _
  $region41: #{midivae_forward.3} parent=0 // pred_fallthru
    _
  // Predicated region
  $region42: #{midivae_forward.3} parent=0 // pred_check
    _
  $region43: #{midivae_forward.3} parent=0 // pred_check_branch
    %37 = sbr.rel (0) target = $region45
  $region44: #{midivae_forward.3} parent=0 // pred_region
    _
  $region45: #{midivae_forward.3} parent=0 // pred_fallthru
    _
  %v38 = vld [vmem:[%s0] sm:$0xff]
  %v39 = vld [vmem:[%s3] sm:$0xff]
  %v40 = vld [vmem:[%s5] sm:$0x1]
  %v42 = vperm.slane %v40, 0
  %vm44 = vcmask 64512
  %v46 = vsel %vm44, %v38, 0
  %48 = vmatpush.msra.mxu0 0.0
  %49 = vmatpush.msra.mxu0 0.0
  %50 = vmatpush.msra.mxu0 0.0
  %51 = vmatpush.msra.mxu0 0.0
  %52 = vmatpush.msra.mxu0 0.0
  %53 = vmatpush.msra.mxu0 0.0
  %54 = vmatpush.msra.mxu0 0.0
  %55 = vmatpush.msra.mxu0 0.0
  %56 = vmatpush.msra.mxu0 0.0
  %57 = vmatpush.msra.mxu0 0.0
  %58 = vmatpush.msra.mxu0 0.0
  %59 = vmatpush.msra.mxu0 0.0
  %60 = vmatpush.msra.mxu0 0.0
  %61 = vmatpush.msra.mxu0 0.0
  %62 = vmatpush.msra.mxu0 0.0
  %63 = vmatpush.msra.mxu0 %v39
  %64 = vmatmul.f32.gmra.mxu0 %v46
  %v65 = vpop.f32.mrf.mxu0
  %v66 = vadd.f32 %v42, %v65
  %67 = vdwg.mxu0
  %v68 = vld [vmem:[%s4] sm:$0xff]
  %v69 = vld [vmem:[%s4 + $0x8] sm:$0xff]
  %v70 = vld [vmem:[%s4 + $0x10] sm:$0xff]
  %v71 = vld [vmem:[%s4 + $0x18] sm:$0xff]
  %v72 = vld [vmem:[%s1] sm:$0xff]
  %v73 = vld [vmem:[%s2] sm:$0xff]
  %vm74 = vcmask 261120
  %v76 = vsel %vm74, %v72, 0
  %78 = vmatpush.msra.mxu0 0.0
  %79 = vmatpush.msra.mxu0 0.0
  %80 = vmatpush.msra.mxu0 0.0
  %81 = vmatpush.msra.mxu0 0.0
  %82 = vmatpush.msra.mxu0 0.0
  %83 = vmatpush.msra.mxu0 0.0
  %84 = vmatpush.msra.mxu0 0.0
  %85 = vmatpush.msra.mxu0 0.0
  %86 = vmatpush.msra.mxu0 0.0
  %87 = vmatpush.msra.mxu0 0.0
  %88 = vmatpush.msra.mxu0 0.0
  %89 = vmatpush.msra.mxu0 0.0
  %90 = vmatpush.msra.mxu0 %v71
  %91 = vmatpush.msra.mxu0 %v70
  %92 = vmatpush.msra.mxu0 %v69
  %93 = vmatpush.msra.mxu0 %v68
  %94 = vmatmul.f32.gmra.mxu0 %v76
  %v95 = vpop.f32.mrf.mxu0
  %v96 = vadd.f32 0.0, %v95
  %97 = vdwg.mxu0
  %v98 = vadd.f32 %v66, %v96
  %v99 = vxor.u32 %v98, 2147483648
  %v100 = vmul.f32 %v99, 1.442695
  %v101 = vpow.pop %v100
  %v102 = vadd.f32 %v101, 1.0
  %v103 = vrcp.pop %v102
  %v104 = vmul.f32 %v102, %v103
  %v105 = vsub.f32 1.0, %v104
  %v106 = vmul.f32 %v103, %v105
  %v107 = vadd.f32 %v103, %v106
  %vm108 = vweird.f32 %v102
  %vm109 = vweird.f32 %v103
  %vm110 = vmor %vm108, %vm109
  %v111 = vsel %vm110, %v103, %v107
  %v112 = vand.u32 2147483647, %v102
  %vm113 = vcmp.eq.f32.partialorder %v112, 8.507059e+37
  %v114 = vand.u32 %v102, 2147483648
  %v115 = vor.u32 1.1754944e-38, %v114
  %v116 = vsel %vm113, %v115, %v111
  %v117 = vmul.f32 1.0, %v116
  %v118 = vtanh.pop %v98
  %120 = vrot.lane.b32.xlu0 %v73, 32
  %v121 = vpop.permute.xlu0 %120
  %v123 = vmul.f32 %v117, %v121
  %125 = vrot.lane.b32.xlu0 %v118, 64
  %v126 = vpop.permute.xlu0 %125
  %v128 = vmul.f32 %v117, %v126
  %130 = vrot.lane.b32.xlu0 %v128, 32
  %v131 = vpop.permute.xlu0 %130
  %v133 = vadd.f32 %v123, %v131
  %v134 = vtanh.pop %v133
  %136 = vrot.lane.b32.xlu0 %v134, 64
  %v137 = vpop.permute.xlu0 %136
  %v139 = vmul.f32 %v117, %v137
  %141 = vrot.lane.b32.xlu0 %v139, 32
  %v142 = vpop.permute.xlu0 %141
  %144 = vst.msk [vmem:[#allocation2] sm:$0xff] %vm74, %v142
  %v145 = vsel %vm74, %v142, 0
  %147 = vmatpush.msra.mxu0 0.0
  %148 = vmatpush.msra.mxu0 0.0
  %149 = vmatpush.msra.mxu0 0.0
  %150 = vmatpush.msra.mxu0 0.0
  %151 = vmatpush.msra.mxu0 0.0
  %152 = vmatpush.msra.mxu0 0.0
  %153 = vmatpush.msra.mxu0 0.0
  %154 = vmatpush.msra.mxu0 0.0
  %155 = vmatpush.msra.mxu0 0.0
  %156 = vmatpush.msra.mxu0 0.0
  %157 = vmatpush.msra.mxu0 0.0
  %158 = vmatpush.msra.mxu0 0.0
  %159 = vmatpush.msra.mxu0 %v71
  %160 = vmatpush.msra.mxu0 %v70
  %161 = vmatpush.msra.mxu0 %v69
  %162 = vmatpush.msra.mxu0 %v68
  %163 = vmatmul.f32.gmra.mxu0 %v145
  %v164 = vpop.f32.mrf.mxu0
  %v165 = vadd.f32 0.0, %v164
  %166 = vdwg.mxu0
  %v167 = vadd.f32 %v66, %v165
  %v168 = vxor.u32 %v167, 2147483648
  %v169 = vmul.f32 %v168, 1.442695
  %v170 = vpow.pop %v169
  %v171 = vadd.f32 %v170, 1.0
  %v172 = vrcp.pop %v171
  %v173 = vmul.f32 %v171, %v172
  %v174 = vsub.f32 1.0, %v173
  %v175 = vmul.f32 %v172, %v174
  %v176 = vadd.f32 %v172, %v175
  %vm177 = vweird.f32 %v171
  %vm178 = vweird.f32 %v172
  %vm179 = vmor %vm177, %vm178
  %v180 = vsel %vm179, %v172, %v176
  %v181 = vand.u32 2147483647, %v171
  %vm182 = vcmp.eq.f32.partialorder %v181, 8.507059e+37
  %v183 = vand.u32 %v171, 2147483648
  %v184 = vor.u32 1.1754944e-38, %v183
  %v185 = vsel %vm182, %v184, %v180
  %v186 = vmul.f32 1.0, %v185
  %v187 = vtanh.pop %v167
  %v188 = vmul.f32 %v186, %v133
  %190 = vrot.lane.b32.xlu0 %v187, 64
  %v191 = vpop.permute.xlu0 %190
  %v193 = vmul.f32 %v186, %v191
  %195 = vrot.lane.b32.xlu0 %v193, 32
  %v196 = vpop.permute.xlu0 %195
  %v198 = vadd.f32 %v188, %v196
  %v199 = vtanh.pop %v198
  %201 = vrot.lane.b32.xlu0 %v199, 64
  %v202 = vpop.permute.xlu0 %201
  %v204 = vmul.f32 %v186, %v202
  %206 = vrot.lane.b32.xlu0 %v204, 32
  %v207 = vpop.permute.xlu0 %206
  %209 = vst.msk [vmem:[#allocation2 + $0x8] sm:$0xff] %vm74, %v207
  %v210 = vsel %vm74, %v207, 0
  %212 = vmatpush.msra.mxu0 0.0
  %213 = vmatpush.msra.mxu0 0.0
  %214 = vmatpush.msra.mxu0 0.0
  %215 = vmatpush.msra.mxu0 0.0
  %216 = vmatpush.msra.mxu0 0.0
  %217 = vmatpush.msra.mxu0 0.0
  %218 = vmatpush.msra.mxu0 0.0
  %219 = vmatpush.msra.mxu0 0.0
  %220 = vmatpush.msra.mxu0 0.0
  %221 = vmatpush.msra.mxu0 0.0
  %222 = vmatpush.msra.mxu0 0.0
  %223 = vmatpush.msra.mxu0 0.0
  %224 = vmatpush.msra.mxu0 %v71
  %225 = vmatpush.msra.mxu0 %v70
  %226 = vmatpush.msra.mxu0 %v69
  %227 = vmatpush.msra.mxu0 %v68
  %228 = vmatmul.f32.gmra.mxu0 %v210
  %v229 = vpop.f32.mrf.mxu0
  %v230 = vadd.f32 0.0, %v229
  %231 = vdwg.mxu0
  %v232 = vadd.f32 %v66, %v230
  %v233 = vxor.u32 %v232, 2147483648
  %v234 = vmul.f32 %v233, 1.442695
  %v235 = vpow.pop %v234
  %v236 = vadd.f32 %v235, 1.0
  %v237 = vrcp.pop %v236
  %v238 = vmul.f32 %v236, %v237
  %v239 = vsub.f32 1.0, %v238
  %v240 = vmul.f32 %v237, %v239
  %v241 = vadd.f32 %v237, %v240
  %vm242 = vweird.f32 %v236
  %vm243 = vweird.f32 %v237
  %vm244 = vmor %vm242, %vm243
  %v245 = vsel %vm244, %v237, %v241
  %v246 = vand.u32 2147483647, %v236
  %vm247 = vcmp.eq.f32.partialorder %v246, 8.507059e+37
  %v248 = vand.u32 %v236, 2147483648
  %v249 = vor.u32 1.1754944e-38, %v248
  %v250 = vsel %vm247, %v249, %v245
  %v251 = vmul.f32 1.0, %v250
  %v252 = vtanh.pop %v232
  %v253 = vmul.f32 %v251, %v198
  %255 = vrot.lane.b32.xlu0 %v252, 64
  %v256 = vpop.permute.xlu0 %255
  %v258 = vmul.f32 %v251, %v256
  %260 = vrot.lane.b32.xlu0 %v258, 32
  %v261 = vpop.permute.xlu0 %260
  %v263 = vadd.f32 %v253, %v261
  %v264 = vtanh.pop %v263
  %266 = vrot.lane.b32.xlu0 %v264, 64
  %v267 = vpop.permute.xlu0 %266
  %v269 = vmul.f32 %v251, %v267
  %271 = vrot.lane.b32.xlu0 %v269, 32
  %v272 = vpop.permute.xlu0 %271
  %274 = vst.msk [vmem:[#allocation2 + $0x10] sm:$0xff] %vm74, %v272
  %v275 = vsel %vm74, %v272, 0
  %277 = vmatpush.msra.mxu0 0.0
  %278 = vmatpush.msra.mxu0 0.0
  %279 = vmatpush.msra.mxu0 0.0
  %280 = vmatpush.msra.mxu0 0.0
  %281 = vmatpush.msra.mxu0 0.0
  %282 = vmatpush.msra.mxu0 0.0
  %283 = vmatpush.msra.mxu0 0.0
  %284 = vmatpush.msra.mxu0 0.0
  %285 = vmatpush.msra.mxu0 0.0
  %286 = vmatpush.msra.mxu0 0.0
  %287 = vmatpush.msra.mxu0 0.0
  %288 = vmatpush.msra.mxu0 0.0
  %289 = vmatpush.msra.mxu0 %v71
  %290 = vmatpush.msra.mxu0 %v70
  %291 = vmatpush.msra.mxu0 %v69
  %292 = vmatpush.msra.mxu0 %v68
  %293 = vmatmul.f32.gmra.mxu0 %v275
  %v294 = vpop.f32.mrf.mxu0
  %v295 = vadd.f32 0.0, %v294
  %296 = vdwg.mxu0
  %v297 = vadd.f32 %v66, %v295
  %v298 = vxor.u32 %v297, 2147483648
  %v299 = vmul.f32 %v298, 1.442695
  %v300 = vpow.pop %v299
  %v301 = vadd.f32 %v300, 1.0
  %v302 = vrcp.pop %v301
  %v303 = vmul.f32 %v301, %v302
  %v304 = vsub.f32 1.0, %v303
  %v305 = vmul.f32 %v302, %v304
  %v306 = vadd.f32 %v302, %v305
  %vm307 = vweird.f32 %v301
  %vm308 = vweird.f32 %v302
  %vm309 = vmor %vm307, %vm308
  %v310 = vsel %vm309, %v302, %v306
  %v311 = vand.u32 2147483647, %v301
  %vm312 = vcmp.eq.f32.partialorder %v311, 8.507059e+37
  %v313 = vand.u32 %v301, 2147483648
  %v314 = vor.u32 1.1754944e-38, %v313
  %v315 = vsel %vm312, %v314, %v310
  %v316 = vmul.f32 1.0, %v315
  %v317 = vtanh.pop %v297
  %v318 = vmul.f32 %v316, %v263
  %320 = vrot.lane.b32.xlu0 %v317, 64
  %v321 = vpop.permute.xlu0 %320
  %v323 = vmul.f32 %v316, %v321
  %325 = vrot.lane.b32.xlu0 %v323, 32
  %v326 = vpop.permute.xlu0 %325
  %v328 = vadd.f32 %v318, %v326
  %v329 = vtanh.pop %v328
  %331 = vrot.lane.b32.xlu0 %v329, 64
  %v332 = vpop.permute.xlu0 %331
  %v334 = vmul.f32 %v316, %v332
  %336 = vrot.lane.b32.xlu0 %v334, 32
  %v337 = vpop.permute.xlu0 %336
  %339 = vst.msk [vmem:[#allocation2 + $0x18] sm:$0xff] %vm74, %v337
  %v340 = vsel %vm74, %v337, 0
  %342 = vmatpush.msra.mxu0 0.0
  %343 = vmatpush.msra.mxu0 0.0
  %344 = vmatpush.msra.mxu0 0.0
  %345 = vmatpush.msra.mxu0 0.0
  %346 = vmatpush.msra.mxu0 0.0
  %347 = vmatpush.msra.mxu0 0.0
  %348 = vmatpush.msra.mxu0 0.0
  %349 = vmatpush.msra.mxu0 0.0
  %350 = vmatpush.msra.mxu0 0.0
  %351 = vmatpush.msra.mxu0 0.0
  %352 = vmatpush.msra.mxu0 0.0
  %353 = vmatpush.msra.mxu0 0.0
  %354 = vmatpush.msra.mxu0 %v71
  %355 = vmatpush.msra.mxu0 %v70
  %356 = vmatpush.msra.mxu0 %v69
  %357 = vmatpush.msra.mxu0 %v68
  %358 = vmatmul.f32.gmra.mxu0 %v340
  %v359 = vpop.f32.mrf.mxu0
  %v360 = vadd.f32 0.0, %v359
  %361 = vdwg.mxu0
  %v362 = vadd.f32 %v66, %v360
  %v363 = vxor.u32 %v362, 2147483648
  %v364 = vmul.f32 %v363, 1.442695
  %v365 = vpow.pop %v364
  %v366 = vadd.f32 %v365, 1.0
  %v367 = vrcp.pop %v366
  %v368 = vmul.f32 %v366, %v367
  %v369 = vsub.f32 1.0, %v368
  %v370 = vmul.f32 %v367, %v369
  %v371 = vadd.f32 %v367, %v370
  %vm372 = vweird.f32 %v366
  %vm373 = vweird.f32 %v367
  %vm374 = vmor %vm372, %vm373
  %v375 = vsel %vm374, %v367, %v371
  %v376 = vand.u32 2147483647, %v366
  %vm377 = vcmp.eq.f32.partialorder %v376, 8.507059e+37
  %v378 = vand.u32 %v366, 2147483648
  %v379 = vor.u32 1.1754944e-38, %v378
  %v380 = vsel %vm377, %v379, %v375
  %v381 = vmul.f32 1.0, %v380
  %v382 = vtanh.pop %v362
  %v383 = vmul.f32 %v381, %v328
  %385 = vrot.lane.b32.xlu0 %v382, 64
  %v386 = vpop.permute.xlu0 %385
  %v388 = vmul.f32 %v381, %v386
  %390 = vrot.lane.b32.xlu0 %v388, 32
  %v391 = vpop.permute.xlu0 %390
  %v393 = vadd.f32 %v383, %v391
  %v394 = vtanh.pop %v393
  %396 = vrot.lane.b32.xlu0 %v394, 64
  %v397 = vpop.permute.xlu0 %396
  %v399 = vmul.f32 %v381, %v397
  %401 = vrot.lane.b32.xlu0 %v399, 32
  %v402 = vpop.permute.xlu0 %401
  %404 = vst.msk [vmem:[#allocation2 + $0x20] sm:$0xff] %vm74, %v402
  %v405 = vsel %vm74, %v402, 0
  %407 = vmatpush.msra.mxu0 0.0
  %408 = vmatpush.msra.mxu0 0.0
  %409 = vmatpush.msra.mxu0 0.0
  %410 = vmatpush.msra.mxu0 0.0
  %411 = vmatpush.msra.mxu0 0.0
  %412 = vmatpush.msra.mxu0 0.0
  %413 = vmatpush.msra.mxu0 0.0
  %414 = vmatpush.msra.mxu0 0.0
  %415 = vmatpush.msra.mxu0 0.0
  %416 = vmatpush.msra.mxu0 0.0
  %417 = vmatpush.msra.mxu0 0.0
  %418 = vmatpush.msra.mxu0 0.0
  %419 = vmatpush.msra.mxu0 %v71
  %420 = vmatpush.msra.mxu0 %v70
  %421 = vmatpush.msra.mxu0 %v69
  %422 = vmatpush.msra.mxu0 %v68
  %423 = vmatmul.f32.gmra.mxu0 %v405
  %v424 = vpop.f32.mrf.mxu0
  %v425 = vadd.f32 0.0, %v424
  %426 = vdwg.mxu0
  %v427 = vadd.f32 %v66, %v425
  %v428 = vxor.u32 %v427, 2147483648
  %v429 = vmul.f32 %v428, 1.442695
  %v430 = vpow.pop %v429
  %v431 = vadd.f32 %v430, 1.0
  %v432 = vrcp.pop %v431
  %v433 = vmul.f32 %v431, %v432
  %v434 = vsub.f32 1.0, %v433
  %v435 = vmul.f32 %v432, %v434
  %v436 = vadd.f32 %v432, %v435
  %vm437 = vweird.f32 %v431
  %vm438 = vweird.f32 %v432
  %vm439 = vmor %vm437, %vm438
  %v440 = vsel %vm439, %v432, %v436
  %v441 = vand.u32 2147483647, %v431
  %vm442 = vcmp.eq.f32.partialorder %v441, 8.507059e+37
  %v443 = vand.u32 %v431, 2147483648
  %v444 = vor.u32 1.1754944e-38, %v443
  %v445 = vsel %vm442, %v444, %v440
  %v446 = vmul.f32 1.0, %v445
  %v447 = vtanh.pop %v427
  %v448 = vmul.f32 %v446, %v393
  %450 = vrot.lane.b32.xlu0 %v447, 64
  %v451 = vpop.permute.xlu0 %450
  %v453 = vmul.f32 %v446, %v451
  %455 = vrot.lane.b32.xlu0 %v453, 32
  %v456 = vpop.permute.xlu0 %455
  %v458 = vadd.f32 %v448, %v456
  %v459 = vtanh.pop %v458
  %461 = vrot.lane.b32.xlu0 %v459, 64
  %v462 = vpop.permute.xlu0 %461
  %v464 = vmul.f32 %v446, %v462
  %466 = vrot.lane.b32.xlu0 %v464, 32
  %v467 = vpop.permute.xlu0 %466
  %469 = vst.msk [vmem:[#allocation2 + $0x28] sm:$0xff] %vm74, %v467
  %v470 = vsel %vm74, %v467, 0
  %472 = vmatpush.msra.mxu0 0.0
  %473 = vmatpush.msra.mxu0 0.0
  %474 = vmatpush.msra.mxu0 0.0
  %475 = vmatpush.msra.mxu0 0.0
  %476 = vmatpush.msra.mxu0 0.0
  %477 = vmatpush.msra.mxu0 0.0
  %478 = vmatpush.msra.mxu0 0.0
  %479 = vmatpush.msra.mxu0 0.0
  %480 = vmatpush.msra.mxu0 0.0
  %481 = vmatpush.msra.mxu0 0.0
  %482 = vmatpush.msra.mxu0 0.0
  %483 = vmatpush.msra.mxu0 0.0
  %484 = vmatpush.msra.mxu0 %v71
  %485 = vmatpush.msra.mxu0 %v70
  %486 = vmatpush.msra.mxu0 %v69
  %487 = vmatpush.msra.mxu0 %v68
  %488 = vmatmul.f32.gmra.mxu0 %v470
  %v489 = vpop.f32.mrf.mxu0
  %v490 = vadd.f32 0.0, %v489
  %491 = vdwg.mxu0
  %v492 = vadd.f32 %v66, %v490
  %v493 = vxor.u32 %v492, 2147483648
  %v494 = vmul.f32 %v493, 1.442695
  %v495 = vpow.pop %v494
  %v496 = vadd.f32 %v495, 1.0
  %v497 = vrcp.pop %v496
  %v498 = vmul.f32 %v496, %v497
  %v499 = vsub.f32 1.0, %v498
  %v500 = vmul.f32 %v497, %v499
  %v501 = vadd.f32 %v497, %v500
  %vm502 = vweird.f32 %v496
  %vm503 = vweird.f32 %v497
  %vm504 = vmor %vm502, %vm503
  %v505 = vsel %vm504, %v497, %v501
  %v506 = vand.u32 2147483647, %v496
  %vm507 = vcmp.eq.f32.partialorder %v506, 8.507059e+37
  %v508 = vand.u32 %v496, 2147483648
  %v509 = vor.u32 1.1754944e-38, %v508
  %v510 = vsel %vm507, %v509, %v505
  %v511 = vmul.f32 1.0, %v510
  %v512 = vtanh.pop %v492
  %v513 = vmul.f32 %v511, %v458
  %515 = vrot.lane.b32.xlu0 %v512, 64
  %v516 = vpop.permute.xlu0 %515
  %v518 = vmul.f32 %v511, %v516
  %520 = vrot.lane.b32.xlu0 %v518, 32
  %v521 = vpop.permute.xlu0 %520
  %v523 = vadd.f32 %v513, %v521
  %v524 = vtanh.pop %v523
  %526 = vrot.lane.b32.xlu0 %v524, 64
  %v527 = vpop.permute.xlu0 %526
  %v529 = vmul.f32 %v511, %v527
  %531 = vrot.lane.b32.xlu0 %v529, 32
  %v532 = vpop.permute.xlu0 %531
  %534 = vst.msk [vmem:[#allocation2 + $0x30] sm:$0xff] %vm74, %v532
  %v535 = vsel %vm74, %v532, 0
  %537 = vmatpush.msra.mxu0 0.0
  %538 = vmatpush.msra.mxu0 0.0
  %539 = vmatpush.msra.mxu0 0.0
  %540 = vmatpush.msra.mxu0 0.0
  %541 = vmatpush.msra.mxu0 0.0
  %542 = vmatpush.msra.mxu0 0.0
  %543 = vmatpush.msra.mxu0 0.0
  %544 = vmatpush.msra.mxu0 0.0
  %545 = vmatpush.msra.mxu0 0.0
  %546 = vmatpush.msra.mxu0 0.0
  %547 = vmatpush.msra.mxu0 0.0
  %548 = vmatpush.msra.mxu0 0.0
  %549 = vmatpush.msra.mxu0 %v71
  %550 = vmatpush.msra.mxu0 %v70
  %551 = vmatpush.msra.mxu0 %v69
  %552 = vmatpush.msra.mxu0 %v68
  %553 = vmatmul.f32.gmra.mxu0 %v535
  %v554 = vpop.f32.mrf.mxu0
  %v555 = vadd.f32 0.0, %v554
  %556 = vdwg.mxu0
  %v557 = vadd.f32 %v66, %v555
  %v558 = vxor.u32 %v557, 2147483648
  %v559 = vmul.f32 %v558, 1.442695
  %v560 = vpow.pop %v559
  %v561 = vadd.f32 %v560, 1.0
  %v562 = vrcp.pop %v561
  %v563 = vmul.f32 %v561, %v562
  %v564 = vsub.f32 1.0, %v563
  %v565 = vmul.f32 %v562, %v564
  %v566 = vadd.f32 %v562, %v565
  %vm567 = vweird.f32 %v561
  %vm568 = vweird.f32 %v562
  %vm569 = vmor %vm567, %vm568
  %v570 = vsel %vm569, %v562, %v566
  %v571 = vand.u32 2147483647, %v561
  %vm572 = vcmp.eq.f32.partialorder %v571, 8.507059e+37
  %v573 = vand.u32 %v561, 2147483648
  %v574 = vor.u32 1.1754944e-38, %v573
  %v575 = vsel %vm572, %v574, %v570
  %v576 = vmul.f32 1.0, %v575
  %v577 = vtanh.pop %v557
  %v578 = vmul.f32 %v576, %v523
  %580 = vrot.lane.b32.xlu0 %v577, 64
  %v581 = vpop.permute.xlu0 %580
  %v583 = vmul.f32 %v576, %v581
  %585 = vrot.lane.b32.xlu0 %v583, 32
  %v586 = vpop.permute.xlu0 %585
  %v588 = vadd.f32 %v578, %v586
  %v589 = vtanh.pop %v588
  %591 = vrot.lane.b32.xlu0 %v589, 64
  %v592 = vpop.permute.xlu0 %591
  %v594 = vmul.f32 %v576, %v592
  %596 = vrot.lane.b32.xlu0 %v594, 32
  %v597 = vpop.permute.xlu0 %596
  %599 = vst.msk [vmem:[#allocation2 + $0x38] sm:$0xff] %vm74, %v597
  %v600 = vld [vmem:[#allocation2] sm:$0xff]
  %v601 = vld [vmem:[#allocation2 + $0x8] sm:$0xff]
  %v602 = vld [vmem:[#allocation2 + $0x10] sm:$0xff]
  %v603 = vld [vmem:[#allocation2 + $0x18] sm:$0xff]
  %v604 = vld [vmem:[#allocation2 + $0x20] sm:$0xff]
  %v605 = vld [vmem:[#allocation2 + $0x28] sm:$0xff]
  %v606 = vld [vmem:[#allocation2 + $0x30] sm:$0xff]
  %v607 = vld [vmem:[#allocation2 + $0x38] sm:$0xff]
  %v608 = vld [vmem:[%s6] sm:$0xff]
  %v609 = vld [vmem:[%s6 + $0x8] sm:$0xff]
  %v610 = vld [vmem:[%s6 + $0x10] sm:$0xff]
  %v611 = vld [vmem:[%s6 + $0x18] sm:$0xff]
  %v612 = vld [vmem:[%s8] sm:$0x1]
  %v614 = vperm.slane %v612, 0
  %v617 = vsel %vm74, %v600, 0
  %v620 = vsel %vm74, %v601, 0
  %v623 = vsel %vm74, %v602, 0
  %v626 = vsel %vm74, %v603, 0
  %v629 = vsel %vm74, %v604, 0
  %v632 = vsel %vm74, %v605, 0
  %v635 = vsel %vm74, %v606, 0
  %v638 = vsel %vm74, %v607, 0
  %640 = vmatpush.msra.mxu0 0.0
  %641 = vmatpush.msra.mxu0 0.0
  %642 = vmatpush.msra.mxu0 0.0
  %643 = vmatpush.msra.mxu0 0.0
  %644 = vmatpush.msra.mxu0 0.0
  %645 = vmatpush.msra.mxu0 0.0
  %646 = vmatpush.msra.mxu0 0.0
  %647 = vmatpush.msra.mxu0 0.0
  %648 = vmatpush.msra.mxu0 0.0
  %649 = vmatpush.msra.mxu0 0.0
  %650 = vmatpush.msra.mxu0 0.0
  %651 = vmatpush.msra.mxu0 0.0
  %652 = vmatpush.msra.mxu0 %v611
  %653 = vmatpush.msra.mxu0 %v610
  %654 = vmatpush.msra.mxu0 %v609
  %655 = vmatpush.msra.mxu0 %v608
  %656 = vmatmul.f32.gmra.mxu0 %v617
  %v657 = vpop.f32.mrf.mxu0
  %v658 = vadd.f32 %v614, %v657
  %659 = vmatmul.f32.gmra.mxu0 %v620
  %v660 = vpop.f32.mrf.mxu0
  %v661 = vadd.f32 %v614, %v660
  %662 = vmatmul.f32.gmra.mxu0 %v623
  %v663 = vpop.f32.mrf.mxu0
  %v664 = vadd.f32 %v614, %v663
  %665 = vmatmul.f32.gmra.mxu0 %v626
  %v666 = vpop.f32.mrf.mxu0
  %v667 = vadd.f32 %v614, %v666
  %668 = vmatmul.f32.gmra.mxu0 %v629
  %v669 = vpop.f32.mrf.mxu0
  %v670 = vadd.f32 %v614, %v669
  %671 = vmatmul.f32.gmra.mxu0 %v632
  %v672 = vpop.f32.mrf.mxu0
  %v673 = vadd.f32 %v614, %v672
  %674 = vmatmul.f32.gmra.mxu0 %v635
  %v675 = vpop.f32.mrf.mxu0
  %v676 = vadd.f32 %v614, %v675
  %677 = vmatmul.f32.gmra.mxu0 %v638
  %v678 = vpop.f32.mrf.mxu0
  %v679 = vadd.f32 %v614, %v678
  %680 = vdwg.mxu0
  %681 = vst [vmem:[#allocation3] sm:$0xff] %v658
  %682 = vst [vmem:[#allocation3 + $0x8] sm:$0xff] %v661
  %683 = vst [vmem:[#allocation3 + $0x10] sm:$0xff] %v664
  %684 = vst [vmem:[#allocation3 + $0x18] sm:$0xff] %v667
  %685 = vst [vmem:[#allocation3 + $0x20] sm:$0xff] %v670
  %686 = vst [vmem:[#allocation3 + $0x28] sm:$0xff] %v673
  %687 = vst [vmem:[#allocation3 + $0x30] sm:$0xff] %v676
  %688 = vst [vmem:[#allocation3 + $0x38] sm:$0xff] %v679
  %v689 = vld [vmem:[%s7] sm:$0xff]
  %v690 = vld [vmem:[%s7 + $0x8] sm:$0xff]
  %v691 = vld [vmem:[%s7 + $0x10] sm:$0xff]
  %v692 = vld [vmem:[%s7 + $0x18] sm:$0xff]
  %s693 = scalar_lea.vmem %s1, 8
  %v694 = vld [vmem:[%s693] sm:$0xff]
  %s695 = scalar_lea.vmem %s2, 8
  %v696 = vld [vmem:[%s695] sm:$0xff]
  %v698 = vsel %vm74, %v694, 0
  %700 = vmatpush.msra.mxu0 0.0
  %701 = vmatpush.msra.mxu0 0.0
  %702 = vmatpush.msra.mxu0 0.0
  %703 = vmatpush.msra.mxu0 0.0
  %704 = vmatpush.msra.mxu0 0.0
  %705 = vmatpush.msra.mxu0 0.0
  %706 = vmatpush.msra.mxu0 0.0
  %707 = vmatpush.msra.mxu0 0.0
  %708 = vmatpush.msra.mxu0 0.0
  %709 = vmatpush.msra.mxu0 0.0
  %710 = vmatpush.msra.mxu0 0.0
  %711 = vmatpush.msra.mxu0 0.0
  %712 = vmatpush.msra.mxu0 %v692
  %713 = vmatpush.msra.mxu0 %v691
  %714 = vmatpush.msra.mxu0 %v690
  %715 = vmatpush.msra.mxu0 %v689
  %716 = vmatmul.f32.gmra.mxu0 %v698
  %v717 = vpop.f32.mrf.mxu0
  %v718 = vadd.f32 0.0, %v717
  %719 = vdwg.mxu0
  %v720 = vld [vmem:[#allocation3] sm:$0xff]
  %v721 = vadd.f32 %v720, %v718
  %v722 = vxor.u32 %v721, 2147483648
  %v723 = vmul.f32 %v722, 1.442695
  %v724 = vpow.pop %v723
  %v725 = vadd.f32 %v724, 1.0
  %v726 = vrcp.pop %v725
  %v727 = vmul.f32 %v725, %v726
  %v728 = vsub.f32 1.0, %v727
  %v729 = vmul.f32 %v726, %v728
  %v730 = vadd.f32 %v726, %v729
  %vm731 = vweird.f32 %v725
  %vm732 = vweird.f32 %v726
  %vm733 = vmor %vm731, %vm732
  %v734 = vsel %vm733, %v726, %v730
  %v735 = vand.u32 2147483647, %v725
  %vm736 = vcmp.eq.f32.partialorder %v735, 8.507059e+37
  %v737 = vand.u32 %v725, 2147483648
  %v738 = vor.u32 1.1754944e-38, %v737
  %v739 = vsel %vm736, %v738, %v734
  %v740 = vmul.f32 1.0, %v739
  %v741 = vtanh.pop %v721
  %743 = vrot.lane.b32.xlu0 %v696, 32
  %v744 = vpop.permute.xlu0 %743
  %v746 = vmul.f32 %v740, %v744
  %748 = vrot.lane.b32.xlu0 %v741, 64
  %v749 = vpop.permute.xlu0 %748
  %v751 = vmul.f32 %v740, %v749
  %753 = vrot.lane.b32.xlu0 %v751, 32
  %v754 = vpop.permute.xlu0 %753
  %v756 = vadd.f32 %v746, %v754
  %v757 = vtanh.pop %v756
  %759 = vrot.lane.b32.xlu0 %v757, 64
  %v760 = vpop.permute.xlu0 %759
  %v762 = vmul.f32 %v740, %v760
  %764 = vrot.lane.b32.xlu0 %v762, 32
  %v765 = vpop.permute.xlu0 %764
  %767 = vst.msk [vmem:[#allocation2] sm:$0xff] %vm74, %v765
  %v768 = vsel %vm74, %v765, 0
  %770 = vmatpush.msra.mxu0 0.0
  %771 = vmatpush.msra.mxu0 0.0
  %772 = vmatpush.msra.mxu0 0.0
  %773 = vmatpush.msra.mxu0 0.0
  %774 = vmatpush.msra.mxu0 0.0
  %775 = vmatpush.msra.mxu0 0.0
  %776 = vmatpush.msra.mxu0 0.0
  %777 = vmatpush.msra.mxu0 0.0
  %778 = vmatpush.msra.mxu0 0.0
  %779 = vmatpush.msra.mxu0 0.0
  %780 = vmatpush.msra.mxu0 0.0
  %781 = vmatpush.msra.mxu0 0.0
  %782 = vmatpush.msra.mxu0 %v692
  %783 = vmatpush.msra.mxu0 %v691
  %784 = vmatpush.msra.mxu0 %v690
  %785 = vmatpush.msra.mxu0 %v689
  %786 = vmatmul.f32.gmra.mxu0 %v768
  %v787 = vpop.f32.mrf.mxu0
  %v788 = vadd.f32 0.0, %v787
  %789 = vdwg.mxu0
  %v790 = vld [vmem:[#allocation3 + $0x8] sm:$0xff]
  %v791 = vadd.f32 %v790, %v788
  %v792 = vxor.u32 %v791, 2147483648
  %v793 = vmul.f32 %v792, 1.442695
  %v794 = vpow.pop %v793
  %v795 = vadd.f32 %v794, 1.0
  %v796 = vrcp.pop %v795
  %v797 = vmul.f32 %v795, %v796
  %v798 = vsub.f32 1.0, %v797
  %v799 = vmul.f32 %v796, %v798
  %v800 = vadd.f32 %v796, %v799
  %vm801 = vweird.f32 %v795
  %vm802 = vweird.f32 %v796
  %vm803 = vmor %vm801, %vm802
  %v804 = vsel %vm803, %v796, %v800
  %v805 = vand.u32 2147483647, %v795
  %vm806 = vcmp.eq.f32.partialorder %v805, 8.507059e+37
  %v807 = vand.u32 %v795, 2147483648
  %v808 = vor.u32 1.1754944e-38, %v807
  %v809 = vsel %vm806, %v808, %v804
  %v810 = vmul.f32 1.0, %v809
  %v811 = vtanh.pop %v791
  %v812 = vmul.f32 %v810, %v756
  %814 = vrot.lane.b32.xlu0 %v811, 64
  %v815 = vpop.permute.xlu0 %814
  %v817 = vmul.f32 %v810, %v815
  %819 = vrot.lane.b32.xlu0 %v817, 32
  %v820 = vpop.permute.xlu0 %819
  %v822 = vadd.f32 %v812, %v820
  %v823 = vtanh.pop %v822
  %825 = vrot.lane.b32.xlu0 %v823, 64
  %v826 = vpop.permute.xlu0 %825
  %v828 = vmul.f32 %v810, %v826
  %830 = vrot.lane.b32.xlu0 %v828, 32
  %v831 = vpop.permute.xlu0 %830
  %833 = vst.msk [vmem:[#allocation2 + $0x8] sm:$0xff] %vm74, %v831
  %v834 = vsel %vm74, %v831, 0
  %836 = vmatpush.msra.mxu0 0.0
  %837 = vmatpush.msra.mxu0 0.0
  %838 = vmatpush.msra.mxu0 0.0
  %839 = vmatpush.msra.mxu0 0.0
  %840 = vmatpush.msra.mxu0 0.0
  %841 = vmatpush.msra.mxu0 0.0
  %842 = vmatpush.msra.mxu0 0.0
  %843 = vmatpush.msra.mxu0 0.0
  %844 = vmatpush.msra.mxu0 0.0
  %845 = vmatpush.msra.mxu0 0.0
  %846 = vmatpush.msra.mxu0 0.0
  %847 = vmatpush.msra.mxu0 0.0
  %848 = vmatpush.msra.mxu0 %v692
  %849 = vmatpush.msra.mxu0 %v691
  %850 = vmatpush.msra.mxu0 %v690
  %851 = vmatpush.msra.mxu0 %v689
  %852 = vmatmul.f32.gmra.mxu0 %v834
  %v853 = vpop.f32.mrf.mxu0
  %v854 = vadd.f32 0.0, %v853
  %855 = vdwg.mxu0
  %v856 = vld [vmem:[#allocation3 + $0x10] sm:$0xff]
  %v857 = vadd.f32 %v856, %v854
  %v858 = vxor.u32 %v857, 2147483648
  %v859 = vmul.f32 %v858, 1.442695
  %v860 = vpow.pop %v859
  %v861 = vadd.f32 %v860, 1.0
  %v862 = vrcp.pop %v861
  %v863 = vmul.f32 %v861, %v862
  %v864 = vsub.f32 1.0, %v863
  %v865 = vmul.f32 %v862, %v864
  %v866 = vadd.f32 %v862, %v865
  %vm867 = vweird.f32 %v861
  %vm868 = vweird.f32 %v862
  %vm869 = vmor %vm867, %vm868
  %v870 = vsel %vm869, %v862, %v866
  %v871 = vand.u32 2147483647, %v861
  %vm872 = vcmp.eq.f32.partialorder %v871, 8.507059e+37
  %v873 = vand.u32 %v861, 2147483648
  %v874 = vor.u32 1.1754944e-38, %v873
  %v875 = vsel %vm872, %v874, %v870
  %v876 = vmul.f32 1.0, %v875
  %v877 = vtanh.pop %v857
  %v878 = vmul.f32 %v876, %v822
  %880 = vrot.lane.b32.xlu0 %v877, 64
  %v881 = vpop.permute.xlu0 %880
  %v883 = vmul.f32 %v876, %v881
  %885 = vrot.lane.b32.xlu0 %v883, 32
  %v886 = vpop.permute.xlu0 %885
  %v888 = vadd.f32 %v878, %v886
  %v889 = vtanh.pop %v888
  %891 = vrot.lane.b32.xlu0 %v889, 64
  %v892 = vpop.permute.xlu0 %891
  %v894 = vmul.f32 %v876, %v892
  %896 = vrot.lane.b32.xlu0 %v894, 32
  %v897 = vpop.permute.xlu0 %896
  %899 = vst.msk [vmem:[#allocation2 + $0x10] sm:$0xff] %vm74, %v897
  %v900 = vsel %vm74, %v897, 0
  %902 = vmatpush.msra.mxu0 0.0
  %903 = vmatpush.msra.mxu0 0.0
  %904 = vmatpush.msra.mxu0 0.0
  %905 = vmatpush.msra.mxu0 0.0
  %906 = vmatpush.msra.mxu0 0.0
  %907 = vmatpush.msra.mxu0 0.0
  %908 = vmatpush.msra.mxu0 0.0
  %909 = vmatpush.msra.mxu0 0.0
  %910 = vmatpush.msra.mxu0 0.0
  %911 = vmatpush.msra.mxu0 0.0
  %912 = vmatpush.msra.mxu0 0.0
  %913 = vmatpush.msra.mxu0 0.0
  %914 = vmatpush.msra.mxu0 %v692
  %915 = vmatpush.msra.mxu0 %v691
  %916 = vmatpush.msra.mxu0 %v690
  %917 = vmatpush.msra.mxu0 %v689
  %918 = vmatmul.f32.gmra.mxu0 %v900
  %v919 = vpop.f32.mrf.mxu0
  %v920 = vadd.f32 0.0, %v919
  %921 = vdwg.mxu0
  %v922 = vld [vmem:[#allocation3 + $0x18] sm:$0xff]
  %v923 = vadd.f32 %v922, %v920
  %v924 = vxor.u32 %v923, 2147483648
  %v925 = vmul.f32 %v924, 1.442695
  %v926 = vpow.pop %v925
  %v927 = vadd.f32 %v926, 1.0
  %v928 = vrcp.pop %v927
  %v929 = vmul.f32 %v927, %v928
  %v930 = vsub.f32 1.0, %v929
  %v931 = vmul.f32 %v928, %v930
  %v932 = vadd.f32 %v928, %v931
  %vm933 = vweird.f32 %v927
  %vm934 = vweird.f32 %v928
  %vm935 = vmor %vm933, %vm934
  %v936 = vsel %vm935, %v928, %v932
  %v937 = vand.u32 2147483647, %v927
  %vm938 = vcmp.eq.f32.partialorder %v937, 8.507059e+37
  %v939 = vand.u32 %v927, 2147483648
  %v940 = vor.u32 1.1754944e-38, %v939
  %v941 = vsel %vm938, %v940, %v936
  %v942 = vmul.f32 1.0, %v941
  %v943 = vtanh.pop %v923
  %v944 = vmul.f32 %v942, %v888
  %946 = vrot.lane.b32.xlu0 %v943, 64
  %v947 = vpop.permute.xlu0 %946
  %v949 = vmul.f32 %v942, %v947
  %951 = vrot.lane.b32.xlu0 %v949, 32
  %v952 = vpop.permute.xlu0 %951
  %v954 = vadd.f32 %v944, %v952
  %v955 = vtanh.pop %v954
  %957 = vrot.lane.b32.xlu0 %v955, 64
  %v958 = vpop.permute.xlu0 %957
  %v960 = vmul.f32 %v942, %v958
  %962 = vrot.lane.b32.xlu0 %v960, 32
  %v963 = vpop.permute.xlu0 %962
  %965 = vst.msk [vmem:[#allocation2 + $0x18] sm:$0xff] %vm74, %v963
  %v966 = vsel %vm74, %v963, 0
  %968 = vmatpush.msra.mxu0 0.0
  %969 = vmatpush.msra.mxu0 0.0
  %970 = vmatpush.msra.mxu0 0.0
  %971 = vmatpush.msra.mxu0 0.0
  %972 = vmatpush.msra.mxu0 0.0
  %973 = vmatpush.msra.mxu0 0.0
  %974 = vmatpush.msra.mxu0 0.0
  %975 = vmatpush.msra.mxu0 0.0
  %976 = vmatpush.msra.mxu0 0.0
  %977 = vmatpush.msra.mxu0 0.0
  %978 = vmatpush.msra.mxu0 0.0
  %979 = vmatpush.msra.mxu0 0.0
  %980 = vmatpush.msra.mxu0 %v692
  %981 = vmatpush.msra.mxu0 %v691
  %982 = vmatpush.msra.mxu0 %v690
  %983 = vmatpush.msra.mxu0 %v689
  %984 = vmatmul.f32.gmra.mxu0 %v966
  %v985 = vpop.f32.mrf.mxu0
  %v986 = vadd.f32 0.0, %v985
  %987 = vdwg.mxu0
  %v988 = vld [vmem:[#allocation3 + $0x20] sm:$0xff]
  %v989 = vadd.f32 %v988, %v986
  %v990 = vxor.u32 %v989, 2147483648
  %v991 = vmul.f32 %v990, 1.442695
  %v992 = vpow.pop %v991
  %v993 = vadd.f32 %v992, 1.0
  %v994 = vrcp.pop %v993
  %v995 = vmul.f32 %v993, %v994
  %v996 = vsub.f32 1.0, %v995
  %v997 = vmul.f32 %v994, %v996
  %v998 = vadd.f32 %v994, %v997
  %vm999 = vweird.f32 %v993
  %vm1000 = vweird.f32 %v994
  %vm1001 = vmor %vm999, %vm1000
  %v1002 = vsel %vm1001, %v994, %v998
  %v1003 = vand.u32 2147483647, %v993
  %vm1004 = vcmp.eq.f32.partialorder %v1003, 8.507059e+37
  %v1005 = vand.u32 %v993, 2147483648
  %v1006 = vor.u32 1.1754944e-38, %v1005
  %v1007 = vsel %vm1004, %v1006, %v1002
  %v1008 = vmul.f32 1.0, %v1007
  %v1009 = vtanh.pop %v989
  %v1010 = vmul.f32 %v1008, %v954
  %1012 = vrot.lane.b32.xlu0 %v1009, 64
  %v1013 = vpop.permute.xlu0 %1012
  %v1015 = vmul.f32 %v1008, %v1013
  %1017 = vrot.lane.b32.xlu0 %v1015, 32
  %v1018 = vpop.permute.xlu0 %1017
  %v1020 = vadd.f32 %v1010, %v1018
  %v1021 = vtanh.pop %v1020
  %1023 = vrot.lane.b32.xlu0 %v1021, 64
  %v1024 = vpop.permute.xlu0 %1023
  %v1026 = vmul.f32 %v1008, %v1024
  %1028 = vrot.lane.b32.xlu0 %v1026, 32
  %v1029 = vpop.permute.xlu0 %1028
  %1031 = vst.msk [vmem:[#allocation2 + $0x20] sm:$0xff] %vm74, %v1029
  %v1032 = vsel %vm74, %v1029, 0
  %1034 = vmatpush.msra.mxu0 0.0
  %1035 = vmatpush.msra.mxu0 0.0
  %1036 = vmatpush.msra.mxu0 0.0
  %1037 = vmatpush.msra.mxu0 0.0
  %1038 = vmatpush.msra.mxu0 0.0
  %1039 = vmatpush.msra.mxu0 0.0
  %1040 = vmatpush.msra.mxu0 0.0
  %1041 = vmatpush.msra.mxu0 0.0
  %1042 = vmatpush.msra.mxu0 0.0
  %1043 = vmatpush.msra.mxu0 0.0
  %1044 = vmatpush.msra.mxu0 0.0
  %1045 = vmatpush.msra.mxu0 0.0
  %1046 = vmatpush.msra.mxu0 %v692
  %1047 = vmatpush.msra.mxu0 %v691
  %1048 = vmatpush.msra.mxu0 %v690
  %1049 = vmatpush.msra.mxu0 %v689
  %1050 = vmatmul.f32.gmra.mxu0 %v1032
  %v1051 = vpop.f32.mrf.mxu0
  %v1052 = vadd.f32 0.0, %v1051
  %1053 = vdwg.mxu0
  %v1054 = vld [vmem:[#allocation3 + $0x28] sm:$0xff]
  %v1055 = vadd.f32 %v1054, %v1052
  %v1056 = vxor.u32 %v1055, 2147483648
  %v1057 = vmul.f32 %v1056, 1.442695
  %v1058 = vpow.pop %v1057
  %v1059 = vadd.f32 %v1058, 1.0
  %v1060 = vrcp.pop %v1059
  %v1061 = vmul.f32 %v1059, %v1060
  %v1062 = vsub.f32 1.0, %v1061
  %v1063 = vmul.f32 %v1060, %v1062
  %v1064 = vadd.f32 %v1060, %v1063
  %vm1065 = vweird.f32 %v1059
  %vm1066 = vweird.f32 %v1060
  %vm1067 = vmor %vm1065, %vm1066
  %v1068 = vsel %vm1067, %v1060, %v1064
  %v1069 = vand.u32 2147483647, %v1059
  %vm1070 = vcmp.eq.f32.partialorder %v1069, 8.507059e+37
  %v1071 = vand.u32 %v1059, 2147483648
  %v1072 = vor.u32 1.1754944e-38, %v1071
  %v1073 = vsel %vm1070, %v1072, %v1068
  %v1074 = vmul.f32 1.0, %v1073
  %v1075 = vtanh.pop %v1055
  %v1076 = vmul.f32 %v1074, %v1020
  %1078 = vrot.lane.b32.xlu0 %v1075, 64
  %v1079 = vpop.permute.xlu0 %1078
  %v1081 = vmul.f32 %v1074, %v1079
  %1083 = vrot.lane.b32.xlu0 %v1081, 32
  %v1084 = vpop.permute.xlu0 %1083
  %v1086 = vadd.f32 %v1076, %v1084
  %v1087 = vtanh.pop %v1086
  %1089 = vrot.lane.b32.xlu0 %v1087, 64
  %v1090 = vpop.permute.xlu0 %1089
  %v1092 = vmul.f32 %v1074, %v1090
  %1094 = vrot.lane.b32.xlu0 %v1092, 32
  %v1095 = vpop.permute.xlu0 %1094
  %1097 = vst.msk [vmem:[#allocation2 + $0x28] sm:$0xff] %vm74, %v1095
  %v1098 = vsel %vm74, %v1095, 0
  %1100 = vmatpush.msra.mxu0 0.0
  %1101 = vmatpush.msra.mxu0 0.0
  %1102 = vmatpush.msra.mxu0 0.0
  %1103 = vmatpush.msra.mxu0 0.0
  %1104 = vmatpush.msra.mxu0 0.0
  %1105 = vmatpush.msra.mxu0 0.0
  %1106 = vmatpush.msra.mxu0 0.0
  %1107 = vmatpush.msra.mxu0 0.0
  %1108 = vmatpush.msra.mxu0 0.0
  %1109 = vmatpush.msra.mxu0 0.0
  %1110 = vmatpush.msra.mxu0 0.0
  %1111 = vmatpush.msra.mxu0 0.0
  %1112 = vmatpush.msra.mxu0 %v692
  %1113 = vmatpush.msra.mxu0 %v691
  %1114 = vmatpush.msra.mxu0 %v690
  %1115 = vmatpush.msra.mxu0 %v689
  %1116 = vmatmul.f32.gmra.mxu0 %v1098
  %v1117 = vpop.f32.mrf.mxu0
  %v1118 = vadd.f32 0.0, %v1117
  %1119 = vdwg.mxu0
  %v1120 = vld [vmem:[#allocation3 + $0x30] sm:$0xff]
  %v1121 = vadd.f32 %v1120, %v1118
  %v1122 = vxor.u32 %v1121, 2147483648
  %v1123 = vmul.f32 %v1122, 1.442695
  %v1124 = vpow.pop %v1123
  %v1125 = vadd.f32 %v1124, 1.0
  %v1126 = vrcp.pop %v1125
  %v1127 = vmul.f32 %v1125, %v1126
  %v1128 = vsub.f32 1.0, %v1127
  %v1129 = vmul.f32 %v1126, %v1128
  %v1130 = vadd.f32 %v1126, %v1129
  %vm1131 = vweird.f32 %v1125
  %vm1132 = vweird.f32 %v1126
  %vm1133 = vmor %vm1131, %vm1132
  %v1134 = vsel %vm1133, %v1126, %v1130
  %v1135 = vand.u32 2147483647, %v1125
  %vm1136 = vcmp.eq.f32.partialorder %v1135, 8.507059e+37
  %v1137 = vand.u32 %v1125, 2147483648
  %v1138 = vor.u32 1.1754944e-38, %v1137
  %v1139 = vsel %vm1136, %v1138, %v1134
  %v1140 = vmul.f32 1.0, %v1139
  %v1141 = vtanh.pop %v1121
  %v1142 = vmul.f32 %v1140, %v1086
  %1144 = vrot.lane.b32.xlu0 %v1141, 64
  %v1145 = vpop.permute.xlu0 %1144
  %v1147 = vmul.f32 %v1140, %v1145
  %1149 = vrot.lane.b32.xlu0 %v1147, 32
  %v1150 = vpop.permute.xlu0 %1149
  %v1152 = vadd.f32 %v1142, %v1150
  %v1153 = vtanh.pop %v1152
  %1155 = vrot.lane.b32.xlu0 %v1153, 64
  %v1156 = vpop.permute.xlu0 %1155
  %v1158 = vmul.f32 %v1140, %v1156
  %1160 = vrot.lane.b32.xlu0 %v1158, 32
  %v1161 = vpop.permute.xlu0 %1160
  %1163 = vst.msk [vmem:[#allocation2 + $0x30] sm:$0xff] %vm74, %v1161
  %v1164 = vsel %vm74, %v1161, 0
  %1166 = vmatpush.msra.mxu0 0.0
  %1167 = vmatpush.msra.mxu0 0.0
  %1168 = vmatpush.msra.mxu0 0.0
  %1169 = vmatpush.msra.mxu0 0.0
  %1170 = vmatpush.msra.mxu0 0.0
  %1171 = vmatpush.msra.mxu0 0.0
  %1172 = vmatpush.msra.mxu0 0.0
  %1173 = vmatpush.msra.mxu0 0.0
  %1174 = vmatpush.msra.mxu0 0.0
  %1175 = vmatpush.msra.mxu0 0.0
  %1176 = vmatpush.msra.mxu0 0.0
  %1177 = vmatpush.msra.mxu0 0.0
  %1178 = vmatpush.msra.mxu0 %v692
  %1179 = vmatpush.msra.mxu0 %v691
  %1180 = vmatpush.msra.mxu0 %v690
  %1181 = vmatpush.msra.mxu0 %v689
  %1182 = vmatmul.f32.gmra.mxu0 %v1164
  %v1183 = vpop.f32.mrf.mxu0
  %v1184 = vadd.f32 0.0, %v1183
  %1185 = vdwg.mxu0
  %v1186 = vld [vmem:[#allocation3 + $0x38] sm:$0xff]
  %v1187 = vadd.f32 %v1186, %v1184
  %v1188 = vxor.u32 %v1187, 2147483648
  %v1189 = vmul.f32 %v1188, 1.442695
  %v1190 = vpow.pop %v1189
  %v1191 = vadd.f32 %v1190, 1.0
  %v1192 = vrcp.pop %v1191
  %v1193 = vmul.f32 %v1191, %v1192
  %v1194 = vsub.f32 1.0, %v1193
  %v1195 = vmul.f32 %v1192, %v1194
  %v1196 = vadd.f32 %v1192, %v1195
  %vm1197 = vweird.f32 %v1191
  %vm1198 = vweird.f32 %v1192
  %vm1199 = vmor %vm1197, %vm1198
  %v1200 = vsel %vm1199, %v1192, %v1196
  %v1201 = vand.u32 2147483647, %v1191
  %vm1202 = vcmp.eq.f32.partialorder %v1201, 8.507059e+37
  %v1203 = vand.u32 %v1191, 2147483648
  %v1204 = vor.u32 1.1754944e-38, %v1203
  %v1205 = vsel %vm1202, %v1204, %v1200
  %v1206 = vmul.f32 1.0, %v1205
  %v1207 = vtanh.pop %v1187
  %v1208 = vmul.f32 %v1206, %v1152
  %1210 = vrot.lane.b32.xlu0 %v1207, 64
  %v1211 = vpop.permute.xlu0 %1210
  %v1213 = vmul.f32 %v1206, %v1211
  %1215 = vrot.lane.b32.xlu0 %v1213, 32
  %v1216 = vpop.permute.xlu0 %1215
  %v1218 = vadd.f32 %v1208, %v1216
  %v1219 = vtanh.pop %v1218
  %1221 = vrot.lane.b32.xlu0 %v1219, 64
  %v1222 = vpop.permute.xlu0 %1221
  %v1224 = vmul.f32 %v1206, %v1222
  %1226 = vrot.lane.b32.xlu0 %v1224, 32
  %v1227 = vpop.permute.xlu0 %1226
  %1229 = vst.msk [vmem:[#allocation2 + $0x38] sm:$0xff] %vm74, %v1227
  %v1230 = vld [vmem:[#allocation2] sm:$0xff]
  %v1231 = vld [vmem:[#allocation2 + $0x8] sm:$0xff]
  %v1232 = vld [vmem:[#allocation2 + $0x10] sm:$0xff]
  %v1233 = vld [vmem:[#allocation2 + $0x18] sm:$0xff]
  %v1234 = vld [vmem:[#allocation2 + $0x20] sm:$0xff]
  %v1235 = vld [vmem:[#allocation2 + $0x28] sm:$0xff]
  %v1236 = vld [vmem:[#allocation2 + $0x30] sm:$0xff]
  %v1237 = vld [vmem:[#allocation2 + $0x38] sm:$0xff]
  %v1238 = vld [vmem:[%s9] sm:$0xff]
  %v1239 = vld [vmem:[%s9 + $0x8] sm:$0xff]
  %v1240 = vld [vmem:[%s9 + $0x10] sm:$0xff]
  %v1241 = vld [vmem:[%s9 + $0x18] sm:$0xff]
  %v1242 = vld [vmem:[%s10] sm:$0x1]
  %v1244 = vperm.slane %v1242, 0
  %v1247 = vsel %vm74, %v1230, 0
  %v1250 = vsel %vm74, %v1231, 0
  %v1253 = vsel %vm74, %v1232, 0
  %v1256 = vsel %vm74, %v1233, 0
  %v1259 = vsel %vm74, %v1234, 0
  %v1262 = vsel %vm74, %v1235, 0
  %v1265 = vsel %vm74, %v1236, 0
  %v1268 = vsel %vm74, %v1237, 0
  %1270 = vmatpush.msra.mxu0 0.0
  %1271 = vmatpush.msra.mxu0 0.0
  %1272 = vmatpush.msra.mxu0 0.0
  %1273 = vmatpush.msra.mxu0 0.0
  %1274 = vmatpush.msra.mxu0 0.0
  %1275 = vmatpush.msra.mxu0 0.0
  %1276 = vmatpush.msra.mxu0 0.0
  %1277 = vmatpush.msra.mxu0 0.0
  %1278 = vmatpush.msra.mxu0 0.0
  %1279 = vmatpush.msra.mxu0 0.0
  %1280 = vmatpush.msra.mxu0 0.0
  %1281 = vmatpush.msra.mxu0 0.0
  %1282 = vmatpush.msra.mxu0 %v1241
  %1283 = vmatpush.msra.mxu0 %v1240
  %1284 = vmatpush.msra.mxu0 %v1239
  %1285 = vmatpush.msra.mxu0 %v1238
  %1286 = vmatmul.f32.gmra.mxu0 %v1247
  %v1287 = vpop.f32.mrf.mxu0
  %v1288 = vadd.f32 %v1244, %v1287
  %1289 = vmatmul.f32.gmra.mxu0 %v1250
  %v1290 = vpop.f32.mrf.mxu0
  %v1291 = vadd.f32 %v1244, %v1290
  %1292 = vmatmul.f32.gmra.mxu0 %v1253
  %v1293 = vpop.f32.mrf.mxu0
  %v1294 = vadd.f32 %v1244, %v1293
  %1295 = vmatmul.f32.gmra.mxu0 %v1256
  %v1296 = vpop.f32.mrf.mxu0
  %v1297 = vadd.f32 %v1244, %v1296
  %1298 = vmatmul.f32.gmra.mxu0 %v1259
  %v1299 = vpop.f32.mrf.mxu0
  %v1300 = vadd.f32 %v1244, %v1299
  %1301 = vmatmul.f32.gmra.mxu0 %v1262
  %v1302 = vpop.f32.mrf.mxu0
  %v1303 = vadd.f32 %v1244, %v1302
  %1304 = vmatmul.f32.gmra.mxu0 %v1265
  %v1305 = vpop.f32.mrf.mxu0
  %v1306 = vadd.f32 %v1244, %v1305
  %1307 = vmatmul.f32.gmra.mxu0 %v1268
  %v1308 = vpop.f32.mrf.mxu0
  %v1309 = vadd.f32 %v1244, %v1308
  %1310 = vdwg.mxu0
  %v1311 = vxor.u32 %v1288, 2147483648
  %v1312 = vxor.u32 %v1291, 2147483648
  %v1313 = vxor.u32 %v1294, 2147483648
  %v1314 = vxor.u32 %v1297, 2147483648
  %v1315 = vxor.u32 %v1300, 2147483648
  %v1316 = vxor.u32 %v1303, 2147483648
  %v1317 = vxor.u32 %v1306, 2147483648
  %v1318 = vxor.u32 %v1309, 2147483648
  %v1319 = vmul.f32 %v1311, 1.442695
  %v1320 = vpow.pop %v1319
  %v1321 = vmul.f32 %v1312, 1.442695
  %v1322 = vpow.pop %v1321
  %v1323 = vmul.f32 %v1313, 1.442695
  %v1324 = vpow.pop %v1323
  %v1325 = vmul.f32 %v1314, 1.442695
  %v1326 = vpow.pop %v1325
  %v1327 = vmul.f32 %v1315, 1.442695
  %v1328 = vpow.pop %v1327
  %v1329 = vmul.f32 %v1316, 1.442695
  %v1330 = vpow.pop %v1329
  %v1331 = vmul.f32 %v1317, 1.442695
  %v1332 = vpow.pop %v1331
  %v1333 = vmul.f32 %v1318, 1.442695
  %v1334 = vpow.pop %v1333
  %v1335 = vadd.f32 %v1320, 1.0
  %v1336 = vadd.f32 %v1322, 1.0
  %v1337 = vadd.f32 %v1324, 1.0
  %v1338 = vadd.f32 %v1326, 1.0
  %v1339 = vadd.f32 %v1328, 1.0
  %v1340 = vadd.f32 %v1330, 1.0
  %v1341 = vadd.f32 %v1332, 1.0
  %v1342 = vadd.f32 %v1334, 1.0
  %v1343 = vrcp.pop %v1335
  %v1344 = vmul.f32 %v1335, %v1343
  %v1345 = vsub.f32 1.0, %v1344
  %v1346 = vmul.f32 %v1343, %v1345
  %v1347 = vadd.f32 %v1343, %v1346
  %vm1348 = vweird.f32 %v1335
  %vm1349 = vweird.f32 %v1343
  %vm1350 = vmor %vm1348, %vm1349
  %v1351 = vsel %vm1350, %v1343, %v1347
  %v1352 = vand.u32 2147483647, %v1335
  %vm1353 = vcmp.eq.f32.partialorder %v1352, 8.507059e+37
  %v1354 = vand.u32 %v1335, 2147483648
  %v1355 = vor.u32 1.1754944e-38, %v1354
  %v1356 = vsel %vm1353, %v1355, %v1351
  %v1357 = vmul.f32 1.0, %v1356
  %v1358 = vrcp.pop %v1336
  %v1359 = vmul.f32 %v1336, %v1358
  %v1360 = vsub.f32 1.0, %v1359
  %v1361 = vmul.f32 %v1358, %v1360
  %v1362 = vadd.f32 %v1358, %v1361
  %vm1363 = vweird.f32 %v1336
  %vm1364 = vweird.f32 %v1358
  %vm1365 = vmor %vm1363, %vm1364
  %v1366 = vsel %vm1365, %v1358, %v1362
  %v1367 = vand.u32 2147483647, %v1336
  %vm1368 = vcmp.eq.f32.partialorder %v1367, 8.507059e+37
  %v1369 = vand.u32 %v1336, 2147483648
  %v1370 = vor.u32 1.1754944e-38, %v1369
  %v1371 = vsel %vm1368, %v1370, %v1366
  %v1372 = vmul.f32 1.0, %v1371
  %v1373 = vrcp.pop %v1337
  %v1374 = vmul.f32 %v1337, %v1373
  %v1375 = vsub.f32 1.0, %v1374
  %v1376 = vmul.f32 %v1373, %v1375
  %v1377 = vadd.f32 %v1373, %v1376
  %vm1378 = vweird.f32 %v1337
  %vm1379 = vweird.f32 %v1373
  %vm1380 = vmor %vm1378, %vm1379
  %v1381 = vsel %vm1380, %v1373, %v1377
  %v1382 = vand.u32 2147483647, %v1337
  %vm1383 = vcmp.eq.f32.partialorder %v1382, 8.507059e+37
  %v1384 = vand.u32 %v1337, 2147483648
  %v1385 = vor.u32 1.1754944e-38, %v1384
  %v1386 = vsel %vm1383, %v1385, %v1381
  %v1387 = vmul.f32 1.0, %v1386
  %v1388 = vrcp.pop %v1338
  %v1389 = vmul.f32 %v1338, %v1388
  %v1390 = vsub.f32 1.0, %v1389
  %v1391 = vmul.f32 %v1388, %v1390
  %v1392 = vadd.f32 %v1388, %v1391
  %vm1393 = vweird.f32 %v1338
  %vm1394 = vweird.f32 %v1388
  %vm1395 = vmor %vm1393, %vm1394
  %v1396 = vsel %vm1395, %v1388, %v1392
  %v1397 = vand.u32 2147483647, %v1338
  %vm1398 = vcmp.eq.f32.partialorder %v1397, 8.507059e+37
  %v1399 = vand.u32 %v1338, 2147483648
  %v1400 = vor.u32 1.1754944e-38, %v1399
  %v1401 = vsel %vm1398, %v1400, %v1396
  %v1402 = vmul.f32 1.0, %v1401
  %v1403 = vrcp.pop %v1339
  %v1404 = vmul.f32 %v1339, %v1403
  %v1405 = vsub.f32 1.0, %v1404
  %v1406 = vmul.f32 %v1403, %v1405
  %v1407 = vadd.f32 %v1403, %v1406
  %vm1408 = vweird.f32 %v1339
  %vm1409 = vweird.f32 %v1403
  %vm1410 = vmor %vm1408, %vm1409
  %v1411 = vsel %vm1410, %v1403, %v1407
  %v1412 = vand.u32 2147483647, %v1339
  %vm1413 = vcmp.eq.f32.partialorder %v1412, 8.507059e+37
  %v1414 = vand.u32 %v1339, 2147483648
  %v1415 = vor.u32 1.1754944e-38, %v1414
  %v1416 = vsel %vm1413, %v1415, %v1411
  %v1417 = vmul.f32 1.0, %v1416
  %v1418 = vrcp.pop %v1340
  %v1419 = vmul.f32 %v1340, %v1418
  %v1420 = vsub.f32 1.0, %v1419
  %v1421 = vmul.f32 %v1418, %v1420
  %v1422 = vadd.f32 %v1418, %v1421
  %vm1423 = vweird.f32 %v1340
  %vm1424 = vweird.f32 %v1418
  %vm1425 = vmor %vm1423, %vm1424
  %v1426 = vsel %vm1425, %v1418, %v1422
  %v1427 = vand.u32 2147483647, %v1340
  %vm1428 = vcmp.eq.f32.partialorder %v1427, 8.507059e+37
  %v1429 = vand.u32 %v1340, 2147483648
  %v1430 = vor.u32 1.1754944e-38, %v1429
  %v1431 = vsel %vm1428, %v1430, %v1426
  %v1432 = vmul.f32 1.0, %v1431
  %v1433 = vrcp.pop %v1341
  %v1434 = vmul.f32 %v1341, %v1433
  %v1435 = vsub.f32 1.0, %v1434
  %v1436 = vmul.f32 %v1433, %v1435
  %v1437 = vadd.f32 %v1433, %v1436
  %vm1438 = vweird.f32 %v1341
  %vm1439 = vweird.f32 %v1433
  %vm1440 = vmor %vm1438, %vm1439
  %v1441 = vsel %vm1440, %v1433, %v1437
  %v1442 = vand.u32 2147483647, %v1341
  %vm1443 = vcmp.eq.f32.partialorder %v1442, 8.507059e+37
  %v1444 = vand.u32 %v1341, 2147483648
  %v1445 = vor.u32 1.1754944e-38, %v1444
  %v1446 = vsel %vm1443, %v1445, %v1441
  %v1447 = vmul.f32 1.0, %v1446
  %v1448 = vrcp.pop %v1342
  %v1449 = vmul.f32 %v1342, %v1448
  %v1450 = vsub.f32 1.0, %v1449
  %v1451 = vmul.f32 %v1448, %v1450
  %v1452 = vadd.f32 %v1448, %v1451
  %vm1453 = vweird.f32 %v1342
  %vm1454 = vweird.f32 %v1448
  %vm1455 = vmor %vm1453, %vm1454
  %v1456 = vsel %vm1455, %v1448, %v1452
  %v1457 = vand.u32 2147483647, %v1342
  %vm1458 = vcmp.eq.f32.partialorder %v1457, 8.507059e+37
  %v1459 = vand.u32 %v1342, 2147483648
  %v1460 = vor.u32 1.1754944e-38, %v1459
  %v1461 = vsel %vm1458, %v1460, %v1456
  %v1462 = vmul.f32 1.0, %v1461
  %1463 = vst [vmem:[%s11] sm:$0xff] %v1357
  %1464 = vst [vmem:[%s11 + $0x8] sm:$0xff] %v1372
  %1465 = vst [vmem:[%s11 + $0x10] sm:$0xff] %v1387
  %1466 = vst [vmem:[%s11 + $0x18] sm:$0xff] %v1402
  %1467 = vst [vmem:[%s11 + $0x20] sm:$0xff] %v1417
  %1468 = vst [vmem:[%s11 + $0x28] sm:$0xff] %v1432
  %1469 = vst [vmem:[%s11 + $0x30] sm:$0xff] %v1447
  %1470 = vst [vmem:[%s11 + $0x38] sm:$0xff] %v1462
  // Predicated region
  $region46: #{midivae_forward.3} parent=0 // pred_check
    _
  $region47: #{midivae_forward.3} parent=0 // pred_check_branch
    %1472 = sbr.rel (0) target = $region49
  $region48: #{midivae_forward.3} parent=0 // pred_region
    _
  $region49: #{midivae_forward.3} parent=0 // pred_fallthru
    _
  // Predicated region
  $region50: #{midivae_forward.3} parent=0 // pred_check
    _
  $region51: #{midivae_forward.3} parent=0 // pred_check_branch
    %1474 = sbr.rel (0) target = $region53
  $region52: #{midivae_forward.3} parent=0 // pred_region
    _
  $region53: #{midivae_forward.3} parent=0 // pred_fallthru
    _

// kernel: midivae_forward.2
$region0: #{midivae_forward.2}
  #allocation0 [shape = 'u32[]', space=smem, size = 0x4, offset = 0x4, fixed_abs, tag = 'smem constant byte address 0x4 - core index']
  #allocation1 [shape = 'u32[72,128]{1,0:T(1,128)}', space=vmem, size = 0x9000, scoped, tag = 'internal scratch']
  #allocation2 [shape = 'f32[64,32]{1,0:T(8,128)}', space=vmem, size = 0x8000, scoped, tag = 'scratch operand']
  #allocation3 [shape = 'f32[64,128]{1,0:T(8,128)}', space=vmem, size = 0x8000, scoped, tag = 'scratch operand']
  %s0 = inlined_call_operand.vmem [shape: f32[64,16], index: 0, kind: input, shape index: {}]
  %s1 = inlined_call_operand.vmem [shape: f32[2,8,32], index: 1, kind: input, shape index: {}]
  %s2 = inlined_call_operand.vmem [shape: f32[2,8,32], index: 2, kind: input, shape index: {}]
  %s3 = inlined_call_operand.vmem [shape: f32[8,8], index: 3, kind: input, shape index: {}]
  %s4 = inlined_call_operand.vmem [shape: f32[16,128], index: 4, kind: input, shape index: {}]
  %s5 = inlined_call_operand.vmem [shape: f32[32,128], index: 5, kind: input, shape index: {}]
  %s6 = inlined_call_operand.vmem [shape: f32[1,128], index: 6, kind: input, shape index: {}]
  %s7 = inlined_call_operand.vmem [shape: f32[32,128], index: 7, kind: input, shape index: {}]
  %s8 = inlined_call_operand.vmem [shape: f32[32,128], index: 8, kind: input, shape index: {}]
  %s9 = inlined_call_operand.vmem [shape: f32[1,128], index: 9, kind: input, shape index: {}]
  %s10 = inlined_call_operand.vmem [shape: f32[32,16], index: 10, kind: input, shape index: {}]
  %s11 = inlined_call_operand.vmem [shape: f32[1,16], index: 11, kind: input, shape index: {}]
  %s12 = inlined_call_operand.vmem [shape: f32[8,8], index: 12, kind: output, shape index: {0}]
  %s13 = inlined_call_operand.hbm [shape: f32[8,8], index: 13, kind: output, shape index: {1}]
  %s14 = inlined_call_operand.hbm [shape: f32[8,8], index: 14, kind: output, shape index: {2}]
  %15 = xla_tuple %s12, %s13, %s14
  %s16 = sld [smem:[#allocation0]]
  $region74: #{midivae_forward.2} parent=0
    _
  %s18 = ssub.s32 1, %s16
  %s19 = scalar_select 0, %s18, %s16
  $region1: #{midivae_forward.2} parent=0
    #allocation4 [shape = 'u8[4096]{0}', space=vmem, size = 0x1000, scoped, tag = 'output window, operand 1, single buffered']
    #allocation5 [shape = 's32[1]{0}', space=sflag, size = 0x4, scoped, tag = 'scoped memory for midivae_forward.2']
    #allocation6 [shape = 'u8[4096]{0}', space=vmem, size = 0x1000, scoped, tag = 'output window, operand 2, single buffered']
    #allocation7 [shape = 's32[1]{0}', space=sflag, size = 0x4, scoped, tag = 'scoped memory for midivae_forward.2']
    %20 = vsyncpa [#allocation5], 0
    %21 = vsyncpa [#allocation7], 0
    // Predicated region
    $region2: #{midivae_forward.2} parent=1 // pred_check
      _
    $region3: #{midivae_forward.2} parent=1 // pred_check_branch
      %23 = sbr.rel (0) target = $region5
    $region4: #{midivae_forward.2} parent=1 // pred_region
      _
    $region5: #{midivae_forward.2} parent=1 // pred_fallthru
      _
    // Predicated region
    $region6: #{midivae_forward.2} parent=1 // pred_check
      _
    $region7: #{midivae_forward.2} parent=1 // pred_check_branch
      %25 = sbr.rel (0) target = $region9
    $region8: #{midivae_forward.2} parent=1 // pred_region
      _
    $region9: #{midivae_forward.2} parent=1 // pred_fallthru
      _
    // Predicated region
    $region10: #{midivae_forward.2} parent=1 // pred_check
      _
    $region11: #{midivae_forward.2} parent=1 // pred_check_branch
      %27 = sbr.rel (0) target = $region13
    $region12: #{midivae_forward.2} parent=1 // pred_region
      _
    $region13: #{midivae_forward.2} parent=1 // pred_fallthru
      _
    // Predicated region
    $region14: #{midivae_forward.2} parent=1 // pred_check
      _
    $region15: #{midivae_forward.2} parent=1 // pred_check_branch
      %29 = sbr.rel (0) target = $region17
    $region16: #{midivae_forward.2} parent=1 // pred_region
      _
    $region17: #{midivae_forward.2} parent=1 // pred_fallthru
      _
    // Predicated region
    $region18: #{midivae_forward.2} parent=1 // pred_check
      _
    $region19: #{midivae_forward.2} parent=1 // pred_check_branch
      %31 = sbr.rel (0) target = $region21
    $region20: #{midivae_forward.2} parent=1 // pred_region
      _
    $region21: #{midivae_forward.2} parent=1 // pred_fallthru
      _
    // Predicated region
    $region22: #{midivae_forward.2} parent=1 // pred_check
      _
    $region23: #{midivae_forward.2} parent=1 // pred_check_branch
      %33 = sbr.rel (0) target = $region25
    $region24: #{midivae_forward.2} parent=1 // pred_region
      _
    $region25: #{midivae_forward.2} parent=1 // pred_fallthru
      _
    // Predicated region
    $region26: #{midivae_forward.2} parent=1 // pred_check
      _
    $region27: #{midivae_forward.2} parent=1 // pred_check_branch
      %35 = sbr.rel (0) target = $region29
    $region28: #{midivae_forward.2} parent=1 // pred_region
      _
    $region29: #{midivae_forward.2} parent=1 // pred_fallthru
      _
    // Predicated region
    $region30: #{midivae_forward.2} parent=1 // pred_check
      _
    $region31: #{midivae_forward.2} parent=1 // pred_check_branch
      %37 = sbr.rel (0) target = $region33
    $region32: #{midivae_forward.2} parent=1 // pred_region
      _
    $region33: #{midivae_forward.2} parent=1 // pred_fallthru
      _
    // Predicated region
    $region34: #{midivae_forward.2} parent=1 // pred_check
      _
    $region35: #{midivae_forward.2} parent=1 // pred_check_branch
      %39 = sbr.rel (0) target = $region37
    $region36: #{midivae_forward.2} parent=1 // pred_region
      _
    $region37: #{midivae_forward.2} parent=1 // pred_fallthru
      _
    // Predicated region
    $region38: #{midivae_forward.2} parent=1 // pred_check
      _
    $region39: #{midivae_forward.2} parent=1 // pred_check_branch
      %41 = sbr.rel (0) target = $region41
    $region40: #{midivae_forward.2} parent=1 // pred_region
      _
    $region41: #{midivae_forward.2} parent=1 // pred_fallthru
      _
    // Predicated region
    $region42: #{midivae_forward.2} parent=1 // pred_check
      _
    $region43: #{midivae_forward.2} parent=1 // pred_check_branch
      %43 = sbr.rel (0) target = $region45
    $region44: #{midivae_forward.2} parent=1 // pred_region
      _
    $region45: #{midivae_forward.2} parent=1 // pred_fallthru
      _
    // Predicated region
    $region46: #{midivae_forward.2} parent=1 // pred_check
      _
    $region47: #{midivae_forward.2} parent=1 // pred_check_branch
      %45 = sbr.rel (0) target = $region49
    $region48: #{midivae_forward.2} parent=1 // pred_region
      _
    $region49: #{midivae_forward.2} parent=1 // pred_fallthru
      _
    %v46 = vld [vmem:[%s0] sm:$0xff]
    %v47 = vld [vmem:[%s0 + $0x8] sm:$0xff]
    %v48 = vld [vmem:[%s0 + $0x10] sm:$0xff]
    %v49 = vld [vmem:[%s0 + $0x18] sm:$0xff]
    %v50 = vld [vmem:[%s0 + $0x20] sm:$0xff]
    %v51 = vld [vmem:[%s0 + $0x28] sm:$0xff]
    %v52 = vld [vmem:[%s0 + $0x30] sm:$0xff]
    %v53 = vld [vmem:[%s0 + $0x38] sm:$0xff]
    %v54 = vld [vmem:[%s4] sm:$0xff]
    %v55 = vld [vmem:[%s4 + $0x8] sm:$0xff]
    %v56 = vld [vmem:[%s6] sm:$0x1]
    %v58 = vperm.slane %v56, 0
    %vm60 = vcmask 130048
    %v62 = vsel %vm60, %v46, 0
    %v65 = vsel %vm60, %v47, 0
    %v68 = vsel %vm60, %v48, 0
    %v71 = vsel %vm60, %v49, 0
    %v74 = vsel %vm60, %v50, 0
    %v77 = vsel %vm60, %v51, 0
    %v80 = vsel %vm60, %v52, 0
    %v83 = vsel %vm60, %v53, 0
    %85 = vmatpush.msra.mxu0 0.0
    %86 = vmatpush.msra.mxu0 0.0
    %87 = vmatpush.msra.mxu0 0.0
    %88 = vmatpush.msra.mxu0 0.0
    %89 = vmatpush.msra.mxu0 0.0
    %90 = vmatpush.msra.mxu0 0.0
    %91 = vmatpush.msra.mxu0 0.0
    %92 = vmatpush.msra.mxu0 0.0
    %93 = vmatpush.msra.mxu0 0.0
    %94 = vmatpush.msra.mxu0 0.0
    %95 = vmatpush.msra.mxu0 0.0
    %96 = vmatpush.msra.mxu0 0.0
    %97 = vmatpush.msra.mxu0 0.0
    %98 = vmatpush.msra.mxu0 0.0
    %99 = vmatpush.msra.mxu0 %v55
    %100 = vmatpush.msra.mxu0 %v54
    %101 = vmatmul.f32.gmra.mxu0 %v62
    %v102 = vpop.f32.mrf.mxu0
    %v103 = vadd.f32 %v58, %v102
    %104 = vmatmul.f32.gmra.mxu0 %v65
    %v105 = vpop.f32.mrf.mxu0
    %v106 = vadd.f32 %v58, %v105
    %107 = vmatmul.f32.gmra.mxu0 %v68
    %v108 = vpop.f32.mrf.mxu0
    %v109 = vadd.f32 %v58, %v108
    %110 = vmatmul.f32.gmra.mxu0 %v71
    %v111 = vpop.f32.mrf.mxu0
    %v112 = vadd.f32 %v58, %v111
    %113 = vmatmul.f32.gmra.mxu0 %v74
    %v114 = vpop.f32.mrf.mxu0
    %v115 = vadd.f32 %v58, %v114
    %116 = vmatmul.f32.gmra.mxu0 %v77
    %v117 = vpop.f32.mrf.mxu0
    %v118 = vadd.f32 %v58, %v117
    %119 = vmatmul.f32.gmra.mxu0 %v80
    %v120 = vpop.f32.mrf.mxu0
    %v121 = vadd.f32 %v58, %v120
    %122 = vmatmul.f32.gmra.mxu0 %v83
    %v123 = vpop.f32.mrf.mxu0
    %v124 = vadd.f32 %v58, %v123
    %125 = vdwg.mxu0
    %126 = vst [vmem:[#allocation3] sm:$0xff] %v103
    %127 = vst [vmem:[#allocation3 + $0x8] sm:$0xff] %v106
    %128 = vst [vmem:[#allocation3 + $0x10] sm:$0xff] %v109
    %129 = vst [vmem:[#allocation3 + $0x18] sm:$0xff] %v112
    %130 = vst [vmem:[#allocation3 + $0x20] sm:$0xff] %v115
    %131 = vst [vmem:[#allocation3 + $0x28] sm:$0xff] %v118
    %132 = vst [vmem:[#allocation3 + $0x30] sm:$0xff] %v121
    %133 = vst [vmem:[#allocation3 + $0x38] sm:$0xff] %v124
    %v134 = vld [vmem:[%s5] sm:$0xff]
    %v135 = vld [vmem:[%s5 + $0x8] sm:$0xff]
    %v136 = vld [vmem:[%s5 + $0x10] sm:$0xff]
    %v137 = vld [vmem:[%s5 + $0x18] sm:$0xff]
    %v138 = vld [vmem:[%s1] sm:$0xff]
    %v139 = vld [vmem:[%s2] sm:$0xff]
    %v140 = vld [vmem:[#allocation3] sm:$0xff]
    %vm141 = vcmask 261120
    %v143 = vsel %vm141, %v138, 0
    %145 = vmatpush.msra.mxu0 0.0
    %146 = vmatpush.msra.mxu0 0.0
    %147 = vmatpush.msra.mxu0 0.0
    %148 = vmatpush.msra.mxu0 0.0
    %149 = vmatpush.msra.mxu0 0.0
    %150 = vmatpush.msra.mxu0 0.0
    %151 = vmatpush.msra.mxu0 0.0
    %152 = vmatpush.msra.mxu0 0.0
    %153 = vmatpush.msra.mxu0 0.0
    %154 = vmatpush.msra.mxu0 0.0
    %155 = vmatpush.msra.mxu0 0.0
    %156 = vmatpush.msra.mxu0 0.0
    %157 = vmatpush.msra.mxu0 %v137
    %158 = vmatpush.msra.mxu0 %v136
    %159 = vmatpush.msra.mxu0 %v135
    %160 = vmatpush.msra.mxu0 %v134
    %161 = vmatmul.f32.gmra.mxu0 %v143
    %v162 = vpop.f32.mrf.mxu0
    %v163 = vadd.f32 0.0, %v162
    %164 = vdwg.mxu0
    %v165 = vadd.f32 %v140, %v163
    %v166 = vxor.u32 %v165, 2147483648
    %v167 = vmul.f32 %v166, 1.442695
    %v168 = vpow.pop %v167
    %v169 = vadd.f32 %v168, 1.0
    %v170 = vrcp.pop %v169
    %v171 = vmul.f32 %v169, %v170
    %v172 = vsub.f32 1.0, %v171
    %v173 = vmul.f32 %v170, %v172
    %v174 = vadd.f32 %v170, %v173
    %vm175 = vweird.f32 %v169
    %vm176 = vweird.f32 %v170
    %vm177 = vmor %vm175, %vm176
    %v178 = vsel %vm177, %v170, %v174
    %v179 = vand.u32 2147483647, %v169
    %vm180 = vcmp.eq.f32.partialorder %v179, 8.507059e+37
    %v181 = vand.u32 %v169, 2147483648
    %v182 = vor.u32 1.1754944e-38, %v181
    %v183 = vsel %vm180, %v182, %v178
    %v184 = vmul.f32 1.0, %v183
    %v185 = vtanh.pop %v165
    %187 = vrot.lane.b32.xlu0 %v139, 32
    %v188 = vpop.permute.xlu0 %187
    %v190 = vmul.f32 %v184, %v188
    %192 = vrot.lane.b32.xlu0 %v185, 64
    %v193 = vpop.permute.xlu0 %192
    %v195 = vmul.f32 %v184, %v193
    %197 = vrot.lane.b32.xlu0 %v195, 32
    %v198 = vpop.permute.xlu0 %197
    %v200 = vadd.f32 %v190, %v198
    %v201 = vtanh.pop %v200
    %203 = vrot.lane.b32.xlu0 %v201, 64
    %v204 = vpop.permute.xlu0 %203
    %v206 = vmul.f32 %v184, %v204
    %208 = vrot.lane.b32.xlu0 %v206, 32
    %v209 = vpop.permute.xlu0 %208
    %211 = vst.msk [vmem:[#allocation2] sm:$0xff] %vm141, %v209
    %v212 = vld [vmem:[#allocation3 + $0x8] sm:$0xff]
    %v213 = vsel %vm141, %v209, 0
    %215 = vmatpush.msra.mxu0 0.0
    %216 = vmatpush.msra.mxu0 0.0
    %217 = vmatpush.msra.mxu0 0.0
    %218 = vmatpush.msra.mxu0 0.0
    %219 = vmatpush.msra.mxu0 0.0
    %220 = vmatpush.msra.mxu0 0.0
    %221 = vmatpush.msra.mxu0 0.0
    %222 = vmatpush.msra.mxu0 0.0
    %223 = vmatpush.msra.mxu0 0.0
    %224 = vmatpush.msra.mxu0 0.0
    %225 = vmatpush.msra.mxu0 0.0
    %226 = vmatpush.msra.mxu0 0.0
    %227 = vmatpush.msra.mxu0 %v137
    %228 = vmatpush.msra.mxu0 %v136
    %229 = vmatpush.msra.mxu0 %v135
    %230 = vmatpush.msra.mxu0 %v134
    %231 = vmatmul.f32.gmra.mxu0 %v213
    %v232 = vpop.f32.mrf.mxu0
    %v233 = vadd.f32 0.0, %v232
    %234 = vdwg.mxu0
    %v235 = vadd.f32 %v212, %v233
    %v236 = vxor.u32 %v235, 2147483648
    %v237 = vmul.f32 %v236, 1.442695
    %v238 = vpow.pop %v237
    %v239 = vadd.f32 %v238, 1.0
    %v240 = vrcp.pop %v239
    %v241 = vmul.f32 %v239, %v240
    %v242 = vsub.f32 1.0, %v241
    %v243 = vmul.f32 %v240, %v242
    %v244 = vadd.f32 %v240, %v243
    %vm245 = vweird.f32 %v239
    %vm246 = vweird.f32 %v240
    %vm247 = vmor %vm245, %vm246
    %v248 = vsel %vm247, %v240, %v244
    %v249 = vand.u32 2147483647, %v239
    %vm250 = vcmp.eq.f32.partialorder %v249, 8.507059e+37
    %v251 = vand.u32 %v239, 2147483648
    %v252 = vor.u32 1.1754944e-38, %v251
    %v253 = vsel %vm250, %v252, %v248
    %v254 = vmul.f32 1.0, %v253
    %v255 = vtanh.pop %v235
    %v256 = vmul.f32 %v254, %v200
    %258 = vrot.lane.b32.xlu0 %v255, 64
    %v259 = vpop.permute.xlu0 %258
    %v261 = vmul.f32 %v254, %v259
    %263 = vrot.lane.b32.xlu0 %v261, 32
    %v264 = vpop.permute.xlu0 %263
    %v266 = vadd.f32 %v256, %v264
    %v267 = vtanh.pop %v266
    %269 = vrot.lane.b32.xlu0 %v267, 64
    %v270 = vpop.permute.xlu0 %269
    %v272 = vmul.f32 %v254, %v270
    %274 = vrot.lane.b32.xlu0 %v272, 32
    %v275 = vpop.permute.xlu0 %274
    %277 = vst.msk [vmem:[#allocation2 + $0x8] sm:$0xff] %vm141, %v275
    %v278 = vld [vmem:[#allocation3 + $0x10] sm:$0xff]
    %v279 = vsel %vm141, %v275, 0
    %281 = vmatpush.msra.mxu0 0.0
    %282 = vmatpush.msra.mxu0 0.0
    %283 = vmatpush.msra.mxu0 0.0
    %284 = vmatpush.msra.mxu0 0.0
    %285 = vmatpush.msra.mxu0 0.0
    %286 = vmatpush.msra.mxu0 0.0
    %287 = vmatpush.msra.mxu0 0.0
    %288 = vmatpush.msra.mxu0 0.0
    %289 = vmatpush.msra.mxu0 0.0
    %290 = vmatpush.msra.mxu0 0.0
    %291 = vmatpush.msra.mxu0 0.0
    %292 = vmatpush.msra.mxu0 0.0
    %293 = vmatpush.msra.mxu0 %v137
    %294 = vmatpush.msra.mxu0 %v136
    %295 = vmatpush.msra.mxu0 %v135
    %296 = vmatpush.msra.mxu0 %v134
    %297 = vmatmul.f32.gmra.mxu0 %v279
    %v298 = vpop.f32.mrf.mxu0
    %v299 = vadd.f32 0.0, %v298
    %300 = vdwg.mxu0
    %v301 = vadd.f32 %v278, %v299
    %v302 = vxor.u32 %v301, 2147483648
    %v303 = vmul.f32 %v302, 1.442695
    %v304 = vpow.pop %v303
    %v305 = vadd.f32 %v304, 1.0
    %v306 = vrcp.pop %v305
    %v307 = vmul.f32 %v305, %v306
    %v308 = vsub.f32 1.0, %v307
    %v309 = vmul.f32 %v306, %v308
    %v310 = vadd.f32 %v306, %v309
    %vm311 = vweird.f32 %v305
    %vm312 = vweird.f32 %v306
    %vm313 = vmor %vm311, %vm312
    %v314 = vsel %vm313, %v306, %v310
    %v315 = vand.u32 2147483647, %v305
    %vm316 = vcmp.eq.f32.partialorder %v315, 8.507059e+37
    %v317 = vand.u32 %v305, 2147483648
    %v318 = vor.u32 1.1754944e-38, %v317
    %v319 = vsel %vm316, %v318, %v314
    %v320 = vmul.f32 1.0, %v319
    %v321 = vtanh.pop %v301
    %v322 = vmul.f32 %v320, %v266
    %324 = vrot.lane.b32.xlu0 %v321, 64
    %v325 = vpop.permute.xlu0 %324
    %v327 = vmul.f32 %v320, %v325
    %329 = vrot.lane.b32.xlu0 %v327, 32
    %v330 = vpop.permute.xlu0 %329
    %v332 = vadd.f32 %v322, %v330
    %v333 = vtanh.pop %v332
    %335 = vrot.lane.b32.xlu0 %v333, 64
    %v336 = vpop.permute.xlu0 %335
    %v338 = vmul.f32 %v320, %v336
    %340 = vrot.lane.b32.xlu0 %v338, 32
    %v341 = vpop.permute.xlu0 %340
    %343 = vst.msk [vmem:[#allocation2 + $0x10] sm:$0xff] %vm141, %v341
    %v344 = vld [vmem:[#allocation3 + $0x18] sm:$0xff]
    %v345 = vsel %vm141, %v341, 0
    %347 = vmatpush.msra.mxu0 0.0
    %348 = vmatpush.msra.mxu0 0.0
    %349 = vmatpush.msra.mxu0 0.0
    %350 = vmatpush.msra.mxu0 0.0
    %351 = vmatpush.msra.mxu0 0.0
    %352 = vmatpush.msra.mxu0 0.0
    %353 = vmatpush.msra.mxu0 0.0
    %354 = vmatpush.msra.mxu0 0.0
    %355 = vmatpush.msra.mxu0 0.0
    %356 = vmatpush.msra.mxu0 0.0
    %357 = vmatpush.msra.mxu0 0.0
    %358 = vmatpush.msra.mxu0 0.0
    %359 = vmatpush.msra.mxu0 %v137
    %360 = vmatpush.msra.mxu0 %v136
    %361 = vmatpush.msra.mxu0 %v135
    %362 = vmatpush.msra.mxu0 %v134
    %363 = vmatmul.f32.gmra.mxu0 %v345
    %v364 = vpop.f32.mrf.mxu0
    %v365 = vadd.f32 0.0, %v364
    %366 = vdwg.mxu0
    %v367 = vadd.f32 %v344, %v365
    %v368 = vxor.u32 %v367, 2147483648
    %v369 = vmul.f32 %v368, 1.442695
    %v370 = vpow.pop %v369
    %v371 = vadd.f32 %v370, 1.0
    %v372 = vrcp.pop %v371
    %v373 = vmul.f32 %v371, %v372
    %v374 = vsub.f32 1.0, %v373
    %v375 = vmul.f32 %v372, %v374
    %v376 = vadd.f32 %v372, %v375
    %vm377 = vweird.f32 %v371
    %vm378 = vweird.f32 %v372
    %vm379 = vmor %vm377, %vm378
    %v380 = vsel %vm379, %v372, %v376
    %v381 = vand.u32 2147483647, %v371
    %vm382 = vcmp.eq.f32.partialorder %v381, 8.507059e+37
    %v383 = vand.u32 %v371, 2147483648
    %v384 = vor.u32 1.1754944e-38, %v383
    %v385 = vsel %vm382, %v384, %v380
    %v386 = vmul.f32 1.0, %v385
    %v387 = vtanh.pop %v367
    %v388 = vmul.f32 %v386, %v332
    %390 = vrot.lane.b32.xlu0 %v387, 64
    %v391 = vpop.permute.xlu0 %390
    %v393 = vmul.f32 %v386, %v391
    %395 = vrot.lane.b32.xlu0 %v393, 32
    %v396 = vpop.permute.xlu0 %395
    %v398 = vadd.f32 %v388, %v396
    %v399 = vtanh.pop %v398
    %401 = vrot.lane.b32.xlu0 %v399, 64
    %v402 = vpop.permute.xlu0 %401
    %v404 = vmul.f32 %v386, %v402
    %406 = vrot.lane.b32.xlu0 %v404, 32
    %v407 = vpop.permute.xlu0 %406
    %409 = vst.msk [vmem:[#allocation2 + $0x18] sm:$0xff] %vm141, %v407
    %v410 = vld [vmem:[#allocation3 + $0x20] sm:$0xff]
    %v411 = vsel %vm141, %v407, 0
    %413 = vmatpush.msra.mxu0 0.0
    %414 = vmatpush.msra.mxu0 0.0
    %415 = vmatpush.msra.mxu0 0.0
    %416 = vmatpush.msra.mxu0 0.0
    %417 = vmatpush.msra.mxu0 0.0
    %418 = vmatpush.msra.mxu0 0.0
    %419 = vmatpush.msra.mxu0 0.0
    %420 = vmatpush.msra.mxu0 0.0
    %421 = vmatpush.msra.mxu0 0.0
    %422 = vmatpush.msra.mxu0 0.0
    %423 = vmatpush.msra.mxu0 0.0
    %424 = vmatpush.msra.mxu0 0.0
    %425 = vmatpush.msra.mxu0 %v137
    %426 = vmatpush.msra.mxu0 %v136
    %427 = vmatpush.msra.mxu0 %v135
    %428 = vmatpush.msra.mxu0 %v134
    %429 = vmatmul.f32.gmra.mxu0 %v411
    %v430 = vpop.f32.mrf.mxu0
    %v431 = vadd.f32 0.0, %v430
    %432 = vdwg.mxu0
    %v433 = vadd.f32 %v410, %v431
    %v434 = vxor.u32 %v433, 2147483648
    %v435 = vmul.f32 %v434, 1.442695
    %v436 = vpow.pop %v435
    %v437 = vadd.f32 %v436, 1.0
    %v438 = vrcp.pop %v437
    %v439 = vmul.f32 %v437, %v438
    %v440 = vsub.f32 1.0, %v439
    %v441 = vmul.f32 %v438, %v440
    %v442 = vadd.f32 %v438, %v441
    %vm443 = vweird.f32 %v437
    %vm444 = vweird.f32 %v438
    %vm445 = vmor %vm443, %vm444
    %v446 = vsel %vm445, %v438, %v442
    %v447 = vand.u32 2147483647, %v437
    %vm448 = vcmp.eq.f32.partialorder %v447, 8.507059e+37
    %v449 = vand.u32 %v437, 2147483648
    %v450 = vor.u32 1.1754944e-38, %v449
    %v451 = vsel %vm448, %v450, %v446
    %v452 = vmul.f32 1.0, %v451
    %v453 = vtanh.pop %v433
    %v454 = vmul.f32 %v452, %v398
    %456 = vrot.lane.b32.xlu0 %v453, 64
    %v457 = vpop.permute.xlu0 %456
    %v459 = vmul.f32 %v452, %v457
    %461 = vrot.lane.b32.xlu0 %v459, 32
    %v462 = vpop.permute.xlu0 %461
    %v464 = vadd.f32 %v454, %v462
    %v465 = vtanh.pop %v464
    %467 = vrot.lane.b32.xlu0 %v465, 64
    %v468 = vpop.permute.xlu0 %467
    %v470 = vmul.f32 %v452, %v468
    %472 = vrot.lane.b32.xlu0 %v470, 32
    %v473 = vpop.permute.xlu0 %472
    %475 = vst.msk [vmem:[#allocation2 + $0x20] sm:$0xff] %vm141, %v473
    %v476 = vld [vmem:[#allocation3 + $0x28] sm:$0xff]
    %v477 = vsel %vm141, %v473, 0
    %479 = vmatpush.msra.mxu0 0.0
    %480 = vmatpush.msra.mxu0 0.0
    %481 = vmatpush.msra.mxu0 0.0
    %482 = vmatpush.msra.mxu0 0.0
    %483 = vmatpush.msra.mxu0 0.0
    %484 = vmatpush.msra.mxu0 0.0
    %485 = vmatpush.msra.mxu0 0.0
    %486 = vmatpush.msra.mxu0 0.0
    %487 = vmatpush.msra.mxu0 0.0
    %488 = vmatpush.msra.mxu0 0.0
    %489 = vmatpush.msra.mxu0 0.0
    %490 = vmatpush.msra.mxu0 0.0
    %491 = vmatpush.msra.mxu0 %v137
    %492 = vmatpush.msra.mxu0 %v136
    %493 = vmatpush.msra.mxu0 %v135
    %494 = vmatpush.msra.mxu0 %v134
    %495 = vmatmul.f32.gmra.mxu0 %v477
    %v496 = vpop.f32.mrf.mxu0
    %v497 = vadd.f32 0.0, %v496
    %498 = vdwg.mxu0
    %v499 = vadd.f32 %v476, %v497
    %v500 = vxor.u32 %v499, 2147483648
    %v501 = vmul.f32 %v500, 1.442695
    %v502 = vpow.pop %v501
    %v503 = vadd.f32 %v502, 1.0
    %v504 = vrcp.pop %v503
    %v505 = vmul.f32 %v503, %v504
    %v506 = vsub.f32 1.0, %v505
    %v507 = vmul.f32 %v504, %v506
    %v508 = vadd.f32 %v504, %v507
    %vm509 = vweird.f32 %v503
    %vm510 = vweird.f32 %v504
    %vm511 = vmor %vm509, %vm510
    %v512 = vsel %vm511, %v504, %v508
    %v513 = vand.u32 2147483647, %v503
    %vm514 = vcmp.eq.f32.partialorder %v513, 8.507059e+37
    %v515 = vand.u32 %v503, 2147483648
    %v516 = vor.u32 1.1754944e-38, %v515
    %v517 = vsel %vm514, %v516, %v512
    %v518 = vmul.f32 1.0, %v517
    %v519 = vtanh.pop %v499
    %v520 = vmul.f32 %v518, %v464
    %522 = vrot.lane.b32.xlu0 %v519, 64
    %v523 = vpop.permute.xlu0 %522
    %v525 = vmul.f32 %v518, %v523
    %527 = vrot.lane.b32.xlu0 %v525, 32
    %v528 = vpop.permute.xlu0 %527
    %v530 = vadd.f32 %v520, %v528
    %v531 = vtanh.pop %v530
    %533 = vrot.lane.b32.xlu0 %v531, 64
    %v534 = vpop.permute.xlu0 %533
    %v536 = vmul.f32 %v518, %v534
    %538 = vrot.lane.b32.xlu0 %v536, 32
    %v539 = vpop.permute.xlu0 %538
    %541 = vst.msk [vmem:[#allocation2 + $0x28] sm:$0xff] %vm141, %v539
    %v542 = vld [vmem:[#allocation3 + $0x30] sm:$0xff]
    %v543 = vsel %vm141, %v539, 0
    %545 = vmatpush.msra.mxu0 0.0
    %546 = vmatpush.msra.mxu0 0.0
    %547 = vmatpush.msra.mxu0 0.0
    %548 = vmatpush.msra.mxu0 0.0
    %549 = vmatpush.msra.mxu0 0.0
    %550 = vmatpush.msra.mxu0 0.0
    %551 = vmatpush.msra.mxu0 0.0
    %552 = vmatpush.msra.mxu0 0.0
    %553 = vmatpush.msra.mxu0 0.0
    %554 = vmatpush.msra.mxu0 0.0
    %555 = vmatpush.msra.mxu0 0.0
    %556 = vmatpush.msra.mxu0 0.0
    %557 = vmatpush.msra.mxu0 %v137
    %558 = vmatpush.msra.mxu0 %v136
    %559 = vmatpush.msra.mxu0 %v135
    %560 = vmatpush.msra.mxu0 %v134
    %561 = vmatmul.f32.gmra.mxu0 %v543
    %v562 = vpop.f32.mrf.mxu0
    %v563 = vadd.f32 0.0, %v562
    %564 = vdwg.mxu0
    %v565 = vadd.f32 %v542, %v563
    %v566 = vxor.u32 %v565, 2147483648
    %v567 = vmul.f32 %v566, 1.442695
    %v568 = vpow.pop %v567
    %v569 = vadd.f32 %v568, 1.0
    %v570 = vrcp.pop %v569
    %v571 = vmul.f32 %v569, %v570
    %v572 = vsub.f32 1.0, %v571
    %v573 = vmul.f32 %v570, %v572
    %v574 = vadd.f32 %v570, %v573
    %vm575 = vweird.f32 %v569
    %vm576 = vweird.f32 %v570
    %vm577 = vmor %vm575, %vm576
    %v578 = vsel %vm577, %v570, %v574
    %v579 = vand.u32 2147483647, %v569
    %vm580 = vcmp.eq.f32.partialorder %v579, 8.507059e+37
    %v581 = vand.u32 %v569, 2147483648
    %v582 = vor.u32 1.1754944e-38, %v581
    %v583 = vsel %vm580, %v582, %v578
    %v584 = vmul.f32 1.0, %v583
    %v585 = vtanh.pop %v565
    %v586 = vmul.f32 %v584, %v530
    %588 = vrot.lane.b32.xlu0 %v585, 64
    %v589 = vpop.permute.xlu0 %588
    %v591 = vmul.f32 %v584, %v589
    %593 = vrot.lane.b32.xlu0 %v591, 32
    %v594 = vpop.permute.xlu0 %593
    %v596 = vadd.f32 %v586, %v594
    %v597 = vtanh.pop %v596
    %599 = vrot.lane.b32.xlu0 %v597, 64
    %v600 = vpop.permute.xlu0 %599
    %v602 = vmul.f32 %v584, %v600
    %604 = vrot.lane.b32.xlu0 %v602, 32
    %v605 = vpop.permute.xlu0 %604
    %607 = vst.msk [vmem:[#allocation2 + $0x30] sm:$0xff] %vm141, %v605
    %v608 = vld [vmem:[#allocation3 + $0x38] sm:$0xff]
    %v609 = vsel %vm141, %v605, 0
    %611 = vmatpush.msra.mxu0 0.0
    %612 = vmatpush.msra.mxu0 0.0
    %613 = vmatpush.msra.mxu0 0.0
    %614 = vmatpush.msra.mxu0 0.0
    %615 = vmatpush.msra.mxu0 0.0
    %616 = vmatpush.msra.mxu0 0.0
    %617 = vmatpush.msra.mxu0 0.0
    %618 = vmatpush.msra.mxu0 0.0
    %619 = vmatpush.msra.mxu0 0.0
    %620 = vmatpush.msra.mxu0 0.0
    %621 = vmatpush.msra.mxu0 0.0
    %622 = vmatpush.msra.mxu0 0.0
    %623 = vmatpush.msra.mxu0 %v137
    %624 = vmatpush.msra.mxu0 %v136
    %625 = vmatpush.msra.mxu0 %v135
    %626 = vmatpush.msra.mxu0 %v134
    %627 = vmatmul.f32.gmra.mxu0 %v609
    %v628 = vpop.f32.mrf.mxu0
    %v629 = vadd.f32 0.0, %v628
    %630 = vdwg.mxu0
    %v631 = vadd.f32 %v608, %v629
    %v632 = vxor.u32 %v631, 2147483648
    %v633 = vmul.f32 %v632, 1.442695
    %v634 = vpow.pop %v633
    %v635 = vadd.f32 %v634, 1.0
    %v636 = vrcp.pop %v635
    %v637 = vmul.f32 %v635, %v636
    %v638 = vsub.f32 1.0, %v637
    %v639 = vmul.f32 %v636, %v638
    %v640 = vadd.f32 %v636, %v639
    %vm641 = vweird.f32 %v635
    %vm642 = vweird.f32 %v636
    %vm643 = vmor %vm641, %vm642
    %v644 = vsel %vm643, %v636, %v640
    %v645 = vand.u32 2147483647, %v635
    %vm646 = vcmp.eq.f32.partialorder %v645, 8.507059e+37
    %v647 = vand.u32 %v635, 2147483648
    %v648 = vor.u32 1.1754944e-38, %v647
    %v649 = vsel %vm646, %v648, %v644
    %v650 = vmul.f32 1.0, %v649
    %v651 = vtanh.pop %v631
    %v652 = vmul.f32 %v650, %v596
    %654 = vrot.lane.b32.xlu0 %v651, 64
    %v655 = vpop.permute.xlu0 %654
    %v657 = vmul.f32 %v650, %v655
    %659 = vrot.lane.b32.xlu0 %v657, 32
    %v660 = vpop.permute.xlu0 %659
    %v662 = vadd.f32 %v652, %v660
    %v663 = vtanh.pop %v662
    %665 = vrot.lane.b32.xlu0 %v663, 64
    %v666 = vpop.permute.xlu0 %665
    %v668 = vmul.f32 %v650, %v666
    %670 = vrot.lane.b32.xlu0 %v668, 32
    %v671 = vpop.permute.xlu0 %670
    %673 = vst.msk [vmem:[#allocation2 + $0x38] sm:$0xff] %vm141, %v671
    %v674 = vld [vmem:[#allocation2] sm:$0xff]
    %v675 = vld [vmem:[#allocation2 + $0x8] sm:$0xff]
    %v676 = vld [vmem:[#allocation2 + $0x10] sm:$0xff]
    %v677 = vld [vmem:[#allocation2 + $0x18] sm:$0xff]
    %v678 = vld [vmem:[#allocation2 + $0x20] sm:$0xff]
    %v679 = vld [vmem:[#allocation2 + $0x28] sm:$0xff]
    %v680 = vld [vmem:[#allocation2 + $0x30] sm:$0xff]
    %v681 = vld [vmem:[#allocation2 + $0x38] sm:$0xff]
    %v682 = vld [vmem:[%s7] sm:$0xff]
    %v683 = vld [vmem:[%s7 + $0x8] sm:$0xff]
    %v684 = vld [vmem:[%s7 + $0x10] sm:$0xff]
    %v685 = vld [vmem:[%s7 + $0x18] sm:$0xff]
    %v686 = vld [vmem:[%s9] sm:$0x1]
    %v688 = vperm.slane %v686, 0
    %v691 = vsel %vm141, %v674, 0
    %v694 = vsel %vm141, %v675, 0
    %v697 = vsel %vm141, %v676, 0
    %v700 = vsel %vm141, %v677, 0
    %v703 = vsel %vm141, %v678, 0
    %v706 = vsel %vm141, %v679, 0
    %v709 = vsel %vm141, %v680, 0
    %v712 = vsel %vm141, %v681, 0
    %714 = vmatpush.msra.mxu0 0.0
    %715 = vmatpush.msra.mxu0 0.0
    %716 = vmatpush.msra.mxu0 0.0
    %717 = vmatpush.msra.mxu0 0.0
    %718 = vmatpush.msra.mxu0 0.0
    %719 = vmatpush.msra.mxu0 0.0
    %720 = vmatpush.msra.mxu0 0.0
    %721 = vmatpush.msra.mxu0 0.0
    %722 = vmatpush.msra.mxu0 0.0
    %723 = vmatpush.msra.mxu0 0.0
    %724 = vmatpush.msra.mxu0 0.0
    %725 = vmatpush.msra.mxu0 0.0
    %726 = vmatpush.msra.mxu0 %v685
    %727 = vmatpush.msra.mxu0 %v684
    %728 = vmatpush.msra.mxu0 %v683
    %729 = vmatpush.msra.mxu0 %v682
    %730 = vmatmul.f32.gmra.mxu0 %v691
    %v731 = vpop.f32.mrf.mxu0
    %v732 = vadd.f32 %v688, %v731
    %733 = vmatmul.f32.gmra.mxu0 %v694
    %v734 = vpop.f32.mrf.mxu0
    %v735 = vadd.f32 %v688, %v734
    %736 = vmatmul.f32.gmra.mxu0 %v697
    %v737 = vpop.f32.mrf.mxu0
    %v738 = vadd.f32 %v688, %v737
    %739 = vmatmul.f32.gmra.mxu0 %v700
    %v740 = vpop.f32.mrf.mxu0
    %v741 = vadd.f32 %v688, %v740
    %742 = vmatmul.f32.gmra.mxu0 %v703
    %v743 = vpop.f32.mrf.mxu0
    %v744 = vadd.f32 %v688, %v743
    %745 = vmatmul.f32.gmra.mxu0 %v706
    %v746 = vpop.f32.mrf.mxu0
    %v747 = vadd.f32 %v688, %v746
    %748 = vmatmul.f32.gmra.mxu0 %v709
    %v749 = vpop.f32.mrf.mxu0
    %v750 = vadd.f32 %v688, %v749
    %751 = vmatmul.f32.gmra.mxu0 %v712
    %v752 = vpop.f32.mrf.mxu0
    %v753 = vadd.f32 %v688, %v752
    %754 = vdwg.mxu0
    %755 = vst [vmem:[#allocation3] sm:$0xff] %v732
    %756 = vst [vmem:[#allocation3 + $0x8] sm:$0xff] %v735
    %757 = vst [vmem:[#allocation3 + $0x10] sm:$0xff] %v738
    %758 = vst [vmem:[#allocation3 + $0x18] sm:$0xff] %v741
    %759 = vst [vmem:[#allocation3 + $0x20] sm:$0xff] %v744
    %760 = vst [vmem:[#allocation3 + $0x28] sm:$0xff] %v747
    %761 = vst [vmem:[#allocation3 + $0x30] sm:$0xff] %v750
    %762 = vst [vmem:[#allocation3 + $0x38] sm:$0xff] %v753
    %v763 = vld [vmem:[%s8] sm:$0xff]
    %v764 = vld [vmem:[%s8 + $0x8] sm:$0xff]
    %v765 = vld [vmem:[%s8 + $0x10] sm:$0xff]
    %v766 = vld [vmem:[%s8 + $0x18] sm:$0xff]
    %s767 = scalar_lea.vmem %s1, 8
    %v768 = vld [vmem:[%s767] sm:$0xff]
    %s769 = scalar_lea.vmem %s2, 8
    %v770 = vld [vmem:[%s769] sm:$0xff]
    %v771 = vld [vmem:[#allocation3] sm:$0xff]
    %v773 = vsel %vm141, %v768, 0
    %775 = vmatpush.msra.mxu0 0.0
    %776 = vmatpush.msra.mxu0 0.0
    %777 = vmatpush.msra.mxu0 0.0
    %778 = vmatpush.msra.mxu0 0.0
    %779 = vmatpush.msra.mxu0 0.0
    %780 = vmatpush.msra.mxu0 0.0
    %781 = vmatpush.msra.mxu0 0.0
    %782 = vmatpush.msra.mxu0 0.0
    %783 = vmatpush.msra.mxu0 0.0
    %784 = vmatpush.msra.mxu0 0.0
    %785 = vmatpush.msra.mxu0 0.0
    %786 = vmatpush.msra.mxu0 0.0
    %787 = vmatpush.msra.mxu0 %v766
    %788 = vmatpush.msra.mxu0 %v765
    %789 = vmatpush.msra.mxu0 %v764
    %790 = vmatpush.msra.mxu0 %v763
    %791 = vmatmul.f32.gmra.mxu0 %v773
    %v792 = vpop.f32.mrf.mxu0
    %v793 = vadd.f32 0.0, %v792
    %794 = vdwg.mxu0
    %v795 = vadd.f32 %v771, %v793
    %v796 = vxor.u32 %v795, 2147483648
    %v797 = vmul.f32 %v796, 1.442695
    %v798 = vpow.pop %v797
    %v799 = vadd.f32 %v798, 1.0
    %v800 = vrcp.pop %v799
    %v801 = vmul.f32 %v799, %v800
    %v802 = vsub.f32 1.0, %v801
    %v803 = vmul.f32 %v800, %v802
    %v804 = vadd.f32 %v800, %v803
    %vm805 = vweird.f32 %v799
    %vm806 = vweird.f32 %v800
    %vm807 = vmor %vm805, %vm806
    %v808 = vsel %vm807, %v800, %v804
    %v809 = vand.u32 2147483647, %v799
    %vm810 = vcmp.eq.f32.partialorder %v809, 8.507059e+37
    %v811 = vand.u32 %v799, 2147483648
    %v812 = vor.u32 1.1754944e-38, %v811
    %v813 = vsel %vm810, %v812, %v808
    %v814 = vmul.f32 1.0, %v813
    %v815 = vtanh.pop %v795
    %817 = vrot.lane.b32.xlu0 %v770, 32
    %v818 = vpop.permute.xlu0 %817
    %v820 = vmul.f32 %v814, %v818
    %822 = vrot.lane.b32.xlu0 %v815, 64
    %v823 = vpop.permute.xlu0 %822
    %v825 = vmul.f32 %v814, %v823
    %827 = vrot.lane.b32.xlu0 %v825, 32
    %v828 = vpop.permute.xlu0 %827
    %v830 = vadd.f32 %v820, %v828
    %v831 = vtanh.pop %v830
    %833 = vrot.lane.b32.xlu0 %v831, 64
    %v834 = vpop.permute.xlu0 %833
    %v836 = vmul.f32 %v814, %v834
    %v837 = vld [vmem:[#allocation3 + $0x8] sm:$0xff]
    %839 = vrot.lane.b32.xlu0 %v836, 32
    %v840 = vpop.permute.xlu0 %839
    %v841 = vsel %vm141, %v840, 0
    %843 = vmatpush.msra.mxu0 0.0
    %844 = vmatpush.msra.mxu0 0.0
    %845 = vmatpush.msra.mxu0 0.0
    %846 = vmatpush.msra.mxu0 0.0
    %847 = vmatpush.msra.mxu0 0.0
    %848 = vmatpush.msra.mxu0 0.0
    %849 = vmatpush.msra.mxu0 0.0
    %850 = vmatpush.msra.mxu0 0.0
    %851 = vmatpush.msra.mxu0 0.0
    %852 = vmatpush.msra.mxu0 0.0
    %853 = vmatpush.msra.mxu0 0.0
    %854 = vmatpush.msra.mxu0 0.0
    %855 = vmatpush.msra.mxu0 %v766
    %856 = vmatpush.msra.mxu0 %v765
    %857 = vmatpush.msra.mxu0 %v764
    %858 = vmatpush.msra.mxu0 %v763
    %859 = vmatmul.f32.gmra.mxu0 %v841
    %v860 = vpop.f32.mrf.mxu0
    %v861 = vadd.f32 0.0, %v860
    %862 = vdwg.mxu0
    %v863 = vadd.f32 %v837, %v861
    %v864 = vxor.u32 %v863, 2147483648
    %v865 = vmul.f32 %v864, 1.442695
    %v866 = vpow.pop %v865
    %v867 = vadd.f32 %v866, 1.0
    %v868 = vrcp.pop %v867
    %v869 = vmul.f32 %v867, %v868
    %v870 = vsub.f32 1.0, %v869
    %v871 = vmul.f32 %v868, %v870
    %v872 = vadd.f32 %v868, %v871
    %vm873 = vweird.f32 %v867
    %vm874 = vweird.f32 %v868
    %vm875 = vmor %vm873, %vm874
    %v876 = vsel %vm875, %v868, %v872
    %v877 = vand.u32 2147483647, %v867
    %vm878 = vcmp.eq.f32.partialorder %v877, 8.507059e+37
    %v879 = vand.u32 %v867, 2147483648
    %v880 = vor.u32 1.1754944e-38, %v879
    %v881 = vsel %vm878, %v880, %v876
    %v882 = vmul.f32 1.0, %v881
    %v883 = vtanh.pop %v863
    %v884 = vmul.f32 %v882, %v830
    %886 = vrot.lane.b32.xlu0 %v883, 64
    %v887 = vpop.permute.xlu0 %886
    %v889 = vmul.f32 %v882, %v887
    %891 = vrot.lane.b32.xlu0 %v889, 32
    %v892 = vpop.permute.xlu0 %891
    %v894 = vadd.f32 %v884, %v892
    %v895 = vtanh.pop %v894
    %897 = vrot.lane.b32.xlu0 %v895, 64
    %v898 = vpop.permute.xlu0 %897
    %v900 = vmul.f32 %v882, %v898
    %v901 = vld [vmem:[#allocation3 + $0x10] sm:$0xff]
    %903 = vrot.lane.b32.xlu0 %v900, 32
    %v904 = vpop.permute.xlu0 %903
    %v905 = vsel %vm141, %v904, 0
    %907 = vmatpush.msra.mxu0 0.0
    %908 = vmatpush.msra.mxu0 0.0
    %909 = vmatpush.msra.mxu0 0.0
    %910 = vmatpush.msra.mxu0 0.0
    %911 = vmatpush.msra.mxu0 0.0
    %912 = vmatpush.msra.mxu0 0.0
    %913 = vmatpush.msra.mxu0 0.0
    %914 = vmatpush.msra.mxu0 0.0
    %915 = vmatpush.msra.mxu0 0.0
    %916 = vmatpush.msra.mxu0 0.0
    %917 = vmatpush.msra.mxu0 0.0
    %918 = vmatpush.msra.mxu0 0.0
    %919 = vmatpush.msra.mxu0 %v766
    %920 = vmatpush.msra.mxu0 %v765
    %921 = vmatpush.msra.mxu0 %v764
    %922 = vmatpush.msra.mxu0 %v763
    %923 = vmatmul.f32.gmra.mxu0 %v905
    %v924 = vpop.f32.mrf.mxu0
    %v925 = vadd.f32 0.0, %v924
    %926 = vdwg.mxu0
    %v927 = vadd.f32 %v901, %v925
    %v928 = vxor.u32 %v927, 2147483648
    %v929 = vmul.f32 %v928, 1.442695
    %v930 = vpow.pop %v929
    %v931 = vadd.f32 %v930, 1.0
    %v932 = vrcp.pop %v931
    %v933 = vmul.f32 %v931, %v932
    %v934 = vsub.f32 1.0, %v933
    %v935 = vmul.f32 %v932, %v934
    %v936 = vadd.f32 %v932, %v935
    %vm937 = vweird.f32 %v931
    %vm938 = vweird.f32 %v932
    %vm939 = vmor %vm937, %vm938
    %v940 = vsel %vm939, %v932, %v936
    %v941 = vand.u32 2147483647, %v931
    %vm942 = vcmp.eq.f32.partialorder %v941, 8.507059e+37
    %v943 = vand.u32 %v931, 2147483648
    %v944 = vor.u32 1.1754944e-38, %v943
    %v945 = vsel %vm942, %v944, %v940
    %v946 = vmul.f32 1.0, %v945
    %v947 = vtanh.pop %v927
    %v948 = vmul.f32 %v946, %v894
    %950 = vrot.lane.b32.xlu0 %v947, 64
    %v951 = vpop.permute.xlu0 %950
    %v953 = vmul.f32 %v946, %v951
    %955 = vrot.lane.b32.xlu0 %v953, 32
    %v956 = vpop.permute.xlu0 %955
    %v958 = vadd.f32 %v948, %v956
    %v959 = vtanh.pop %v958
    %961 = vrot.lane.b32.xlu0 %v959, 64
    %v962 = vpop.permute.xlu0 %961
    %v964 = vmul.f32 %v946, %v962
    %v965 = vld [vmem:[#allocation3 + $0x18] sm:$0xff]
    %967 = vrot.lane.b32.xlu0 %v964, 32
    %v968 = vpop.permute.xlu0 %967
    %v969 = vsel %vm141, %v968, 0
    %971 = vmatpush.msra.mxu0 0.0
    %972 = vmatpush.msra.mxu0 0.0
    %973 = vmatpush.msra.mxu0 0.0
    %974 = vmatpush.msra.mxu0 0.0
    %975 = vmatpush.msra.mxu0 0.0
    %976 = vmatpush.msra.mxu0 0.0
    %977 = vmatpush.msra.mxu0 0.0
    %978 = vmatpush.msra.mxu0 0.0
    %979 = vmatpush.msra.mxu0 0.0
    %980 = vmatpush.msra.mxu0 0.0
    %981 = vmatpush.msra.mxu0 0.0
    %982 = vmatpush.msra.mxu0 0.0
    %983 = vmatpush.msra.mxu0 %v766
    %984 = vmatpush.msra.mxu0 %v765
    %985 = vmatpush.msra.mxu0 %v764
    %986 = vmatpush.msra.mxu0 %v763
    %987 = vmatmul.f32.gmra.mxu0 %v969
    %v988 = vpop.f32.mrf.mxu0
    %v989 = vadd.f32 0.0, %v988
    %990 = vdwg.mxu0
    %v991 = vadd.f32 %v965, %v989
    %v992 = vxor.u32 %v991, 2147483648
    %v993 = vmul.f32 %v992, 1.442695
    %v994 = vpow.pop %v993
    %v995 = vadd.f32 %v994, 1.0
    %v996 = vrcp.pop %v995
    %v997 = vmul.f32 %v995, %v996
    %v998 = vsub.f32 1.0, %v997
    %v999 = vmul.f32 %v996, %v998
    %v1000 = vadd.f32 %v996, %v999
    %vm1001 = vweird.f32 %v995
    %vm1002 = vweird.f32 %v996
    %vm1003 = vmor %vm1001, %vm1002
    %v1004 = vsel %vm1003, %v996, %v1000
    %v1005 = vand.u32 2147483647, %v995
    %vm1006 = vcmp.eq.f32.partialorder %v1005, 8.507059e+37
    %v1007 = vand.u32 %v995, 2147483648
    %v1008 = vor.u32 1.1754944e-38, %v1007
    %v1009 = vsel %vm1006, %v1008, %v1004
    %v1010 = vmul.f32 1.0, %v1009
    %v1011 = vtanh.pop %v991
    %v1012 = vmul.f32 %v1010, %v958
    %1014 = vrot.lane.b32.xlu0 %v1011, 64
    %v1015 = vpop.permute.xlu0 %1014
    %v1017 = vmul.f32 %v1010, %v1015
    %1019 = vrot.lane.b32.xlu0 %v1017, 32
    %v1020 = vpop.permute.xlu0 %1019
    %v1022 = vadd.f32 %v1012, %v1020
    %v1023 = vtanh.pop %v1022
    %1025 = vrot.lane.b32.xlu0 %v1023, 64
    %v1026 = vpop.permute.xlu0 %1025
    %v1028 = vmul.f32 %v1010, %v1026
    %v1029 = vld [vmem:[#allocation3 + $0x20] sm:$0xff]
    %1031 = vrot.lane.b32.xlu0 %v1028, 32
    %v1032 = vpop.permute.xlu0 %1031
    %v1033 = vsel %vm141, %v1032, 0
    %1035 = vmatpush.msra.mxu0 0.0
    %1036 = vmatpush.msra.mxu0 0.0
    %1037 = vmatpush.msra.mxu0 0.0
    %1038 = vmatpush.msra.mxu0 0.0
    %1039 = vmatpush.msra.mxu0 0.0
    %1040 = vmatpush.msra.mxu0 0.0
    %1041 = vmatpush.msra.mxu0 0.0
    %1042 = vmatpush.msra.mxu0 0.0
    %1043 = vmatpush.msra.mxu0 0.0
    %1044 = vmatpush.msra.mxu0 0.0
    %1045 = vmatpush.msra.mxu0 0.0
    %1046 = vmatpush.msra.mxu0 0.0
    %1047 = vmatpush.msra.mxu0 %v766
    %1048 = vmatpush.msra.mxu0 %v765
    %1049 = vmatpush.msra.mxu0 %v764
    %1050 = vmatpush.msra.mxu0 %v763
    %1051 = vmatmul.f32.gmra.mxu0 %v1033
    %v1052 = vpop.f32.mrf.mxu0
    %v1053 = vadd.f32 0.0, %v1052
    %1054 = vdwg.mxu0
    %v1055 = vadd.f32 %v1029, %v1053
    %v1056 = vxor.u32 %v1055, 2147483648
    %v1057 = vmul.f32 %v1056, 1.442695
    %v1058 = vpow.pop %v1057
    %v1059 = vadd.f32 %v1058, 1.0
    %v1060 = vrcp.pop %v1059
    %v1061 = vmul.f32 %v1059, %v1060
    %v1062 = vsub.f32 1.0, %v1061
    %v1063 = vmul.f32 %v1060, %v1062
    %v1064 = vadd.f32 %v1060, %v1063
    %vm1065 = vweird.f32 %v1059
    %vm1066 = vweird.f32 %v1060
    %vm1067 = vmor %vm1065, %vm1066
    %v1068 = vsel %vm1067, %v1060, %v1064
    %v1069 = vand.u32 2147483647, %v1059
    %vm1070 = vcmp.eq.f32.partialorder %v1069, 8.507059e+37
    %v1071 = vand.u32 %v1059, 2147483648
    %v1072 = vor.u32 1.1754944e-38, %v1071
    %v1073 = vsel %vm1070, %v1072, %v1068
    %v1074 = vmul.f32 1.0, %v1073
    %v1075 = vtanh.pop %v1055
    %v1076 = vmul.f32 %v1074, %v1022
    %1078 = vrot.lane.b32.xlu0 %v1075, 64
    %v1079 = vpop.permute.xlu0 %1078
    %v1081 = vmul.f32 %v1074, %v1079
    %1083 = vrot.lane.b32.xlu0 %v1081, 32
    %v1084 = vpop.permute.xlu0 %1083
    %v1086 = vadd.f32 %v1076, %v1084
    %v1087 = vtanh.pop %v1086
    %1089 = vrot.lane.b32.xlu0 %v1087, 64
    %v1090 = vpop.permute.xlu0 %1089
    %v1092 = vmul.f32 %v1074, %v1090
    %v1093 = vld [vmem:[#allocation3 + $0x28] sm:$0xff]
    %1095 = vrot.lane.b32.xlu0 %v1092, 32
    %v1096 = vpop.permute.xlu0 %1095
    %v1097 = vsel %vm141, %v1096, 0
    %1099 = vmatpush.msra.mxu0 0.0
    %1100 = vmatpush.msra.mxu0 0.0
    %1101 = vmatpush.msra.mxu0 0.0
    %1102 = vmatpush.msra.mxu0 0.0
    %1103 = vmatpush.msra.mxu0 0.0
    %1104 = vmatpush.msra.mxu0 0.0
    %1105 = vmatpush.msra.mxu0 0.0
    %1106 = vmatpush.msra.mxu0 0.0
    %1107 = vmatpush.msra.mxu0 0.0
    %1108 = vmatpush.msra.mxu0 0.0
    %1109 = vmatpush.msra.mxu0 0.0
    %1110 = vmatpush.msra.mxu0 0.0
    %1111 = vmatpush.msra.mxu0 %v766
    %1112 = vmatpush.msra.mxu0 %v765
    %1113 = vmatpush.msra.mxu0 %v764
    %1114 = vmatpush.msra.mxu0 %v763
    %1115 = vmatmul.f32.gmra.mxu0 %v1097
    %v1116 = vpop.f32.mrf.mxu0
    %v1117 = vadd.f32 0.0, %v1116
    %1118 = vdwg.mxu0
    %v1119 = vadd.f32 %v1093, %v1117
    %v1120 = vxor.u32 %v1119, 2147483648
    %v1121 = vmul.f32 %v1120, 1.442695
    %v1122 = vpow.pop %v1121
    %v1123 = vadd.f32 %v1122, 1.0
    %v1124 = vrcp.pop %v1123
    %v1125 = vmul.f32 %v1123, %v1124
    %v1126 = vsub.f32 1.0, %v1125
    %v1127 = vmul.f32 %v1124, %v1126
    %v1128 = vadd.f32 %v1124, %v1127
    %vm1129 = vweird.f32 %v1123
    %vm1130 = vweird.f32 %v1124
    %vm1131 = vmor %vm1129, %vm1130
    %v1132 = vsel %vm1131, %v1124, %v1128
    %v1133 = vand.u32 2147483647, %v1123
    %vm1134 = vcmp.eq.f32.partialorder %v1133, 8.507059e+37
    %v1135 = vand.u32 %v1123, 2147483648
    %v1136 = vor.u32 1.1754944e-38, %v1135
    %v1137 = vsel %vm1134, %v1136, %v1132
    %v1138 = vmul.f32 1.0, %v1137
    %v1139 = vtanh.pop %v1119
    %v1140 = vmul.f32 %v1138, %v1086
    %1142 = vrot.lane.b32.xlu0 %v1139, 64
    %v1143 = vpop.permute.xlu0 %1142
    %v1145 = vmul.f32 %v1138, %v1143
    %1147 = vrot.lane.b32.xlu0 %v1145, 32
    %v1148 = vpop.permute.xlu0 %1147
    %v1150 = vadd.f32 %v1140, %v1148
    %v1151 = vtanh.pop %v1150
    %1153 = vrot.lane.b32.xlu0 %v1151, 64
    %v1154 = vpop.permute.xlu0 %1153
    %v1156 = vmul.f32 %v1138, %v1154
    %v1157 = vld [vmem:[#allocation3 + $0x30] sm:$0xff]
    %1159 = vrot.lane.b32.xlu0 %v1156, 32
    %v1160 = vpop.permute.xlu0 %1159
    %v1161 = vsel %vm141, %v1160, 0
    %1163 = vmatpush.msra.mxu0 0.0
    %1164 = vmatpush.msra.mxu0 0.0
    %1165 = vmatpush.msra.mxu0 0.0
    %1166 = vmatpush.msra.mxu0 0.0
    %1167 = vmatpush.msra.mxu0 0.0
    %1168 = vmatpush.msra.mxu0 0.0
    %1169 = vmatpush.msra.mxu0 0.0
    %1170 = vmatpush.msra.mxu0 0.0
    %1171 = vmatpush.msra.mxu0 0.0
    %1172 = vmatpush.msra.mxu0 0.0
    %1173 = vmatpush.msra.mxu0 0.0
    %1174 = vmatpush.msra.mxu0 0.0
    %1175 = vmatpush.msra.mxu0 %v766
    %1176 = vmatpush.msra.mxu0 %v765
    %1177 = vmatpush.msra.mxu0 %v764
    %1178 = vmatpush.msra.mxu0 %v763
    %1179 = vmatmul.f32.gmra.mxu0 %v1161
    %v1180 = vpop.f32.mrf.mxu0
    %v1181 = vadd.f32 0.0, %v1180
    %1182 = vdwg.mxu0
    %v1183 = vadd.f32 %v1157, %v1181
    %v1184 = vxor.u32 %v1183, 2147483648
    %v1185 = vmul.f32 %v1184, 1.442695
    %v1186 = vpow.pop %v1185
    %v1187 = vadd.f32 %v1186, 1.0
    %v1188 = vrcp.pop %v1187
    %v1189 = vmul.f32 %v1187, %v1188
    %v1190 = vsub.f32 1.0, %v1189
    %v1191 = vmul.f32 %v1188, %v1190
    %v1192 = vadd.f32 %v1188, %v1191
    %vm1193 = vweird.f32 %v1187
    %vm1194 = vweird.f32 %v1188
    %vm1195 = vmor %vm1193, %vm1194
    %v1196 = vsel %vm1195, %v1188, %v1192
    %v1197 = vand.u32 2147483647, %v1187
    %vm1198 = vcmp.eq.f32.partialorder %v1197, 8.507059e+37
    %v1199 = vand.u32 %v1187, 2147483648
    %v1200 = vor.u32 1.1754944e-38, %v1199
    %v1201 = vsel %vm1198, %v1200, %v1196
    %v1202 = vmul.f32 1.0, %v1201
    %v1203 = vtanh.pop %v1183
    %v1204 = vmul.f32 %v1202, %v1150
    %1206 = vrot.lane.b32.xlu0 %v1203, 64
    %v1207 = vpop.permute.xlu0 %1206
    %v1209 = vmul.f32 %v1202, %v1207
    %1211 = vrot.lane.b32.xlu0 %v1209, 32
    %v1212 = vpop.permute.xlu0 %1211
    %v1214 = vadd.f32 %v1204, %v1212
    %v1215 = vtanh.pop %v1214
    %1217 = vrot.lane.b32.xlu0 %v1215, 64
    %v1218 = vpop.permute.xlu0 %1217
    %v1220 = vmul.f32 %v1202, %v1218
    %v1221 = vld [vmem:[#allocation3 + $0x38] sm:$0xff]
    %1223 = vrot.lane.b32.xlu0 %v1220, 32
    %v1224 = vpop.permute.xlu0 %1223
    %v1225 = vsel %vm141, %v1224, 0
    %1227 = vmatpush.msra.mxu0 0.0
    %1228 = vmatpush.msra.mxu0 0.0
    %1229 = vmatpush.msra.mxu0 0.0
    %1230 = vmatpush.msra.mxu0 0.0
    %1231 = vmatpush.msra.mxu0 0.0
    %1232 = vmatpush.msra.mxu0 0.0
    %1233 = vmatpush.msra.mxu0 0.0
    %1234 = vmatpush.msra.mxu0 0.0
    %1235 = vmatpush.msra.mxu0 0.0
    %1236 = vmatpush.msra.mxu0 0.0
    %1237 = vmatpush.msra.mxu0 0.0
    %1238 = vmatpush.msra.mxu0 0.0
    %1239 = vmatpush.msra.mxu0 %v766
    %1240 = vmatpush.msra.mxu0 %v765
    %1241 = vmatpush.msra.mxu0 %v764
    %1242 = vmatpush.msra.mxu0 %v763
    %1243 = vmatmul.f32.gmra.mxu0 %v1225
    %v1244 = vpop.f32.mrf.mxu0
    %v1245 = vadd.f32 0.0, %v1244
    %1246 = vdwg.mxu0
    %v1247 = vadd.f32 %v1221, %v1245
    %v1248 = vxor.u32 %v1247, 2147483648
    %v1249 = vmul.f32 %v1248, 1.442695
    %v1250 = vpow.pop %v1249
    %v1251 = vadd.f32 %v1250, 1.0
    %v1252 = vrcp.pop %v1251
    %v1253 = vmul.f32 %v1251, %v1252
    %v1254 = vsub.f32 1.0, %v1253
    %v1255 = vmul.f32 %v1252, %v1254
    %v1256 = vadd.f32 %v1252, %v1255
    %vm1257 = vweird.f32 %v1251
    %vm1258 = vweird.f32 %v1252
    %vm1259 = vmor %vm1257, %vm1258
    %v1260 = vsel %vm1259, %v1252, %v1256
    %v1261 = vand.u32 2147483647, %v1251
    %vm1262 = vcmp.eq.f32.partialorder %v1261, 8.507059e+37
    %v1263 = vand.u32 %v1251, 2147483648
    %v1264 = vor.u32 1.1754944e-38, %v1263
    %v1265 = vsel %vm1262, %v1264, %v1260
    %v1266 = vmul.f32 1.0, %v1265
    %v1267 = vtanh.pop %v1247
    %v1268 = vmul.f32 %v1266, %v1214
    %1270 = vrot.lane.b32.xlu0 %v1267, 64
    %v1271 = vpop.permute.xlu0 %1270
    %v1273 = vmul.f32 %v1266, %v1271
    %1275 = vrot.lane.b32.xlu0 %v1273, 32
    %v1276 = vpop.permute.xlu0 %1275
    %v1278 = vadd.f32 %v1268, %v1276
    %v1279 = vtanh.pop %v1278
    %1281 = vrot.lane.b32.xlu0 %v1279, 64
    %v1282 = vpop.permute.xlu0 %1281
    %v1284 = vmul.f32 %v1266, %v1282
    %v1285 = vld [vmem:[%s10] sm:$0xff]
    %v1286 = vld [vmem:[%s10 + $0x8] sm:$0xff]
    %v1287 = vld [vmem:[%s10 + $0x10] sm:$0xff]
    %v1288 = vld [vmem:[%s10 + $0x18] sm:$0xff]
    %v1289 = vld [vmem:[%s11] sm:$0x1]
    %v1291 = vperm.slane %v1289, 0
    %1294 = vrot.lane.b32.xlu0 %v1284, 32
    %v1295 = vpop.permute.xlu0 %1294
    %v1296 = vsel %vm141, %v1295, 0
    %1298 = vmatpush.msra.mxu0 0.0
    %1299 = vmatpush.msra.mxu0 0.0
    %1300 = vmatpush.msra.mxu0 0.0
    %1301 = vmatpush.msra.mxu0 0.0
    %1302 = vmatpush.msra.mxu0 0.0
    %1303 = vmatpush.msra.mxu0 0.0
    %1304 = vmatpush.msra.mxu0 0.0
    %1305 = vmatpush.msra.mxu0 0.0
    %1306 = vmatpush.msra.mxu0 0.0
    %1307 = vmatpush.msra.mxu0 0.0
    %1308 = vmatpush.msra.mxu0 0.0
    %1309 = vmatpush.msra.mxu0 0.0
    %1310 = vmatpush.msra.mxu0 %v1288
    %1311 = vmatpush.msra.mxu0 %v1287
    %1312 = vmatpush.msra.mxu0 %v1286
    %1313 = vmatpush.msra.mxu0 %v1285
    %1314 = vmatmul.f32.gmra.mxu0 %v1296
    %v1315 = vpop.f32.mrf.mxu0
    %v1316 = vadd.f32 %v1291, %v1315
    %1317 = vdwg.mxu0
    %vm1318 = vcmask 64512
    %1319 = vst.msk [vmem:[#allocation4] sm:$0xff] %vm1318, %v1316
    %1321 = vrot.lane.b32.xlu0 %v1316, 120
    %v1322 = vpop.permute.xlu0 %1321
    %1324 = vst.msk [vmem:[#allocation6] sm:$0xff] %vm1318, %v1322
    %v1325 = vld [vmem:[%s3] sm:$0xff]
    %v1326 = vmul.f32 %v1316, 0.5
    %v1327 = vmul.f32 %v1326, 1.442695
    %v1328 = vpow.pop %v1327
    %1330 = vrot.lane.b32.xlu0 %v1328, 120
    %v1331 = vpop.permute.xlu0 %1330
    %v1333 = vmul.f32 %v1325, %v1331
    %v1334 = vadd.f32 %v1316, %v1333
    %1335 = vst.msk [vmem:[%s12] sm:$0xff] %vm1318, %v1334
    // Predicated region
    $region50: #{midivae_forward.2} parent=1 // pred_check
      _
    $region51: #{midivae_forward.2} parent=1 // pred_check_branch
      %1337 = sbr.rel (0) target = $region53
    $region52: #{midivae_forward.2} parent=1 // pred_region
      _
    $region53: #{midivae_forward.2} parent=1 // pred_fallthru
      _
    // Predicated region
    $region54: #{midivae_forward.2} parent=1 // pred_check
      _
    $region55: #{midivae_forward.2} parent=1 // pred_check_branch
      %1339 = sbr.rel (0) target = $region57
    $region56: #{midivae_forward.2} parent=1 // pred_region
      %1341 = vsyncadd [#allocation5], 0
      %s1343 = sshll.u32 [#allocation4], 4
      %s1344 = int_to_ptr.vmem [resolvable:$true] %s1343
      %s1345 = sshll.u32 %s13, 4
      %s1346 = int_to_ptr.hbm [resolvable:$true] %s1345
      %1348 = dma.vmem_to_hbm [thread:$0]  %s1344, 128, %s1346, [#allocation5]
    $region57: #{midivae_forward.2} parent=1 // pred_fallthru
      _
    // Predicated region
    $region58: #{midivae_forward.2} parent=1 // pred_check
      _
    $region59: #{midivae_forward.2} parent=1 // pred_check_branch
      %1350 = sbr.rel (0) target = $region61
    $region60: #{midivae_forward.2} parent=1 // pred_region
      %1352 = vsyncadd [#allocation7], 0
      %s1354 = sshll.u32 [#allocation6], 4
      %s1355 = int_to_ptr.vmem [resolvable:$true] %s1354
      %s1356 = sshll.u32 %s14, 4
      %s1357 = int_to_ptr.hbm [resolvable:$true] %s1356
      %1359 = dma.vmem_to_hbm [thread:$0]  %s1355, 128, %s1357, [#allocation7]
    $region61: #{midivae_forward.2} parent=1 // pred_fallthru
      _
    // Predicated region
    $region62: #{midivae_forward.2} parent=1 // pred_check
      _
    $region63: #{midivae_forward.2} parent=1 // pred_check_branch
      %1361 = sbr.rel (0) target = $region65
    $region64: #{midivae_forward.2} parent=1 // pred_region
      _
    $region65: #{midivae_forward.2} parent=1 // pred_fallthru
      _
    // Predicated region
    $region66: #{midivae_forward.2} parent=1 // pred_check
      _
    $region67: #{midivae_forward.2} parent=1 // pred_check_branch
      %1363 = sbr.rel (0) target = $region69
    $region68: #{midivae_forward.2} parent=1 // pred_region
      %1365 = dma.done [#allocation5], 128
    $region69: #{midivae_forward.2} parent=1 // pred_fallthru
      _
    // Predicated region
    $region70: #{midivae_forward.2} parent=1 // pred_check
      _
    $region71: #{midivae_forward.2} parent=1 // pred_check_branch
      %1367 = sbr.rel (0) target = $region73
    $region72: #{midivae_forward.2} parent=1 // pred_region
      %1369 = dma.done [#allocation7], 128
    $region73: #{midivae_forward.2} parent=1 // pred_fallthru
      _
    %1370 = vsyncpa [#allocation5], 1
    %1371 = vsyncpa [#allocation7], 1

</llo_original>
